<compile_context>
chip_gen: v7x
topology: tpu7x:2x2x1
jax: 0.10.0
libtpu: 0.0.40
codegen_flags: <defaults>
</compile_context>

<pallas_src>
import jax
import jax.numpy as jnp
from jax.experimental import pallas as pl
from jax.experimental.pallas import tpu as pltpu


# Slab indices inside the single packed weight buffer (16, 2H, SW).
(_W_MSG, _W_ENEW, _W_2A, _W_2B, _W_GN, _W_GE,
 _W_TRI_I, _W_TRI_E, _W_TRI_J,
 _B_1A, _B_MSG, _B_ENEW, _B_2A, _B_2B, _B_GN, _B_GE) = range(16)
_NSLAB = 16
_GATES = (0, 2)  # update ("z") and candidate ("h") gates; reset gate is dead (H0 == 0)


# ----------------------------------------------------------------------------
# Pallas kernel: one grid step == one TensorCore's partial attention sum over
# its PP = P / NC periods.  Everything is feature-major: activations are
# (feat, batch*rows) so the big axis is on lanes (dense matmul outputs/stores).
# ----------------------------------------------------------------------------
def _a3tgcn_kernel(probs_ref,                 # SMEM scalar-prefetch: (P,) f32
                   xT_ref, efT_ref,           # (PP, C, B*N), (PP, C, B*E)
                   gth_ref, aggT_ref,         # (2, B*N, B*E), (B*E, B*N)
                   w_ref,                     # (16, 2H, SW) packed weights/biases
                   out_nT_ref, out_eT_ref):   # (1, H, B*N), (1, H, B*E)
    core = pl.program_id(0)
    PP = xT_ref.shape[0]                      # periods handled by this core (static)
    C = xT_ref.shape[1]
    BN = xT_ref.shape[2]
    BE = efT_ref.shape[2]
    H = out_nT_ref.shape[1]
    H2 = 2 * H

    def mm(a, b):
        return jnp.dot(a, b, preferred_element_type=jnp.float32)

    def w(i, width):                          # one packed slab, prefix lane slice
        return w_ref[i][:, :width]

    def period_step(t, carry):
        acc_n, acc_e = carry
        prob = probs_ref[core * PP + t]       # attention weight (SMEM scalar)
        xT = xT_ref[t]                        # (C, B*N) node feats, feature-major
        efT = efT_ref[t]                      # (C, B*E) edge feats, feature-major

        # Reassociated gather: project node feats to 2H first (B*N columns), then
        # gather target/source per edge with (B*N, B*E) one-hot matmuls whose
        # output lane width is B*E (instead of gathering C-wide feature rows).
        xiw = mm(w(_W_TRI_I, C), xT)                       # (2H, B*N)
        xjw = mm(w(_W_TRI_J, C), xT)                       # (2H, B*N)
        efw = mm(w(_W_TRI_E, C), efT)                      # (2H, B*E)
        pre1 = mm(xiw, gth_ref[0]) + mm(xjw, gth_ref[1]) + efw + w(_B_1A, 1)
        h1 = jnp.maximum(pre1, 0.0)                        # (2H, B*E)  TripletGCN MLP1

        msg = mm(w(_W_MSG, H2), h1) + w(_B_MSG, 1)         # fused (mi + mj) messages
        new_e = mm(w(_W_ENEW, H2), h1) + w(_B_ENEW, 1)     # per-edge GCN output

        aggr = mm(msg, aggT_ref[...])                      # (2H, B*N) scatter-mean
        h2 = jnp.maximum(mm(w(_W_2A, H2), aggr) + w(_B_2A, 1), 0.0)
        gnode = mm(w(_W_2B, H2), h2) + w(_B_2B, 1)         # (2H, B*N) node GCN output

        # Fused GRU gate linears (hidden state == 0, so only the GCN half of each
        # 2H->H linear survives and the reset gate is dropped entirely - exact).
        # Rows [0:H] are the update-gate logits, rows [H:2H] the candidate pre-tanh;
        # the split is a tile-aligned sublane slice (free).
        gn = mm(w(_W_GN, H2), gnode) + w(_B_GN, 1)         # (2H, B*N)
        ge = mm(w(_W_GE, H2), new_e) + w(_B_GE, 1)         # (2H, B*E)
        node_out = (1.0 - jax.nn.sigmoid(gn[:H])) * jnp.tanh(gn[H:])
        edge_out = (1.0 - jax.nn.sigmoid(ge[:H])) * jnp.tanh(ge[H:])

        # H = Z * 0 + (1 - Z) * H_tilde, attention-weighted and accumulated.
        return acc_n + prob * node_out, acc_e + prob * edge_out

    acc_n, acc_e = jax.lax.fori_loop(
        0, PP, period_step,
        (jnp.zeros((H, BN), jnp.float32), jnp.zeros((H, BE), jnp.float32)),
        unroll=True)

    out_nT_ref[0] = acc_n                     # single lane-dense write per core
    out_eT_ref[0] = acc_e


# ----------------------------------------------------------------------------
# Wrapper / parameter packing
# ----------------------------------------------------------------------------
def _pack_params(params, C, H):
    """Pack all weights/biases (transposed, gate-stacked) into one f32 buffer."""
    z, h = _GATES
    zero = jnp.zeros((H, H), jnp.float32)

    def lane_stack(w):      # (3, K, H) -> (K, 2H): gates z,h side-by-side
        return jnp.concatenate([w[z], w[h]], axis=-1).astype(jnp.float32)

    def bdiag(w):           # (3, H, H) -> (2H, 2H): block-diagonal over gates z,h
        top = jnp.concatenate([w[z], zero], axis=1)
        bot = jnp.concatenate([zero, w[h]], axis=1)
        return jnp.concatenate([top, bot], axis=0).astype(jnp.float32)

    w_msg = params['w1b_mi'] + params['w1b_mj']    # fuse the two node-message heads
    b_msg = params['b1b_mi'] + params['b1b_mj']

    SW = max(2 * H, C)                             # common slab lane width

    def slab(m):            # transpose to feature-major, pad lanes to SW
        mt = m.T.astype(jnp.float32)
        return jnp.pad(mt, ((0, 0), (0, SW - mt.shape[1])))

    slabs = [None] * _NSLAB
    slabs[_W_MSG] = slab(bdiag(w_msg))
    slabs[_W_ENEW] = slab(bdiag(params['w1b_e']))
    slabs[_W_2A] = slab(bdiag(params['w2a']))
    slabs[_W_2B] = slab(bdiag(params['w2b']))
    slabs[_W_GN] = slab(bdiag(params['wn_g']))     # fused [Z | H~] node gate selector
    slabs[_W_GE] = slab(bdiag(params['we_g']))     # fused [Z | H~] edge gate selector
    slabs[_W_TRI_I] = slab(lane_stack(params['w1a_i']))
    slabs[_W_TRI_E] = slab(lane_stack(params['w1a_e']))
    slabs[_W_TRI_J] = slab(lane_stack(params['w1a_j']))
    slabs[_B_1A] = slab(lane_stack(params['b1a']))
    slabs[_B_MSG] = slab(lane_stack(b_msg))
    slabs[_B_ENEW] = slab(lane_stack(params['b1b_e']))
    slabs[_B_2A] = slab(lane_stack(params['b2a']))
    slabs[_B_2B] = slab(lane_stack(params['b2b']))
    slabs[_B_GN] = slab(lane_stack(params['bn']))
    slabs[_B_GE] = slab(lane_stack(params['be']))
    return jnp.stack(slabs), SW                    # (16, 2H, SW)


def _graph_matrices(edge_index, N, B):
    """Transposed (feature-major) block-diagonal gather / scatter-mean matrices."""
    src, dst = edge_index[0], edge_index[1]
    gsrc = jax.nn.one_hot(src, N, dtype=jnp.float32)        # (E, N)
    gdst = jax.nn.one_hot(dst, N, dtype=jnp.float32)        # (E, N)
    deg = jnp.sum(gdst, axis=0)                             # in-degree per node
    eye_b = jnp.eye(B, dtype=jnp.float32)
    # (2, B*N, B*E): column e is one-hot at its target / source node.
    gth = jnp.stack([jnp.kron(eye_b, gdst.T), jnp.kron(eye_b, gsrc.T)])
    # (B*E, B*N): scatter-mean (1/deg baked in, f32).
    aggT = jnp.kron(eye_b, gdst / jnp.maximum(deg, 1.0)[None, :])
    return gth, aggT


def temporal_gnn_forward(X, edge_index, edge_feature, params):
    """X: (B, N, C, P) f32; edge_index: (2, E) int32; edge_feature: (B, E, C, P)."""
    B, N, C, P = X.shape
    E = edge_feature.shape[1]
    H = params['w2a'].shape[-1]
    BN, BE = B * N, B * E

    # NC partial sums so v7x's two TensorCores each reduce P/NC periods; on
    # single-core v5e/v6e the "parallel" axis just runs serially (only NC grid
    # steps total, so pipeline overhead is negligible either way).
    NC = 2 if (P >= 2 and P % 2 == 0) else 1
    PP = P // NC

    # Feature-major layout: the big stacked batch*node / batch*edge axis on lanes.
    XpT = jnp.transpose(X.astype(jnp.float32), (3, 2, 0, 1)).reshape(P, C, BN)
    EFpT = jnp.transpose(edge_feature.astype(jnp.float32), (3, 2, 0, 1)).reshape(P, C, BE)

    gth, aggT = _graph_matrices(edge_index, N, B)
    wpack, SW = _pack_params(params, C, H)
    probs = jax.nn.softmax(params['attention']).astype(jnp.float32)    # (P,) -> SMEM

    grid_spec = pltpu.PrefetchScalarGridSpec(
        num_scalar_prefetch=1,
        grid=(NC,),
        in_specs=[
            pl.BlockSpec((PP, C, BN), lambda c, pr: (c, 0, 0)),   # this core's periods
            pl.BlockSpec((PP, C, BE), lambda c, pr: (c, 0, 0)),
            pl.BlockSpec((2, BN, BE), lambda c, pr: (0, 0, 0)),   # dst/src gather (T)
            pl.BlockSpec((BE, BN), lambda c, pr: (0, 0)),         # scatter-mean (T)
            pl.BlockSpec((_NSLAB, 2 * H, SW), lambda c, pr: (0, 0, 0)),  # packed params
        ],
        out_specs=[
            pl.BlockSpec((1, H, BN), lambda c, pr: (c, 0, 0)),
            pl.BlockSpec((1, H, BE), lambda c, pr: (c, 0, 0)),
        ],
    )
    out_shape = [
        jax.ShapeDtypeStruct((NC, H, BN), jnp.float32),
        jax.ShapeDtypeStruct((NC, H, BE), jnp.float32),
    ]
    fn = pl.pallas_call(
        _a3tgcn_kernel,
        grid_spec=grid_spec,
        out_shape=out_shape,
        compiler_params=pltpu.CompilerParams(dimension_semantics=("parallel",)),
    )
    part_n, part_e = fn(probs, XpT, EFpT, gth, aggT, wpack)

    # Tiny epilogue: add the NC per-core partials and restore (B, rows, H).
    h_node = jnp.sum(part_n, axis=0).T.reshape(B, N, H)
    h_edge = jnp.sum(part_e, axis=0).T.reshape(B, E, H)
    return h_node, h_edge


# ----------------------------------------------------------------------------
# Pure-JAX reference (full math, including the dead reset gate / H-half linears)
# ----------------------------------------------------------------------------
def reference_forward(X, edge_index, edge_feature, params):
    B, N, C, P = X.shape
    E = edge_feature.shape[1]
    H = params['w2a'].shape[-1]
    Xp = jnp.transpose(X, (3, 0, 1, 2)).astype(jnp.float32)
    EFp = jnp.transpose(edge_feature, (3, 0, 1, 2)).astype(jnp.float32)
    src, dst = edge_index[0], edge_index[1]
    deg = jnp.zeros((N,), jnp.float32).at[dst].add(1.0)
    probs = jax.nn.softmax(params['attention'])

    out_n = jnp.zeros((B, N, H), jnp.float32)
    out_e = jnp.zeros((B, E, H), jnp.float32)
    for p in range(P):
        Xc, EF = Xp[p], EFp[p]
        x_i = Xc[:, dst, :]
        x_j = Xc[:, src, :]
        gnodes, gedges = [], []
        for g in range(3):
            pre1 = (x_i @ params['w1a_i'][g] + EF @ params['w1a_e'][g] +
                    x_j @ params['w1a_j'][g] + params['b1a'][g])
            h1 = jax.nn.relu(pre1)
            msg = (h1 @ params['w1b_mi'][g] + params['b1b_mi'][g]) + \
                  (h1 @ params['w1b_mj'][g] + params['b1b_mj'][g])
            new_e = h1 @ params['w1b_e'][g] + params['b1b_e'][g]
            aggr = jnp.zeros((B, N, H), jnp.float32).at[:, dst, :].add(msg)
            aggr = aggr / jnp.maximum(deg, 1.0)[None, :, None]
            h2 = jax.nn.relu(aggr @ params['w2a'][g] + params['b2a'][g])
            gnodes.append(h2 @ params['w2b'][g] + params['b2b'][g])
            gedges.append(new_e)
        Hn0 = jnp.zeros((B, N, H), jnp.float32)
        He0 = jnp.zeros((B, E, H), jnp.float32)

        def gate(gn, ge, hn, he, g, act):
            zn = act(gn @ params['wn_g'][g] + hn @ params['wn_h'][g] + params['bn'][g])
            ze = act(ge @ params['we_g'][g] + he @ params['we_h'][g] + params['be'][g])
            return zn, ze

        Zn, Ze = gate(gnodes[0], gedges[0], Hn0, He0, 0, jax.nn.sigmoid)
        Rn, Re = gate(gnodes[1], gedges[1], Hn0, He0, 1, jax.nn.sigmoid)
        Htn, Hte = gate(gnodes[2], gedges[2], Hn0 * Rn, He0 * Re, 2, jnp.tanh)
        Hn = Zn * Hn0 + (1.0 - Zn) * Htn
        He = Ze * He0 + (1.0 - Ze) * Hte
        out_n = out_n + probs[p] * Hn
        out_e = out_e + probs[p] * He
    return out_n, out_e


def init_params(key, C, H, P):
    keys = jax.random.split(key, 23)

    def w(k, shape, scale=0.2):
        return (scale * jax.random.normal(k, shape)).astype(jnp.float32)

    return {
        'w1a_i': w(keys[0], (3, C, H)), 'w1a_e': w(keys[1], (3, C, H)),
        'w1a_j': w(keys[2], (3, C, H)), 'b1a': w(keys[3], (3, 1, H)),
        'w1b_mi': w(keys[4], (3, H, H)), 'w1b_e': w(keys[5], (3, H, H)),
        'w1b_mj': w(keys[6], (3, H, H)),
        'b1b_mi': w(keys[7], (3, 1, H)), 'b1b_e': w(keys[8], (3, 1, H)),
        'b1b_mj': w(keys[9], (3, 1, H)),
        'w2a': w(keys[10], (3, H, H)), 'b2a': w(keys[11], (3, 1, H)),
        'w2b': w(keys[12], (3, H, H)), 'b2b': w(keys[13], (3, 1, H)),
        'wn_g': w(keys[14], (3, H, H)), 'wn_h': w(keys[15], (3, H, H)),
        'bn': w(keys[16], (3, 1, H)),
        'we_g': w(keys[17], (3, H, H)), 'we_h': w(keys[18], (3, H, H)),
        'be': w(keys[19], (3, 1, H)),
        'attention': jax.random.uniform(keys[20], (P,), dtype=jnp.float32),
    }


if __name__ == "__main__":
    B, N, C, P, H, E = 2, 16, 4, 4, 8, 32  # batch, nodes, node_feat, periods, out_channel, edges

    key = jax.random.PRNGKey(0)
    k_x, k_e, k_p = jax.random.split(key, 3)

    X = jax.random.normal(k_x, (B, N, C, P), dtype=jnp.float32)
    edge_feature = jax.random.normal(k_e, (B, E, C, P), dtype=jnp.float32)
    src = jnp.concatenate([jnp.arange(N), jnp.arange(N)]).astype(jnp.int32)
    dst = jnp.concatenate([(jnp.arange(N) + 1) % N, (jnp.arange(N) + 5) % N]).astype(jnp.int32)
    edge_index = jnp.stack([src, dst], axis=0)

    params = init_params(k_p, C, H, P)

    h_node, h_edge = temporal_gnn_forward(X, edge_index, edge_feature, params)
    h_node = jax.block_until_ready(h_node)
    h_edge = jax.block_until_ready(h_edge)

    ref_node, ref_edge = reference_forward(X, edge_index, edge_feature, params)
    ref_node = jax.block_until_ready(ref_node)
    ref_edge = jax.block_until_ready(ref_edge)

    assert h_node.shape == (B, N, H) and h_edge.shape == (B, E, H)
    if not (jnp.allclose(h_node, ref_node, atol=1e-4, rtol=1e-4) and
            jnp.allclose(h_edge, ref_edge, atol=1e-4, rtol=1e-4)):
        raise AssertionError("Pallas kernel output mismatch vs JAX reference")

    print("KERNEL_OK")
</pallas_src>

<mosaic_0001>
module attributes {stable_mosaic.version = 11 : i64} {
  func.func @_a3tgcn_kernel(%arg0: i32, %arg1: memref<4xf32, #tpu.memory_space<smem>>, %arg2: memref<2x4x32xf32, #tpu.memory_space<vmem>>, %arg3: memref<2x4x64xf32, #tpu.memory_space<vmem>>, %arg4: memref<2x32x64xf32, #tpu.memory_space<vmem>>, %arg5: memref<64x32xf32, #tpu.memory_space<vmem>>, %arg6: memref<16x16x16xf32, #tpu.memory_space<vmem>>, %arg7: memref<1x8x32xf32, #tpu.memory_space<vmem>>, %arg8: memref<1x8x64xf32, #tpu.memory_space<vmem>>) attributes {dimension_semantics = [#tpu.dimension_semantics<parallel>], iteration_bounds = array<i64: 2>, scalar_prefetch = 1 : i64, scratch_operands = 0 : i64, tpu.core_type = #tpu.core_type<tc>, window_params = [{transform_indices = @transform_0, window_bounds = array<i64: 2, 4, 32>}, {transform_indices = @transform_1, window_bounds = array<i64: 2, 4, 64>}, {pipeline_mode = #tpu.pipeline_mode<synchronous>, transform_indices = @transform_2, window_bounds = array<i64: 2, 32, 64>}, {pipeline_mode = #tpu.pipeline_mode<synchronous>, transform_indices = @transform_3, window_bounds = array<i64: 64, 32>}, {pipeline_mode = #tpu.pipeline_mode<synchronous>, transform_indices = @transform_4, window_bounds = array<i64: 16, 16, 16>}, {transform_indices = @transform_5, window_bounds = array<i64: 1, 8, 32>}, {transform_indices = @transform_6, window_bounds = array<i64: 1, 8, 64>}]} {
    %cst = arith.constant 0.000000e+00 : f32
    %0 = vector.broadcast %cst : f32 to vector<8x32xf32>
    %cst_0 = arith.constant 0.000000e+00 : f32
    %1 = vector.broadcast %cst_0 : f32 to vector<8x64xf32>
    %c0_i32 = arith.constant 0 : i32
    %c2_i32 = arith.constant 2 : i32
    %2 = arith.muli %arg0, %c2_i32 : i32
    %3 = arith.addi %2, %c0_i32 : i32
    %4 = arith.index_cast %3 : i32 to index
    %5 = memref.load %arg1[%4] : memref<4xf32, #tpu.memory_space<smem>>
    %6 = arith.index_cast %c0_i32 : i32 to index
    %c0 = arith.constant 0 : index
    %c0_1 = arith.constant 0 : index
    %7 = vector.load %arg2[%6, %c0, %c0_1] : memref<2x4x32xf32, #tpu.memory_space<vmem>>, vector<1x4x32xf32>
    %8 = vector.shape_cast %7 : vector<1x4x32xf32> to vector<4x32xf32>
    %9 = arith.index_cast %c0_i32 : i32 to index
    %c0_2 = arith.constant 0 : index
    %c0_3 = arith.constant 0 : index
    %10 = vector.load %arg3[%9, %c0_2, %c0_3] : memref<2x4x64xf32, #tpu.memory_space<vmem>>, vector<1x4x64xf32>
    %11 = vector.shape_cast %10 : vector<1x4x64xf32> to vector<4x64xf32>
    %c6 = arith.constant 6 : index
    %c0_4 = arith.constant 0 : index
    %c0_5 = arith.constant 0 : index
    %12 = vector.load %arg6[%c6, %c0_4, %c0_5] : memref<16x16x16xf32, #tpu.memory_space<vmem>>, vector<1x16x16xf32>
    %13 = vector.shape_cast %12 : vector<1x16x16xf32> to vector<16x16xf32>
    %14 = vector.extract_strided_slice %13 {offsets = [0, 0], sizes = [16, 4], strides = [1, 1]} : vector<16x16xf32> to vector<16x4xf32>
    %cst_6 = arith.constant dense<0.000000e+00> : vector<16x32xf32>
    %15 = tpu.matmul %14, %8, %cst_6 {dimension_numbers = #tpu.dot_dimension_numbers<[1], [0], [0], [1], [0, 0, 1, 1], [], []>} : vector<16x4xf32>, vector<4x32xf32>, vector<16x32xf32> -> vector<16x32xf32>
    %c8 = arith.constant 8 : index
    %c0_7 = arith.constant 0 : index
    %c0_8 = arith.constant 0 : index
    %16 = vector.load %arg6[%c8, %c0_7, %c0_8] : memref<16x16x16xf32, #tpu.memory_space<vmem>>, vector<1x16x16xf32>
    %17 = vector.shape_cast %16 : vector<1x16x16xf32> to vector<16x16xf32>
    %18 = vector.extract_strided_slice %17 {offsets = [0, 0], sizes = [16, 4], strides = [1, 1]} : vector<16x16xf32> to vector<16x4xf32>
    %cst_9 = arith.constant dense<0.000000e+00> : vector<16x32xf32>
    %19 = tpu.matmul %18, %8, %cst_9 {dimension_numbers = #tpu.dot_dimension_numbers<[1], [0], [0], [1], [0, 0, 1, 1], [], []>} : vector<16x4xf32>, vector<4x32xf32>, vector<16x32xf32> -> vector<16x32xf32>
    %c7 = arith.constant 7 : index
    %c0_10 = arith.constant 0 : index
    %c0_11 = arith.constant 0 : index
    %20 = vector.load %arg6[%c7, %c0_10, %c0_11] : memref<16x16x16xf32, #tpu.memory_space<vmem>>, vector<1x16x16xf32>
    %21 = vector.shape_cast %20 : vector<1x16x16xf32> to vector<16x16xf32>
    %22 = vector.extract_strided_slice %21 {offsets = [0, 0], sizes = [16, 4], strides = [1, 1]} : vector<16x16xf32> to vector<16x4xf32>
    %cst_12 = arith.constant dense<0.000000e+00> : vector<16x64xf32>
    %23 = tpu.matmul %22, %11, %cst_12 {dimension_numbers = #tpu.dot_dimension_numbers<[1], [0], [0], [1], [0, 0, 1, 1], [], []>} : vector<16x4xf32>, vector<4x64xf32>, vector<16x64xf32> -> vector<16x64xf32>
    %c0_13 = arith.constant 0 : index
    %c0_14 = arith.constant 0 : index
    %c0_15 = arith.constant 0 : index
    %24 = vector.load %arg4[%c0_13, %c0_14, %c0_15] : memref<2x32x64xf32, #tpu.memory_space<vmem>>, vector<1x32x64xf32>
    %25 = vector.shape_cast %24 : vector<1x32x64xf32> to vector<32x64xf32>
    %cst_16 = arith.constant dense<0.000000e+00> : vector<16x64xf32>
    %26 = tpu.matmul %15, %25, %cst_16 {dimension_numbers = #tpu.dot_dimension_numbers<[1], [0], [0], [1], [0, 0, 1, 1], [], []>} : vector<16x32xf32>, vector<32x64xf32>, vector<16x64xf32> -> vector<16x64xf32>
    %c1 = arith.constant 1 : index
    %c0_17 = arith.constant 0 : index
    %c0_18 = arith.constant 0 : index
    %27 = vector.load %arg4[%c1, %c0_17, %c0_18] : memref<2x32x64xf32, #tpu.memory_space<vmem>>, vector<1x32x64xf32>
    %28 = vector.shape_cast %27 : vector<1x32x64xf32> to vector<32x64xf32>
    %cst_19 = arith.constant dense<0.000000e+00> : vector<16x64xf32>
    %29 = tpu.matmul %19, %28, %cst_19 {dimension_numbers = #tpu.dot_dimension_numbers<[1], [0], [0], [1], [0, 0, 1, 1], [], []>} : vector<16x32xf32>, vector<32x64xf32>, vector<16x64xf32> -> vector<16x64xf32>
    %30 = arith.addf %26, %29 : vector<16x64xf32>
    %31 = arith.addf %30, %23 : vector<16x64xf32>
    %c9 = arith.constant 9 : index
    %c0_20 = arith.constant 0 : index
    %c0_21 = arith.constant 0 : index
    %32 = vector.load %arg6[%c9, %c0_20, %c0_21] : memref<16x16x16xf32, #tpu.memory_space<vmem>>, vector<1x16x16xf32>
    %33 = vector.shape_cast %32 : vector<1x16x16xf32> to vector<16x16xf32>
    %34 = vector.extract_strided_slice %33 {offsets = [0, 0], sizes = [16, 1], strides = [1, 1]} : vector<16x16xf32> to vector<16x1xf32>
    %35 = vector.broadcast %34 : vector<16x1xf32> to vector<16x64xf32>
    %36 = arith.addf %31, %35 : vector<16x64xf32>
    %cst_22 = arith.constant 0.000000e+00 : f32
    %37 = vector.broadcast %cst_22 : f32 to vector<16x64xf32>
    %38 = arith.maximumf %36, %37 : vector<16x64xf32>
    %c0_23 = arith.constant 0 : index
    %c0_24 = arith.constant 0 : index
    %c0_25 = arith.constant 0 : index
    %39 = vector.load %arg6[%c0_23, %c0_24, %c0_25] : memref<16x16x16xf32, #tpu.memory_space<vmem>>, vector<1x16x16xf32>
    %40 = vector.shape_cast %39 : vector<1x16x16xf32> to vector<16x16xf32>
    %cst_26 = arith.constant dense<0.000000e+00> : vector<16x64xf32>
    %41 = tpu.matmul %40, %38, %cst_26 {dimension_numbers = #tpu.dot_dimension_numbers<[1], [0], [0], [1], [0, 0, 1, 1], [], []>} : vector<16x16xf32>, vector<16x64xf32>, vector<16x64xf32> -> vector<16x64xf32>
    %c10 = arith.constant 10 : index
    %c0_27 = arith.constant 0 : index
    %c0_28 = arith.constant 0 : index
    %42 = vector.load %arg6[%c10, %c0_27, %c0_28] : memref<16x16x16xf32, #tpu.memory_space<vmem>>, vector<1x16x16xf32>
    %43 = vector.shape_cast %42 : vector<1x16x16xf32> to vector<16x16xf32>
    %44 = vector.extract_strided_slice %43 {offsets = [0, 0], sizes = [16, 1], strides = [1, 1]} : vector<16x16xf32> to vector<16x1xf32>
    %45 = vector.broadcast %44 : vector<16x1xf32> to vector<16x64xf32>
    %46 = arith.addf %41, %45 : vector<16x64xf32>
    %c1_29 = arith.constant 1 : index
    %c0_30 = arith.constant 0 : index
    %c0_31 = arith.constant 0 : index
    %47 = vector.load %arg6[%c1_29, %c0_30, %c0_31] : memref<16x16x16xf32, #tpu.memory_space<vmem>>, vector<1x16x16xf32>
    %48 = vector.shape_cast %47 : vector<1x16x16xf32> to vector<16x16xf32>
    %cst_32 = arith.constant dense<0.000000e+00> : vector<16x64xf32>
    %49 = tpu.matmul %48, %38, %cst_32 {dimension_numbers = #tpu.dot_dimension_numbers<[1], [0], [0], [1], [0, 0, 1, 1], [], []>} : vector<16x16xf32>, vector<16x64xf32>, vector<16x64xf32> -> vector<16x64xf32>
    %c11 = arith.constant 11 : index
    %c0_33 = arith.constant 0 : index
    %c0_34 = arith.constant 0 : index
    %50 = vector.load %arg6[%c11, %c0_33, %c0_34] : memref<16x16x16xf32, #tpu.memory_space<vmem>>, vector<1x16x16xf32>
    %51 = vector.shape_cast %50 : vector<1x16x16xf32> to vector<16x16xf32>
    %52 = vector.extract_strided_slice %51 {offsets = [0, 0], sizes = [16, 1], strides = [1, 1]} : vector<16x16xf32> to vector<16x1xf32>
    %53 = vector.broadcast %52 : vector<16x1xf32> to vector<16x64xf32>
    %54 = arith.addf %49, %53 : vector<16x64xf32>
    %c0_35 = arith.constant 0 : index
    %c0_36 = arith.constant 0 : index
    %55 = vector.load %arg5[%c0_35, %c0_36] : memref<64x32xf32, #tpu.memory_space<vmem>>, vector<64x32xf32>
    %cst_37 = arith.constant dense<0.000000e+00> : vector<16x32xf32>
    %56 = tpu.matmul %46, %55, %cst_37 {dimension_numbers = #tpu.dot_dimension_numbers<[1], [0], [0], [1], [0, 0, 1, 1], [], []>} : vector<16x64xf32>, vector<64x32xf32>, vector<16x32xf32> -> vector<16x32xf32>
    %c2 = arith.constant 2 : index
    %c0_38 = arith.constant 0 : index
    %c0_39 = arith.constant 0 : index
    %57 = vector.load %arg6[%c2, %c0_38, %c0_39] : memref<16x16x16xf32, #tpu.memory_space<vmem>>, vector<1x16x16xf32>
    %58 = vector.shape_cast %57 : vector<1x16x16xf32> to vector<16x16xf32>
    %cst_40 = arith.constant dense<0.000000e+00> : vector<16x32xf32>
    %59 = tpu.matmul %58, %56, %cst_40 {dimension_numbers = #tpu.dot_dimension_numbers<[1], [0], [0], [1], [0, 0, 1, 1], [], []>} : vector<16x16xf32>, vector<16x32xf32>, vector<16x32xf32> -> vector<16x32xf32>
    %c12 = arith.constant 12 : index
    %c0_41 = arith.constant 0 : index
    %c0_42 = arith.constant 0 : index
    %60 = vector.load %arg6[%c12, %c0_41, %c0_42] : memref<16x16x16xf32, #tpu.memory_space<vmem>>, vector<1x16x16xf32>
    %61 = vector.shape_cast %60 : vector<1x16x16xf32> to vector<16x16xf32>
    %62 = vector.extract_strided_slice %61 {offsets = [0, 0], sizes = [16, 1], strides = [1, 1]} : vector<16x16xf32> to vector<16x1xf32>
    %63 = vector.broadcast %62 : vector<16x1xf32> to vector<16x32xf32>
    %64 = arith.addf %59, %63 : vector<16x32xf32>
    %cst_43 = arith.constant 0.000000e+00 : f32
    %65 = vector.broadcast %cst_43 : f32 to vector<16x32xf32>
    %66 = arith.maximumf %64, %65 : vector<16x32xf32>
    %c3 = arith.constant 3 : index
    %c0_44 = arith.constant 0 : index
    %c0_45 = arith.constant 0 : index
    %67 = vector.load %arg6[%c3, %c0_44, %c0_45] : memref<16x16x16xf32, #tpu.memory_space<vmem>>, vector<1x16x16xf32>
    %68 = vector.shape_cast %67 : vector<1x16x16xf32> to vector<16x16xf32>
    %cst_46 = arith.constant dense<0.000000e+00> : vector<16x32xf32>
    %69 = tpu.matmul %68, %66, %cst_46 {dimension_numbers = #tpu.dot_dimension_numbers<[1], [0], [0], [1], [0, 0, 1, 1], [], []>} : vector<16x16xf32>, vector<16x32xf32>, vector<16x32xf32> -> vector<16x32xf32>
    %c13 = arith.constant 13 : index
    %c0_47 = arith.constant 0 : index
    %c0_48 = arith.constant 0 : index
    %70 = vector.load %arg6[%c13, %c0_47, %c0_48] : memref<16x16x16xf32, #tpu.memory_space<vmem>>, vector<1x16x16xf32>
    %71 = vector.shape_cast %70 : vector<1x16x16xf32> to vector<16x16xf32>
    %72 = vector.extract_strided_slice %71 {offsets = [0, 0], sizes = [16, 1], strides = [1, 1]} : vector<16x16xf32> to vector<16x1xf32>
    %73 = vector.broadcast %72 : vector<16x1xf32> to vector<16x32xf32>
    %74 = arith.addf %69, %73 : vector<16x32xf32>
    %c4 = arith.constant 4 : index
    %c0_49 = arith.constant 0 : index
    %c0_50 = arith.constant 0 : index
    %75 = vector.load %arg6[%c4, %c0_49, %c0_50] : memref<16x16x16xf32, #tpu.memory_space<vmem>>, vector<1x16x16xf32>
    %76 = vector.shape_cast %75 : vector<1x16x16xf32> to vector<16x16xf32>
    %cst_51 = arith.constant dense<0.000000e+00> : vector<16x32xf32>
    %77 = tpu.matmul %76, %74, %cst_51 {dimension_numbers = #tpu.dot_dimension_numbers<[1], [0], [0], [1], [0, 0, 1, 1], [], []>} : vector<16x16xf32>, vector<16x32xf32>, vector<16x32xf32> -> vector<16x32xf32>
    %c14 = arith.constant 14 : index
    %c0_52 = arith.constant 0 : index
    %c0_53 = arith.constant 0 : index
    %78 = vector.load %arg6[%c14, %c0_52, %c0_53] : memref<16x16x16xf32, #tpu.memory_space<vmem>>, vector<1x16x16xf32>
    %79 = vector.shape_cast %78 : vector<1x16x16xf32> to vector<16x16xf32>
    %80 = vector.extract_strided_slice %79 {offsets = [0, 0], sizes = [16, 1], strides = [1, 1]} : vector<16x16xf32> to vector<16x1xf32>
    %81 = vector.broadcast %80 : vector<16x1xf32> to vector<16x32xf32>
    %82 = arith.addf %77, %81 : vector<16x32xf32>
    %c5 = arith.constant 5 : index
    %c0_54 = arith.constant 0 : index
    %c0_55 = arith.constant 0 : index
    %83 = vector.load %arg6[%c5, %c0_54, %c0_55] : memref<16x16x16xf32, #tpu.memory_space<vmem>>, vector<1x16x16xf32>
    %84 = vector.shape_cast %83 : vector<1x16x16xf32> to vector<16x16xf32>
    %cst_56 = arith.constant dense<0.000000e+00> : vector<16x64xf32>
    %85 = tpu.matmul %84, %54, %cst_56 {dimension_numbers = #tpu.dot_dimension_numbers<[1], [0], [0], [1], [0, 0, 1, 1], [], []>} : vector<16x16xf32>, vector<16x64xf32>, vector<16x64xf32> -> vector<16x64xf32>
    %c15 = arith.constant 15 : index
    %c0_57 = arith.constant 0 : index
    %c0_58 = arith.constant 0 : index
    %86 = vector.load %arg6[%c15, %c0_57, %c0_58] : memref<16x16x16xf32, #tpu.memory_space<vmem>>, vector<1x16x16xf32>
    %87 = vector.shape_cast %86 : vector<1x16x16xf32> to vector<16x16xf32>
    %88 = vector.extract_strided_slice %87 {offsets = [0, 0], sizes = [16, 1], strides = [1, 1]} : vector<16x16xf32> to vector<16x1xf32>
    %89 = vector.broadcast %88 : vector<16x1xf32> to vector<16x64xf32>
    %90 = arith.addf %85, %89 : vector<16x64xf32>
    %91 = vector.extract_strided_slice %82 {offsets = [0, 0], sizes = [8, 32], strides = [1, 1]} : vector<16x32xf32> to vector<8x32xf32>
    %92 = arith.negf %91 : vector<8x32xf32>
    %93 = math.exp %92 : vector<8x32xf32>
    %cst_59 = arith.constant 1.000000e+00 : f32
    %94 = vector.broadcast %cst_59 : f32 to vector<8x32xf32>
    %95 = arith.addf %94, %93 : vector<8x32xf32>
    %96 = arith.divf %94, %95 : vector<8x32xf32>
    %cst_60 = arith.constant 1.000000e+00 : f32
    %97 = vector.broadcast %cst_60 : f32 to vector<8x32xf32>
    %98 = arith.subf %97, %96 : vector<8x32xf32>
    %99 = vector.extract_strided_slice %82 {offsets = [8, 0], sizes = [8, 32], strides = [1, 1]} : vector<16x32xf32> to vector<8x32xf32>
    %100 = math.tanh %99 : vector<8x32xf32>
    %101 = arith.mulf %98, %100 : vector<8x32xf32>
    %102 = vector.extract_strided_slice %90 {offsets = [0, 0], sizes = [8, 64], strides = [1, 1]} : vector<16x64xf32> to vector<8x64xf32>
    %103 = arith.negf %102 : vector<8x64xf32>
    %104 = math.exp %103 : vector<8x64xf32>
    %cst_61 = arith.constant 1.000000e+00 : f32
    %105 = vector.broadcast %cst_61 : f32 to vector<8x64xf32>
    %106 = arith.addf %105, %104 : vector<8x64xf32>
    %107 = arith.divf %105, %106 : vector<8x64xf32>
    %cst_62 = arith.constant 1.000000e+00 : f32
    %108 = vector.broadcast %cst_62 : f32 to vector<8x64xf32>
    %109 = arith.subf %108, %107 : vector<8x64xf32>
    %110 = vector.extract_strided_slice %90 {offsets = [8, 0], sizes = [8, 64], strides = [1, 1]} : vector<16x64xf32> to vector<8x64xf32>
    %111 = math.tanh %110 : vector<8x64xf32>
    %112 = arith.mulf %109, %111 : vector<8x64xf32>
    %113 = vector.broadcast %5 : f32 to vector<8x32xf32>
    %114 = arith.mulf %113, %101 : vector<8x32xf32>
    %115 = arith.addf %0, %114 : vector<8x32xf32>
    %116 = vector.broadcast %5 : f32 to vector<8x64xf32>
    %117 = arith.mulf %116, %112 : vector<8x64xf32>
    %118 = arith.addf %1, %117 : vector<8x64xf32>
    %c1_i32 = arith.constant 1 : i32
    %c2_i32_63 = arith.constant 2 : i32
    %119 = arith.muli %arg0, %c2_i32_63 : i32
    %120 = arith.addi %119, %c1_i32 : i32
    %121 = arith.index_cast %120 : i32 to index
    %122 = memref.load %arg1[%121] : memref<4xf32, #tpu.memory_space<smem>>
    %123 = arith.index_cast %c1_i32 : i32 to index
    %c0_64 = arith.constant 0 : index
    %c0_65 = arith.constant 0 : index
    %124 = vector.load %arg2[%123, %c0_64, %c0_65] : memref<2x4x32xf32, #tpu.memory_space<vmem>>, vector<1x4x32xf32>
    %125 = vector.shape_cast %124 : vector<1x4x32xf32> to vector<4x32xf32>
    %126 = arith.index_cast %c1_i32 : i32 to index
    %c0_66 = arith.constant 0 : index
    %c0_67 = arith.constant 0 : index
    %127 = vector.load %arg3[%126, %c0_66, %c0_67] : memref<2x4x64xf32, #tpu.memory_space<vmem>>, vector<1x4x64xf32>
    %128 = vector.shape_cast %127 : vector<1x4x64xf32> to vector<4x64xf32>
    %c6_68 = arith.constant 6 : index
    %c0_69 = arith.constant 0 : index
    %c0_70 = arith.constant 0 : index
    %129 = vector.load %arg6[%c6_68, %c0_69, %c0_70] : memref<16x16x16xf32, #tpu.memory_space<vmem>>, vector<1x16x16xf32>
    %130 = vector.shape_cast %129 : vector<1x16x16xf32> to vector<16x16xf32>
    %131 = vector.extract_strided_slice %130 {offsets = [0, 0], sizes = [16, 4], strides = [1, 1]} : vector<16x16xf32> to vector<16x4xf32>
    %cst_71 = arith.constant dense<0.000000e+00> : vector<16x32xf32>
    %132 = tpu.matmul %131, %125, %cst_71 {dimension_numbers = #tpu.dot_dimension_numbers<[1], [0], [0], [1], [0, 0, 1, 1], [], []>} : vector<16x4xf32>, vector<4x32xf32>, vector<16x32xf32> -> vector<16x32xf32>
    %c8_72 = arith.constant 8 : index
    %c0_73 = arith.constant 0 : index
    %c0_74 = arith.constant 0 : index
    %133 = vector.load %arg6[%c8_72, %c0_73, %c0_74] : memref<16x16x16xf32, #tpu.memory_space<vmem>>, vector<1x16x16xf32>
    %134 = vector.shape_cast %133 : vector<1x16x16xf32> to vector<16x16xf32>
    %135 = vector.extract_strided_slice %134 {offsets = [0, 0], sizes = [16, 4], strides = [1, 1]} : vector<16x16xf32> to vector<16x4xf32>
    %cst_75 = arith.constant dense<0.000000e+00> : vector<16x32xf32>
    %136 = tpu.matmul %135, %125, %cst_75 {dimension_numbers = #tpu.dot_dimension_numbers<[1], [0], [0], [1], [0, 0, 1, 1], [], []>} : vector<16x4xf32>, vector<4x32xf32>, vector<16x32xf32> -> vector<16x32xf32>
    %c7_76 = arith.constant 7 : index
    %c0_77 = arith.constant 0 : index
    %c0_78 = arith.constant 0 : index
    %137 = vector.load %arg6[%c7_76, %c0_77, %c0_78] : memref<16x16x16xf32, #tpu.memory_space<vmem>>, vector<1x16x16xf32>
    %138 = vector.shape_cast %137 : vector<1x16x16xf32> to vector<16x16xf32>
    %139 = vector.extract_strided_slice %138 {offsets = [0, 0], sizes = [16, 4], strides = [1, 1]} : vector<16x16xf32> to vector<16x4xf32>
    %cst_79 = arith.constant dense<0.000000e+00> : vector<16x64xf32>
    %140 = tpu.matmul %139, %128, %cst_79 {dimension_numbers = #tpu.dot_dimension_numbers<[1], [0], [0], [1], [0, 0, 1, 1], [], []>} : vector<16x4xf32>, vector<4x64xf32>, vector<16x64xf32> -> vector<16x64xf32>
    %c0_80 = arith.constant 0 : index
    %c0_81 = arith.constant 0 : index
    %c0_82 = arith.constant 0 : index
    %141 = vector.load %arg4[%c0_80, %c0_81, %c0_82] : memref<2x32x64xf32, #tpu.memory_space<vmem>>, vector<1x32x64xf32>
    %142 = vector.shape_cast %141 : vector<1x32x64xf32> to vector<32x64xf32>
    %cst_83 = arith.constant dense<0.000000e+00> : vector<16x64xf32>
    %143 = tpu.matmul %132, %142, %cst_83 {dimension_numbers = #tpu.dot_dimension_numbers<[1], [0], [0], [1], [0, 0, 1, 1], [], []>} : vector<16x32xf32>, vector<32x64xf32>, vector<16x64xf32> -> vector<16x64xf32>
    %c1_84 = arith.constant 1 : index
    %c0_85 = arith.constant 0 : index
    %c0_86 = arith.constant 0 : index
    %144 = vector.load %arg4[%c1_84, %c0_85, %c0_86] : memref<2x32x64xf32, #tpu.memory_space<vmem>>, vector<1x32x64xf32>
    %145 = vector.shape_cast %144 : vector<1x32x64xf32> to vector<32x64xf32>
    %cst_87 = arith.constant dense<0.000000e+00> : vector<16x64xf32>
    %146 = tpu.matmul %136, %145, %cst_87 {dimension_numbers = #tpu.dot_dimension_numbers<[1], [0], [0], [1], [0, 0, 1, 1], [], []>} : vector<16x32xf32>, vector<32x64xf32>, vector<16x64xf32> -> vector<16x64xf32>
    %147 = arith.addf %143, %146 : vector<16x64xf32>
    %148 = arith.addf %147, %140 : vector<16x64xf32>
    %c9_88 = arith.constant 9 : index
    %c0_89 = arith.constant 0 : index
    %c0_90 = arith.constant 0 : index
    %149 = vector.load %arg6[%c9_88, %c0_89, %c0_90] : memref<16x16x16xf32, #tpu.memory_space<vmem>>, vector<1x16x16xf32>
    %150 = vector.shape_cast %149 : vector<1x16x16xf32> to vector<16x16xf32>
    %151 = vector.extract_strided_slice %150 {offsets = [0, 0], sizes = [16, 1], strides = [1, 1]} : vector<16x16xf32> to vector<16x1xf32>
    %152 = vector.broadcast %151 : vector<16x1xf32> to vector<16x64xf32>
    %153 = arith.addf %148, %152 : vector<16x64xf32>
    %cst_91 = arith.constant 0.000000e+00 : f32
    %154 = vector.broadcast %cst_91 : f32 to vector<16x64xf32>
    %155 = arith.maximumf %153, %154 : vector<16x64xf32>
    %c0_92 = arith.constant 0 : index
    %c0_93 = arith.constant 0 : index
    %c0_94 = arith.constant 0 : index
    %156 = vector.load %arg6[%c0_92, %c0_93, %c0_94] : memref<16x16x16xf32, #tpu.memory_space<vmem>>, vector<1x16x16xf32>
    %157 = vector.shape_cast %156 : vector<1x16x16xf32> to vector<16x16xf32>
    %cst_95 = arith.constant dense<0.000000e+00> : vector<16x64xf32>
    %158 = tpu.matmul %157, %155, %cst_95 {dimension_numbers = #tpu.dot_dimension_numbers<[1], [0], [0], [1], [0, 0, 1, 1], [], []>} : vector<16x16xf32>, vector<16x64xf32>, vector<16x64xf32> -> vector<16x64xf32>
    %c10_96 = arith.constant 10 : index
    %c0_97 = arith.constant 0 : index
    %c0_98 = arith.constant 0 : index
    %159 = vector.load %arg6[%c10_96, %c0_97, %c0_98] : memref<16x16x16xf32, #tpu.memory_space<vmem>>, vector<1x16x16xf32>
    %160 = vector.shape_cast %159 : vector<1x16x16xf32> to vector<16x16xf32>
    %161 = vector.extract_strided_slice %160 {offsets = [0, 0], sizes = [16, 1], strides = [1, 1]} : vector<16x16xf32> to vector<16x1xf32>
    %162 = vector.broadcast %161 : vector<16x1xf32> to vector<16x64xf32>
    %163 = arith.addf %158, %162 : vector<16x64xf32>
    %c1_99 = arith.constant 1 : index
    %c0_100 = arith.constant 0 : index
    %c0_101 = arith.constant 0 : index
    %164 = vector.load %arg6[%c1_99, %c0_100, %c0_101] : memref<16x16x16xf32, #tpu.memory_space<vmem>>, vector<1x16x16xf32>
    %165 = vector.shape_cast %164 : vector<1x16x16xf32> to vector<16x16xf32>
    %cst_102 = arith.constant dense<0.000000e+00> : vector<16x64xf32>
    %166 = tpu.matmul %165, %155, %cst_102 {dimension_numbers = #tpu.dot_dimension_numbers<[1], [0], [0], [1], [0, 0, 1, 1], [], []>} : vector<16x16xf32>, vector<16x64xf32>, vector<16x64xf32> -> vector<16x64xf32>
    %c11_103 = arith.constant 11 : index
    %c0_104 = arith.constant 0 : index
    %c0_105 = arith.constant 0 : index
    %167 = vector.load %arg6[%c11_103, %c0_104, %c0_105] : memref<16x16x16xf32, #tpu.memory_space<vmem>>, vector<1x16x16xf32>
    %168 = vector.shape_cast %167 : vector<1x16x16xf32> to vector<16x16xf32>
    %169 = vector.extract_strided_slice %168 {offsets = [0, 0], sizes = [16, 1], strides = [1, 1]} : vector<16x16xf32> to vector<16x1xf32>
    %170 = vector.broadcast %169 : vector<16x1xf32> to vector<16x64xf32>
    %171 = arith.addf %166, %170 : vector<16x64xf32>
    %c0_106 = arith.constant 0 : index
    %c0_107 = arith.constant 0 : index
    %172 = vector.load %arg5[%c0_106, %c0_107] : memref<64x32xf32, #tpu.memory_space<vmem>>, vector<64x32xf32>
    %cst_108 = arith.constant dense<0.000000e+00> : vector<16x32xf32>
    %173 = tpu.matmul %163, %172, %cst_108 {dimension_numbers = #tpu.dot_dimension_numbers<[1], [0], [0], [1], [0, 0, 1, 1], [], []>} : vector<16x64xf32>, vector<64x32xf32>, vector<16x32xf32> -> vector<16x32xf32>
    %c2_109 = arith.constant 2 : index
    %c0_110 = arith.constant 0 : index
    %c0_111 = arith.constant 0 : index
    %174 = vector.load %arg6[%c2_109, %c0_110, %c0_111] : memref<16x16x16xf32, #tpu.memory_space<vmem>>, vector<1x16x16xf32>
    %175 = vector.shape_cast %174 : vector<1x16x16xf32> to vector<16x16xf32>
    %cst_112 = arith.constant dense<0.000000e+00> : vector<16x32xf32>
    %176 = tpu.matmul %175, %173, %cst_112 {dimension_numbers = #tpu.dot_dimension_numbers<[1], [0], [0], [1], [0, 0, 1, 1], [], []>} : vector<16x16xf32>, vector<16x32xf32>, vector<16x32xf32> -> vector<16x32xf32>
    %c12_113 = arith.constant 12 : index
    %c0_114 = arith.constant 0 : index
    %c0_115 = arith.constant 0 : index
    %177 = vector.load %arg6[%c12_113, %c0_114, %c0_115] : memref<16x16x16xf32, #tpu.memory_space<vmem>>, vector<1x16x16xf32>
    %178 = vector.shape_cast %177 : vector<1x16x16xf32> to vector<16x16xf32>
    %179 = vector.extract_strided_slice %178 {offsets = [0, 0], sizes = [16, 1], strides = [1, 1]} : vector<16x16xf32> to vector<16x1xf32>
    %180 = vector.broadcast %179 : vector<16x1xf32> to vector<16x32xf32>
    %181 = arith.addf %176, %180 : vector<16x32xf32>
    %cst_116 = arith.constant 0.000000e+00 : f32
    %182 = vector.broadcast %cst_116 : f32 to vector<16x32xf32>
    %183 = arith.maximumf %181, %182 : vector<16x32xf32>
    %c3_117 = arith.constant 3 : index
    %c0_118 = arith.constant 0 : index
    %c0_119 = arith.constant 0 : index
    %184 = vector.load %arg6[%c3_117, %c0_118, %c0_119] : memref<16x16x16xf32, #tpu.memory_space<vmem>>, vector<1x16x16xf32>
    %185 = vector.shape_cast %184 : vector<1x16x16xf32> to vector<16x16xf32>
    %cst_120 = arith.constant dense<0.000000e+00> : vector<16x32xf32>
    %186 = tpu.matmul %185, %183, %cst_120 {dimension_numbers = #tpu.dot_dimension_numbers<[1], [0], [0], [1], [0, 0, 1, 1], [], []>} : vector<16x16xf32>, vector<16x32xf32>, vector<16x32xf32> -> vector<16x32xf32>
    %c13_121 = arith.constant 13 : index
    %c0_122 = arith.constant 0 : index
    %c0_123 = arith.constant 0 : index
    %187 = vector.load %arg6[%c13_121, %c0_122, %c0_123] : memref<16x16x16xf32, #tpu.memory_space<vmem>>, vector<1x16x16xf32>
    %188 = vector.shape_cast %187 : vector<1x16x16xf32> to vector<16x16xf32>
    %189 = vector.extract_strided_slice %188 {offsets = [0, 0], sizes = [16, 1], strides = [1, 1]} : vector<16x16xf32> to vector<16x1xf32>
    %190 = vector.broadcast %189 : vector<16x1xf32> to vector<16x32xf32>
    %191 = arith.addf %186, %190 : vector<16x32xf32>
    %c4_124 = arith.constant 4 : index
    %c0_125 = arith.constant 0 : index
    %c0_126 = arith.constant 0 : index
    %192 = vector.load %arg6[%c4_124, %c0_125, %c0_126] : memref<16x16x16xf32, #tpu.memory_space<vmem>>, vector<1x16x16xf32>
    %193 = vector.shape_cast %192 : vector<1x16x16xf32> to vector<16x16xf32>
    %cst_127 = arith.constant dense<0.000000e+00> : vector<16x32xf32>
    %194 = tpu.matmul %193, %191, %cst_127 {dimension_numbers = #tpu.dot_dimension_numbers<[1], [0], [0], [1], [0, 0, 1, 1], [], []>} : vector<16x16xf32>, vector<16x32xf32>, vector<16x32xf32> -> vector<16x32xf32>
    %c14_128 = arith.constant 14 : index
    %c0_129 = arith.constant 0 : index
    %c0_130 = arith.constant 0 : index
    %195 = vector.load %arg6[%c14_128, %c0_129, %c0_130] : memref<16x16x16xf32, #tpu.memory_space<vmem>>, vector<1x16x16xf32>
    %196 = vector.shape_cast %195 : vector<1x16x16xf32> to vector<16x16xf32>
    %197 = vector.extract_strided_slice %196 {offsets = [0, 0], sizes = [16, 1], strides = [1, 1]} : vector<16x16xf32> to vector<16x1xf32>
    %198 = vector.broadcast %197 : vector<16x1xf32> to vector<16x32xf32>
    %199 = arith.addf %194, %198 : vector<16x32xf32>
    %c5_131 = arith.constant 5 : index
    %c0_132 = arith.constant 0 : index
    %c0_133 = arith.constant 0 : index
    %200 = vector.load %arg6[%c5_131, %c0_132, %c0_133] : memref<16x16x16xf32, #tpu.memory_space<vmem>>, vector<1x16x16xf32>
    %201 = vector.shape_cast %200 : vector<1x16x16xf32> to vector<16x16xf32>
    %cst_134 = arith.constant dense<0.000000e+00> : vector<16x64xf32>
    %202 = tpu.matmul %201, %171, %cst_134 {dimension_numbers = #tpu.dot_dimension_numbers<[1], [0], [0], [1], [0, 0, 1, 1], [], []>} : vector<16x16xf32>, vector<16x64xf32>, vector<16x64xf32> -> vector<16x64xf32>
    %c15_135 = arith.constant 15 : index
    %c0_136 = arith.constant 0 : index
    %c0_137 = arith.constant 0 : index
    %203 = vector.load %arg6[%c15_135, %c0_136, %c0_137] : memref<16x16x16xf32, #tpu.memory_space<vmem>>, vector<1x16x16xf32>
    %204 = vector.shape_cast %203 : vector<1x16x16xf32> to vector<16x16xf32>
    %205 = vector.extract_strided_slice %204 {offsets = [0, 0], sizes = [16, 1], strides = [1, 1]} : vector<16x16xf32> to vector<16x1xf32>
    %206 = vector.broadcast %205 : vector<16x1xf32> to vector<16x64xf32>
    %207 = arith.addf %202, %206 : vector<16x64xf32>
    %208 = vector.extract_strided_slice %199 {offsets = [0, 0], sizes = [8, 32], strides = [1, 1]} : vector<16x32xf32> to vector<8x32xf32>
    %209 = arith.negf %208 : vector<8x32xf32>
    %210 = math.exp %209 : vector<8x32xf32>
    %cst_138 = arith.constant 1.000000e+00 : f32
    %211 = vector.broadcast %cst_138 : f32 to vector<8x32xf32>
    %212 = arith.addf %211, %210 : vector<8x32xf32>
    %213 = arith.divf %211, %212 : vector<8x32xf32>
    %cst_139 = arith.constant 1.000000e+00 : f32
    %214 = vector.broadcast %cst_139 : f32 to vector<8x32xf32>
    %215 = arith.subf %214, %213 : vector<8x32xf32>
    %216 = vector.extract_strided_slice %199 {offsets = [8, 0], sizes = [8, 32], strides = [1, 1]} : vector<16x32xf32> to vector<8x32xf32>
    %217 = math.tanh %216 : vector<8x32xf32>
    %218 = arith.mulf %215, %217 : vector<8x32xf32>
    %219 = vector.extract_strided_slice %207 {offsets = [0, 0], sizes = [8, 64], strides = [1, 1]} : vector<16x64xf32> to vector<8x64xf32>
    %220 = arith.negf %219 : vector<8x64xf32>
    %221 = math.exp %220 : vector<8x64xf32>
    %cst_140 = arith.constant 1.000000e+00 : f32
    %222 = vector.broadcast %cst_140 : f32 to vector<8x64xf32>
    %223 = arith.addf %222, %221 : vector<8x64xf32>
    %224 = arith.divf %222, %223 : vector<8x64xf32>
    %cst_141 = arith.constant 1.000000e+00 : f32
    %225 = vector.broadcast %cst_141 : f32 to vector<8x64xf32>
    %226 = arith.subf %225, %224 : vector<8x64xf32>
    %227 = vector.extract_strided_slice %207 {offsets = [8, 0], sizes = [8, 64], strides = [1, 1]} : vector<16x64xf32> to vector<8x64xf32>
    %228 = math.tanh %227 : vector<8x64xf32>
    %229 = arith.mulf %226, %228 : vector<8x64xf32>
    %230 = vector.broadcast %122 : f32 to vector<8x32xf32>
    %231 = arith.mulf %230, %218 : vector<8x32xf32>
    %232 = arith.addf %115, %231 : vector<8x32xf32>
    %233 = vector.broadcast %122 : f32 to vector<8x64xf32>
    %234 = arith.mulf %233, %229 : vector<8x64xf32>
    %235 = arith.addf %118, %234 : vector<8x64xf32>
    %c2_i32_142 = arith.constant 2 : i32
    %c0_143 = arith.constant 0 : index
    %c0_144 = arith.constant 0 : index
    %c0_145 = arith.constant 0 : index
    %236 = vector.load %arg7[%c0_143, %c0_144, %c0_145] : memref<1x8x32xf32, #tpu.memory_space<vmem>>, vector<1x8x32xf32>
    %237 = vector.shape_cast %236 : vector<1x8x32xf32> to vector<8x32xf32>
    %238 = vector.shape_cast %232 : vector<8x32xf32> to vector<1x8x32xf32>
    tpu.vector_store %arg7[%c0_143, %c0_144, %c0_145], %238 {strides = array<i32>} : memref<1x8x32xf32, #tpu.memory_space<vmem>>, vector<1x8x32xf32>,
    %c0_146 = arith.constant 0 : index
    %c0_147 = arith.constant 0 : index
    %c0_148 = arith.constant 0 : index
    %239 = vector.load %arg8[%c0_146, %c0_147, %c0_148] : memref<1x8x64xf32, #tpu.memory_space<vmem>>, vector<1x8x64xf32>
    %240 = vector.shape_cast %239 : vector<1x8x64xf32> to vector<8x64xf32>
    %241 = vector.shape_cast %235 : vector<8x64xf32> to vector<1x8x64xf32>
    tpu.vector_store %arg8[%c0_146, %c0_147, %c0_148], %241 {strides = array<i32>} : memref<1x8x64xf32, #tpu.memory_space<vmem>>, vector<1x8x64xf32>,
    return
  }
  func.func @transform_0(%arg0: i32, %arg1: memref<4xf32, #tpu.memory_space<smem>>) -> (i32, i32, i32) {
    %c0_i32 = arith.constant 0 : i32
    %c0_i32_0 = arith.constant 0 : i32
    %c0_i32_1 = arith.constant 0 : i32
    return %arg0, %c0_i32, %c0_i32_0 : i32, i32, i32
  }
  func.func @transform_1(%arg0: i32, %arg1: memref<4xf32, #tpu.memory_space<smem>>) -> (i32, i32, i32) {
    %c0_i32 = arith.constant 0 : i32
    %c0_i32_0 = arith.constant 0 : i32
    %c0_i32_1 = arith.constant 0 : i32
    return %arg0, %c0_i32, %c0_i32_0 : i32, i32, i32
  }
  func.func @transform_2(%arg0: i32, %arg1: memref<4xf32, #tpu.memory_space<smem>>) -> (i32, i32, i32) {
    %c0_i32 = arith.constant 0 : i32
    %c0_i32_0 = arith.constant 0 : i32
    %c0_i32_1 = arith.constant 0 : i32
    %c0_i32_2 = arith.constant 0 : i32
    return %c0_i32, %c0_i32_0, %c0_i32_1 : i32, i32, i32
  }
  func.func @transform_3(%arg0: i32, %arg1: memref<4xf32, #tpu.memory_space<smem>>) -> (i32, i32) {
    %c0_i32 = arith.constant 0 : i32
    %c0_i32_0 = arith.constant 0 : i32
    %c0_i32_1 = arith.constant 0 : i32
    return %c0_i32, %c0_i32_0 : i32, i32
  }
  func.func @transform_4(%arg0: i32, %arg1: memref<4xf32, #tpu.memory_space<smem>>) -> (i32, i32, i32) {
    %c0_i32 = arith.constant 0 : i32
    %c0_i32_0 = arith.constant 0 : i32
    %c0_i32_1 = arith.constant 0 : i32
    %c0_i32_2 = arith.constant 0 : i32
    return %c0_i32, %c0_i32_0, %c0_i32_1 : i32, i32, i32
  }
  func.func @transform_5(%arg0: i32, %arg1: memref<4xf32, #tpu.memory_space<smem>>) -> (i32, i32, i32) {
    %c0_i32 = arith.constant 0 : i32
    %c0_i32_0 = arith.constant 0 : i32
    %c0_i32_1 = arith.constant 0 : i32
    return %arg0, %c0_i32, %c0_i32_0 : i32, i32, i32
  }
  func.func @transform_6(%arg0: i32, %arg1: memref<4xf32, #tpu.memory_space<smem>>) -> (i32, i32, i32) {
    %c0_i32 = arith.constant 0 : i32
    %c0_i32_0 = arith.constant 0 : i32
    %c0_i32_1 = arith.constant 0 : i32
    return %arg0, %c0_i32, %c0_i32_0 : i32, i32, i32
  }
}

</mosaic_0001>

<llo_original>
// kernel: tpu_custom_call.1
$region0: #{tpu_custom_call.1}
  #allocation0 [shape = 'u32[]', space=smem, size = 0x4, offset = 0x4, fixed_abs, tag = 'smem constant byte address 0x4 - core index']
  #allocation1 [shape = 'u32[144,128]{1,0:T(1,128)}', space=vmem, size = 0x12000, scoped, tag = 'internal scratch']
  #allocation2 [shape = 's32[1]{0}', space=sflag, size = 0x4, scoped, tag = 'scoped memory for tpu_custom_call.1']
  #allocation3 [shape = 'u8[512]{0}', space=smem, size = 0x200, scoped, tag = 'prefetched SMEM operand 0']
  %s0 = inlined_call_operand.vmem [shape: f32[4], index: 0, kind: input, shape index: {}]
  %s1 = inlined_call_operand.vmem [shape: f32[4,4,32], index: 1, kind: input, shape index: {}]
  %s2 = inlined_call_operand.vmem [shape: f32[4,4,64], index: 2, kind: input, shape index: {}]
  %s3 = inlined_call_operand.vmem [shape: f32[2,32,64], index: 3, kind: input, shape index: {}]
  %s4 = inlined_call_operand.vmem [shape: f32[64,32], index: 4, kind: input, shape index: {}]
  %s5 = inlined_call_operand.hbm [shape: f32[16,16,16], index: 5, kind: input, shape index: {}]
  %s6 = inlined_call_operand.hbm [shape: f32[2,8,32], index: 6, kind: output, shape index: {0}]
  %s7 = inlined_call_operand.hbm [shape: f32[2,8,64], index: 7, kind: output, shape index: {1}]
  %8 = xla_tuple %s6, %s7
  %s9 = sld [smem:[#allocation0]]
  $region65: #{tpu_custom_call.1} parent=0
    _
  %s11 = ssub.s32 1, %s9
  %s12 = scalar_select 0, %s11, %s9
  %s13 = sshll.u32 %s0, 4
  %s14 = int_to_ptr.vmem [resolvable:$true] %s13
  %16 = dma.vmem_to_smem %s14, 16, [#allocation3], [#allocation2]
  %17 = dma.done [#allocation2], 16
  %18 = sfence
  $region1: #{tpu_custom_call.1} parent=0
    #allocation4 [shape = 'u8[131072]{0}', space=vmem, size = 0x20000, scoped, tag = 'input window, operand 5, single buffered']
    #allocation5 [shape = 's32[2]{0}', space=sflag, size = 0x8, scoped, tag = 'scoped memory for tpu_custom_call.1']
    #allocation6 [shape = 's32[2]{0}', space=sflag, size = 0x8, scoped, tag = 'scoped memory for tpu_custom_call.1']
    #allocation7 [shape = 'u8[8192]{0}', space=vmem, size = 0x2000, scoped, tag = 'output window, operand 0']
    #allocation8 [shape = 'u8[8192]{0}', space=vmem, size = 0x2000, scoped, tag = 'output window, operand 1']
    #allocation9 [shape = 's32[2]{0}', space=sflag, size = 0x8, scoped, tag = 'scoped memory for tpu_custom_call.1']
    %19 = vsyncpa [#allocation5], 0
    %20 = vsyncpa [#allocation6], 0
    %s21 = scalar_lea.sflag [#allocation6], 1
    %22 = vsyncpa %s21, 0
    %23 = vsyncpa [#allocation9], 0
    %s24 = scalar_lea.sflag [#allocation9], 1
    %25 = vsyncpa %s24, 0
    loop: start=0, step=1, limit=4
    $region2: #{tpu_custom_call.1} parent=1 // loop_pre_header
      _
    $region3: #{tpu_custom_call.1} parent=1 // loop_header
      %s27 = sphi 0, %s31
      %p28 = scmp.ge.s32.totalorder %s27, 4
      %s37 = sphi 0, %s39
      %s40 = sphi 0, %s37
      %s41 = sphi 0, %s40
      %s57 = sphi 0, %s41
      %s63 = sphi 0, %s65
      %s66 = sphi 0, %s63
      %s67 = sphi 0, %s66
      %s83 = sphi 0, %s67
      %s87 = sphi 0, %s87
      %s89 = sphi 0, %s87
      %s90 = sphi 0, %s89
      %s104 = sphi 0, %s90
      %s108 = sphi 0, %s108
      %s110 = sphi 0, %s108
      %s111 = sphi 0, %s110
      %s125 = sphi 0, %s111
      %s129 = sphi 0, %s129
      %s131 = sphi 0, %s129
      %s132 = sphi 0, %s131
      %s146 = sphi 0, %s132
      %s152 = sphi 0, %s154
      %s155 = sphi 0, %s152
      %s156 = sphi 0, %s155
      %s172 = sphi 0, %s156
      %s178 = sphi 0, %s180
      %s181 = sphi 0, %s178
      %s182 = sphi 0, %s181
      %s198 = sphi 0, %s182
    $region4: #{tpu_custom_call.1} parent=1 // loop_header_branch
      %30 = sbr.rel (%p28) target = $region8
    $region5: #{tpu_custom_call.1} parent=1 // loop_body
      %s32 = ssub.s32 %s27, 1
      %s33 = ssub.s32 %s27, 2
      %s34 = sadd.s32 %s27, 1
      %s35 = ssub.s32 %s27, %s34
      %p36 = scmp.eq.s32.totalorder %s35, 0
      %s38 = sadd.s32 %s37, 1
      %s39 = scalar_select %p36, %s37, %s38
      %p42 = pneg %p36
      %p43 = scmp.eq.s32.totalorder %s27, 1
      %p44 = por %p42, %p43
      %p45 = scmp.ne.s32.totalorder %s37, %s40
      %p46 = scmp.eq.s32.totalorder %s27, 0
      %p47 = por %p45, %p46
      %p48 = scmp.ne.s32.totalorder %s37, %s40
      %p49 = scmp.eq.s32.totalorder %s32, 1
      %p50 = por %p48, %p49
      %p51 = scmp.ne.s32.totalorder %s40, %s41
      %p52 = scmp.eq.s32.totalorder %s32, 0
      %p53 = por %p51, %p52
      %p54 = scmp.ne.s32.totalorder %s40, %s41
      %p55 = scmp.eq.s32.totalorder %s33, 1
      %p56 = por %p54, %p55
      %p58 = scmp.ne.s32.totalorder %s41, %s57
      %p59 = scmp.eq.s32.totalorder %s33, 0
      %p60 = por %p58, %p59
      %s61 = ssub.s32 %s27, %s34
      %p62 = scmp.eq.s32.totalorder %s61, 0
      %s64 = sadd.s32 %s63, 1
      %s65 = scalar_select %p62, %s63, %s64
      %p68 = pneg %p62
      %p69 = scmp.eq.s32.totalorder %s27, 1
      %p70 = por %p68, %p69
      %p71 = scmp.ne.s32.totalorder %s63, %s66
      %p72 = scmp.eq.s32.totalorder %s27, 0
      %p73 = por %p71, %p72
      %p74 = scmp.ne.s32.totalorder %s63, %s66
      %p75 = scmp.eq.s32.totalorder %s32, 1
      %p76 = por %p74, %p75
      %p77 = scmp.ne.s32.totalorder %s66, %s67
      %p78 = scmp.eq.s32.totalorder %s32, 0
      %p79 = por %p77, %p78
      %p80 = scmp.ne.s32.totalorder %s66, %s67
      %p81 = scmp.eq.s32.totalorder %s33, 1
      %p82 = por %p80, %p81
      %p84 = scmp.ne.s32.totalorder %s67, %s83
      %p85 = scmp.eq.s32.totalorder %s33, 0
      %p86 = por %p84, %p85
      %s88 = sadd.s32 %s87, 1
      %p91 = scmp.eq.s32.totalorder %s27, 1
      %p92 = scmp.ne.s32.totalorder %s87, %s89
      %p93 = scmp.eq.s32.totalorder %s27, 0
      %p94 = por %p92, %p93
      %p95 = scmp.ne.s32.totalorder %s87, %s89
      %p96 = scmp.eq.s32.totalorder %s32, 1
      %p97 = por %p95, %p96
      %p98 = scmp.ne.s32.totalorder %s89, %s90
      %p99 = scmp.eq.s32.totalorder %s32, 0
      %p100 = por %p98, %p99
      %p101 = scmp.ne.s32.totalorder %s89, %s90
      %p102 = scmp.eq.s32.totalorder %s33, 1
      %p103 = por %p101, %p102
      %p105 = scmp.ne.s32.totalorder %s90, %s104
      %p106 = scmp.eq.s32.totalorder %s33, 0
      %p107 = por %p105, %p106
      %s109 = sadd.s32 %s108, 1
      %p112 = scmp.eq.s32.totalorder %s27, 1
      %p113 = scmp.ne.s32.totalorder %s108, %s110
      %p114 = scmp.eq.s32.totalorder %s27, 0
      %p115 = por %p113, %p114
      %p116 = scmp.ne.s32.totalorder %s108, %s110
      %p117 = scmp.eq.s32.totalorder %s32, 1
      %p118 = por %p116, %p117
      %p119 = scmp.ne.s32.totalorder %s110, %s111
      %p120 = scmp.eq.s32.totalorder %s32, 0
      %p121 = por %p119, %p120
      %p122 = scmp.ne.s32.totalorder %s110, %s111
      %p123 = scmp.eq.s32.totalorder %s33, 1
      %p124 = por %p122, %p123
      %p126 = scmp.ne.s32.totalorder %s111, %s125
      %p127 = scmp.eq.s32.totalorder %s33, 0
      %p128 = por %p126, %p127
      %s130 = sadd.s32 %s129, 1
      %p133 = scmp.eq.s32.totalorder %s27, 1
      %p134 = scmp.ne.s32.totalorder %s129, %s131
      %p135 = scmp.eq.s32.totalorder %s27, 0
      %p136 = por %p134, %p135
      %p137 = scmp.ne.s32.totalorder %s129, %s131
      %p138 = scmp.eq.s32.totalorder %s32, 1
      %p139 = por %p137, %p138
      %p140 = scmp.ne.s32.totalorder %s131, %s132
      %p141 = scmp.eq.s32.totalorder %s32, 0
      %p142 = por %p140, %p141
      %p143 = scmp.ne.s32.totalorder %s131, %s132
      %p144 = scmp.eq.s32.totalorder %s33, 1
      %p145 = por %p143, %p144
      %p147 = scmp.ne.s32.totalorder %s132, %s146
      %p148 = scmp.eq.s32.totalorder %s33, 0
      %p149 = por %p147, %p148
      %s150 = ssub.s32 %s27, %s34
      %p151 = scmp.eq.s32.totalorder %s150, 0
      %s153 = sadd.s32 %s152, 1
      %s154 = scalar_select %p151, %s152, %s153
      %p157 = pneg %p151
      %p158 = scmp.eq.s32.totalorder %s27, 1
      %p159 = por %p157, %p158
      %p160 = scmp.ne.s32.totalorder %s152, %s155
      %p161 = scmp.eq.s32.totalorder %s27, 0
      %p162 = por %p160, %p161
      %p163 = scmp.ne.s32.totalorder %s152, %s155
      %p164 = scmp.eq.s32.totalorder %s32, 1
      %p165 = por %p163, %p164
      %p166 = scmp.ne.s32.totalorder %s155, %s156
      %p167 = scmp.eq.s32.totalorder %s32, 0
      %p168 = por %p166, %p167
      %p169 = scmp.ne.s32.totalorder %s155, %s156
      %p170 = scmp.eq.s32.totalorder %s33, 1
      %p171 = por %p169, %p170
      %p173 = scmp.ne.s32.totalorder %s156, %s172
      %p174 = scmp.eq.s32.totalorder %s33, 0
      %p175 = por %p173, %p174
      %s176 = ssub.s32 %s27, %s34
      %p177 = scmp.eq.s32.totalorder %s176, 0
      %s179 = sadd.s32 %s178, 1
      %s180 = scalar_select %p177, %s178, %s179
      %p183 = pneg %p177
      %p184 = scmp.eq.s32.totalorder %s27, 1
      %p185 = por %p183, %p184
      %p186 = scmp.ne.s32.totalorder %s178, %s181
      %p187 = scmp.eq.s32.totalorder %s27, 0
      %p188 = por %p186, %p187
      %p189 = scmp.ne.s32.totalorder %s178, %s181
      %p190 = scmp.eq.s32.totalorder %s32, 1
      %p191 = por %p189, %p190
      %p192 = scmp.ne.s32.totalorder %s181, %s182
      %p193 = scmp.eq.s32.totalorder %s32, 0
      %p194 = por %p192, %p193
      %p195 = scmp.ne.s32.totalorder %s181, %s182
      %p196 = scmp.eq.s32.totalorder %s33, 1
      %p197 = por %p195, %p196
      %p199 = scmp.ne.s32.totalorder %s182, %s198
      %p200 = scmp.eq.s32.totalorder %s33, 0
      %p201 = por %p199, %p200
      %p202 = scmp.le.s32.totalorder 1, %s27
      %p203 = scmp.lt.s32.totalorder %s27, 3
      %p204 = pnand %p202, %p203
      %p205 = pneg %p204
      // Predicated region
      $region9: #{tpu_custom_call.1} parent=5 // pred_check
        _
      $region10: #{tpu_custom_call.1} parent=5 // pred_check_branch
        %207 = sbr.rel (%p204) target = $region12
      $region11: #{tpu_custom_call.1} parent=5 // pred_region
        %s208 = ssub.s32 %s27, 1
        // Predicated region
        $region13: #{tpu_custom_call.1} parent=11 // pred_check
          %p209 = pneg %p100
        $region14: #{tpu_custom_call.1} parent=11 // pred_check_branch
          %211 = sbr.rel (%p209) target = $region16
        $region15: #{tpu_custom_call.1} parent=11 // pred_region
          _
        $region16: #{tpu_custom_call.1} parent=11 // pred_fallthru
          _
        // Predicated region
        $region17: #{tpu_custom_call.1} parent=11 // pred_check
          %p212 = pneg %p121
        $region18: #{tpu_custom_call.1} parent=11 // pred_check_branch
          %214 = sbr.rel (%p212) target = $region20
        $region19: #{tpu_custom_call.1} parent=11 // pred_region
          _
        $region20: #{tpu_custom_call.1} parent=11 // pred_fallthru
          _
        // Predicated region
        $region21: #{tpu_custom_call.1} parent=11 // pred_check
          %p215 = pneg %p142
        $region22: #{tpu_custom_call.1} parent=11 // pred_check_branch
          %217 = sbr.rel (%p215) target = $region24
        $region23: #{tpu_custom_call.1} parent=11 // pred_region
          %s219 = ssub.s32 4096, 4096
          %220 = vsyncadd [#allocation5], %s219
          %s221 = sshll.u32 [#allocation4], 4
          %s222 = int_to_ptr.vmem [resolvable:$true] %s221
          %227 = dma.hbm_to_vmem [thread:$0]  %s5, 4096, %s222, [#allocation5], 128, 128, 8
        $region24: #{tpu_custom_call.1} parent=11 // pred_fallthru
          _
      $region12: #{tpu_custom_call.1} parent=5 // pred_fallthru
        _
      %p228 = scmp.lt.s32.totalorder %s27, 2
      // Predicated region
      $region25: #{tpu_custom_call.1} parent=5 // pred_check
        %p229 = pneg %p228
      $region26: #{tpu_custom_call.1} parent=5 // pred_check_branch
        %231 = sbr.rel (%p229) target = $region28
      $region27: #{tpu_custom_call.1} parent=5 // pred_region
        // Predicated region
        $region29: #{tpu_custom_call.1} parent=27 // pred_check
          %p232 = pneg %p47
        $region30: #{tpu_custom_call.1} parent=27 // pred_check_branch
          %234 = sbr.rel (%p232) target = $region32
        $region31: #{tpu_custom_call.1} parent=27 // pred_region
          %s235 = smul.u32 2, %s27
          %p236 = scmp.lt.s32.totalorder %s235, 3
          %s237 = scalar_select %p236, %s235, 3
          %s238 = smul.addr %s237, 4
          %s239 = scalar_lea.vmem %s1, %s238
          %s240 = smul.u32 2, %s27
        $region32: #{tpu_custom_call.1} parent=27 // pred_fallthru
          _
        // Predicated region
        $region33: #{tpu_custom_call.1} parent=27 // pred_check
          %p241 = pneg %p73
        $region34: #{tpu_custom_call.1} parent=27 // pred_check_branch
          %243 = sbr.rel (%p241) target = $region36
        $region35: #{tpu_custom_call.1} parent=27 // pred_region
          %s244 = smul.u32 2, %s27
          %p245 = scmp.lt.s32.totalorder %s244, 3
          %s246 = scalar_select %p245, %s244, 3
          %s247 = smul.addr %s246, 4
          %s248 = scalar_lea.vmem %s2, %s247
          %s249 = smul.u32 2, %s27
        $region36: #{tpu_custom_call.1} parent=27 // pred_fallthru
          _
      $region28: #{tpu_custom_call.1} parent=5 // pred_fallthru
        _
      %p250 = scmp.le.s32.totalorder 1, %s27
      %p251 = scmp.lt.s32.totalorder %s27, 3
      %p252 = pnand %p250, %p251
      %p253 = pneg %p252
      // Predicated region
      $region37: #{tpu_custom_call.1} parent=5 // pred_check
        _
      $region38: #{tpu_custom_call.1} parent=5 // pred_check_branch
        %255 = sbr.rel (%p252) target = $region40
      $region39: #{tpu_custom_call.1} parent=5 // pred_region
        %s256 = ssub.s32 %s27, 1
        // Predicated region
        $region41: #{tpu_custom_call.1} parent=39 // pred_check
          %p257 = pneg %p142
        $region42: #{tpu_custom_call.1} parent=39 // pred_check_branch
          %259 = sbr.rel (%p257) target = $region44
        $region43: #{tpu_custom_call.1} parent=39 // pred_region
          %260 = dma.done [#allocation5], 4096
        $region44: #{tpu_custom_call.1} parent=39 // pred_fallthru
          _
        %s261 = smul.u32 2, %s32
        %p262 = scmp.lt.s32.totalorder %s261, 3
        %s263 = scalar_select %p262, %s261, 3
        %s264 = smul.addr %s263, 4
        %s265 = scalar_lea.vmem %s1, %s264
        %p266 = pneg %p53
        %p267 = pneg %p50
        %s268 = smul.u32 2, %s32
        %p269 = scmp.lt.s32.totalorder %s268, 3
        %s270 = scalar_select %p269, %s268, 3
        %s271 = smul.addr %s270, 4
        %s272 = scalar_lea.vmem %s2, %s271
        %p273 = pneg %p79
        %p274 = pneg %p76
        %p275 = pneg %p100
        %p276 = pneg %p97
        %p277 = pneg %p121
        %p278 = pneg %p118
        %p279 = pneg %p142
        %p280 = pneg %p139
        %p281 = pneg %p168
        %p282 = pneg %p165
        %s283 = sand.u32 %s155, 1
        %s284 = scalar_lea.sflag [#allocation6], %s283
        %s285 = sand.u32 %s155, 1
        %s286 = smul.addr %s285, 8
        %s287 = scalar_lea.vmem [#allocation7], %s286
        %p288 = pneg %p194
        %p289 = pneg %p191
        %s290 = sand.u32 %s181, 1
        %s291 = scalar_lea.sflag [#allocation9], %s290
        %s292 = sand.u32 %s181, 1
        %s293 = smul.addr %s292, 8
        %s294 = scalar_lea.vmem [#allocation8], %s293
        %s295 = smul.u32 2, %s32
        %p296 = scmp.lt.s32.totalorder %s295, 3
        %s297 = scalar_select %p296, %s295, 3
        %s298 = smul.addr %s297, 4
        %s299 = scalar_lea.vmem %s1, %s298
        %s300 = smul.u32 2, %s32
        %s301 = smul.u32 2, %s32
        %p302 = scmp.lt.s32.totalorder %s301, 3
        %s303 = scalar_select %p302, %s301, 3
        %s304 = smul.addr %s303, 4
        %s305 = scalar_lea.vmem %s2, %s304
        %s306 = smul.u32 2, %s32
        %s307 = smul.u32 %s32, 2
        %s308 = sld [smem:[#allocation3 + %s307]]
        %v309 = vld [vmem:[%s299] sm:$0xf]
        %v310 = vld [vmem:[%s305] sm:$0xf]
        %s311 = scalar_lea.vmem [#allocation4], 96
        %v312 = vld [vmem:[%s311] sm:$0xff]
        %v313 = vld [vmem:[%s311 + $0x8] sm:$0xff]
        %vm314 = vcmask 31744
        %v316 = vsel %vm314, %v312, 0
        %v319 = vsel %vm314, %v313, 0
        %vm321 = vcmask 1043456
        %v323 = vsel %vm321, %v309, 0
        %325 = vmatprep.subr.mxu0 0.0
        %326 = vmatpush1.msra.mxu0 %v323
        %327 = vmatprep.subr.mxu0 0.0
        %328 = vmatpush1.msra.mxu0 0.0
        %329 = vmatprep.subr.mxu0 0.0
        %330 = vmatpush1.msra.mxu0 0.0
        %331 = vmatprep.subr.mxu0 0.0
        %332 = vmatpush1.msra.mxu0 0.0
        %333 = vmatprep.subr.mxu0 0.0
        %334 = vmatpush1.msra.mxu0 0.0
        %335 = vmatprep.subr.mxu0 0.0
        %336 = vmatpush1.msra.mxu0 0.0
        %337 = vmatprep.subr.mxu0 0.0
        %338 = vmatpush1.msra.mxu0 0.0
        %339 = vmatprep.subr.mxu0 0.0
        %340 = vmatpush1.msra.mxu0 0.0
        %341 = vmatprep.subr.mxu0 0.0
        %342 = vmatpush1.msra.mxu0 0.0
        %343 = vmatprep.subr.mxu0 0.0
        %344 = vmatpush1.msra.mxu0 0.0
        %345 = vmatprep.subr.mxu0 0.0
        %346 = vmatpush1.msra.mxu0 0.0
        %347 = vmatprep.subr.mxu0 0.0
        %348 = vmatpush1.msra.mxu0 0.0
        %349 = vmatprep.subr.mxu0 0.0
        %350 = vmatpush1.msra.mxu0 0.0
        %351 = vmatprep.subr.mxu0 0.0
        %352 = vmatpush1.msra.mxu0 0.0
        %353 = vmatprep.subr.mxu0 0.0
        %354 = vmatpush1.msra.mxu0 0.0
        %355 = vmatprep.subr.mxu0 0.0
        %356 = vmatpush1.msra.mxu0 0.0
        %357 = vmatprep.subr.mxu0 0.0
        %358 = vmatpush1.msra.mxu0 0.0
        %359 = vmatprep.subr.mxu0 0.0
        %360 = vmatpush1.msra.mxu0 0.0
        %361 = vmatprep.subr.mxu0 0.0
        %362 = vmatpush1.msra.mxu0 0.0
        %363 = vmatprep.subr.mxu0 0.0
        %364 = vmatpush1.msra.mxu0 0.0
        %365 = vmatprep.subr.mxu0 0.0
        %366 = vmatpush1.msra.mxu0 0.0
        %367 = vmatprep.subr.mxu0 0.0
        %368 = vmatpush1.msra.mxu0 0.0
        %369 = vmatprep.subr.mxu0 0.0
        %370 = vmatpush1.msra.mxu0 0.0
        %371 = vmatprep.subr.mxu0 0.0
        %372 = vmatpush1.msra.mxu0 0.0
        %373 = vmatprep.subr.mxu0 0.0
        %374 = vmatpush1.msra.mxu0 0.0
        %375 = vmatprep.subr.mxu0 0.0
        %376 = vmatpush1.msra.mxu0 0.0
        %377 = vmatprep.subr.mxu0 0.0
        %378 = vmatpush1.msra.mxu0 0.0
        %379 = vmatprep.subr.mxu0 0.0
        %380 = vmatpush1.msra.mxu0 0.0
        %381 = vmatprep.subr.mxu0 0.0
        %382 = vmatpush1.msra.mxu0 0.0
        %383 = vmatprep.subr.mxu0 0.0
        %384 = vmatpush1.msra.mxu0 0.0
        %385 = vmatprep.subr.mxu0 0.0
        %386 = vmatpush1.msra.mxu0 0.0
        %387 = vmatprep.subr.mxu0 0.0
        %388 = vmatpush1.msra.mxu0 0.0
        %389 = vmatprep.mubr.f32.mxu0 0.0
        %390 = vmatmul.mubr.f32.gmra.mrb[0].mxu0 %v316
        %v391 = vpop.f32.mrb[0].mxu0
        %v392 = vadd.f32 0.0, %v391
        %v393 = vpop.f32.mrb[0].mxu0
        %394 = vmatprep.mubr.f32.mxu0 0.0
        %395 = vmatmul.mubr.f32.gmra.mrb[0].mxu0 %v319
        %v396 = vpop.f32.mrb[0].mxu0
        %v397 = vadd.f32 0.0, %v396
        %v398 = vpop.f32.mrb[0].mxu0
        %399 = vdwg.mxu0
        %s400 = scalar_lea.vmem [#allocation4], 128
        %v401 = vld [vmem:[%s400] sm:$0xff]
        %v402 = vld [vmem:[%s400 + $0x8] sm:$0xff]
        %v404 = vsel %vm314, %v401, 0
        %v407 = vsel %vm314, %v402, 0
        %409 = vmatprep.subr.mxu0 0.0
        %410 = vmatpush1.msra.mxu0 %v323
        %411 = vmatprep.subr.mxu0 0.0
        %412 = vmatpush1.msra.mxu0 0.0
        %413 = vmatprep.subr.mxu0 0.0
        %414 = vmatpush1.msra.mxu0 0.0
        %415 = vmatprep.subr.mxu0 0.0
        %416 = vmatpush1.msra.mxu0 0.0
        %417 = vmatprep.subr.mxu0 0.0
        %418 = vmatpush1.msra.mxu0 0.0
        %419 = vmatprep.subr.mxu0 0.0
        %420 = vmatpush1.msra.mxu0 0.0
        %421 = vmatprep.subr.mxu0 0.0
        %422 = vmatpush1.msra.mxu0 0.0
        %423 = vmatprep.subr.mxu0 0.0
        %424 = vmatpush1.msra.mxu0 0.0
        %425 = vmatprep.subr.mxu0 0.0
        %426 = vmatpush1.msra.mxu0 0.0
        %427 = vmatprep.subr.mxu0 0.0
        %428 = vmatpush1.msra.mxu0 0.0
        %429 = vmatprep.subr.mxu0 0.0
        %430 = vmatpush1.msra.mxu0 0.0
        %431 = vmatprep.subr.mxu0 0.0
        %432 = vmatpush1.msra.mxu0 0.0
        %433 = vmatprep.subr.mxu0 0.0
        %434 = vmatpush1.msra.mxu0 0.0
        %435 = vmatprep.subr.mxu0 0.0
        %436 = vmatpush1.msra.mxu0 0.0
        %437 = vmatprep.subr.mxu0 0.0
        %438 = vmatpush1.msra.mxu0 0.0
        %439 = vmatprep.subr.mxu0 0.0
        %440 = vmatpush1.msra.mxu0 0.0
        %441 = vmatprep.subr.mxu0 0.0
        %442 = vmatpush1.msra.mxu0 0.0
        %443 = vmatprep.subr.mxu0 0.0
        %444 = vmatpush1.msra.mxu0 0.0
        %445 = vmatprep.subr.mxu0 0.0
        %446 = vmatpush1.msra.mxu0 0.0
        %447 = vmatprep.subr.mxu0 0.0
        %448 = vmatpush1.msra.mxu0 0.0
        %449 = vmatprep.subr.mxu0 0.0
        %450 = vmatpush1.msra.mxu0 0.0
        %451 = vmatprep.subr.mxu0 0.0
        %452 = vmatpush1.msra.mxu0 0.0
        %453 = vmatprep.subr.mxu0 0.0
        %454 = vmatpush1.msra.mxu0 0.0
        %455 = vmatprep.subr.mxu0 0.0
        %456 = vmatpush1.msra.mxu0 0.0
        %457 = vmatprep.subr.mxu0 0.0
        %458 = vmatpush1.msra.mxu0 0.0
        %459 = vmatprep.subr.mxu0 0.0
        %460 = vmatpush1.msra.mxu0 0.0
        %461 = vmatprep.subr.mxu0 0.0
        %462 = vmatpush1.msra.mxu0 0.0
        %463 = vmatprep.subr.mxu0 0.0
        %464 = vmatpush1.msra.mxu0 0.0
        %465 = vmatprep.subr.mxu0 0.0
        %466 = vmatpush1.msra.mxu0 0.0
        %467 = vmatprep.subr.mxu0 0.0
        %468 = vmatpush1.msra.mxu0 0.0
        %469 = vmatprep.subr.mxu0 0.0
        %470 = vmatpush1.msra.mxu0 0.0
        %471 = vmatprep.subr.mxu0 0.0
        %472 = vmatpush1.msra.mxu0 0.0
        %473 = vmatprep.mubr.f32.mxu0 0.0
        %474 = vmatmul.mubr.f32.gmra.mrb[0].mxu0 %v404
        %v475 = vpop.f32.mrb[0].mxu0
        %v476 = vadd.f32 0.0, %v475
        %v477 = vpop.f32.mrb[0].mxu0
        %478 = vmatprep.mubr.f32.mxu0 0.0
        %479 = vmatmul.mubr.f32.gmra.mrb[0].mxu0 %v407
        %v480 = vpop.f32.mrb[0].mxu0
        %v481 = vadd.f32 0.0, %v480
        %v482 = vpop.f32.mrb[0].mxu0
        %483 = vdwg.mxu0
        %s484 = scalar_lea.vmem [#allocation4], 112
        %v485 = vld [vmem:[%s484] sm:$0xff]
        %v486 = vld [vmem:[%s484 + $0x8] sm:$0xff]
        %v488 = vsel %vm314, %v485, 0
        %v491 = vsel %vm314, %v486, 0
        %v494 = vsel %vm321, %v310, 0
        %496 = vmatprep.subr.mxu0 0.0
        %497 = vmatpush1.msra.mxu0 %v494
        %498 = vmatprep.subr.mxu0 0.0
        %499 = vmatpush1.msra.mxu0 0.0
        %500 = vmatprep.subr.mxu0 0.0
        %501 = vmatpush1.msra.mxu0 0.0
        %502 = vmatprep.subr.mxu0 0.0
        %503 = vmatpush1.msra.mxu0 0.0
        %504 = vmatprep.subr.mxu0 0.0
        %505 = vmatpush1.msra.mxu0 0.0
        %506 = vmatprep.subr.mxu0 0.0
        %507 = vmatpush1.msra.mxu0 0.0
        %508 = vmatprep.subr.mxu0 0.0
        %509 = vmatpush1.msra.mxu0 0.0
        %510 = vmatprep.subr.mxu0 0.0
        %511 = vmatpush1.msra.mxu0 0.0
        %512 = vmatprep.subr.mxu0 0.0
        %513 = vmatpush1.msra.mxu0 0.0
        %514 = vmatprep.subr.mxu0 0.0
        %515 = vmatpush1.msra.mxu0 0.0
        %516 = vmatprep.subr.mxu0 0.0
        %517 = vmatpush1.msra.mxu0 0.0
        %518 = vmatprep.subr.mxu0 0.0
        %519 = vmatpush1.msra.mxu0 0.0
        %520 = vmatprep.subr.mxu0 0.0
        %521 = vmatpush1.msra.mxu0 0.0
        %522 = vmatprep.subr.mxu0 0.0
        %523 = vmatpush1.msra.mxu0 0.0
        %524 = vmatprep.subr.mxu0 0.0
        %525 = vmatpush1.msra.mxu0 0.0
        %526 = vmatprep.subr.mxu0 0.0
        %527 = vmatpush1.msra.mxu0 0.0
        %528 = vmatprep.subr.mxu0 0.0
        %529 = vmatpush1.msra.mxu0 0.0
        %530 = vmatprep.subr.mxu0 0.0
        %531 = vmatpush1.msra.mxu0 0.0
        %532 = vmatprep.subr.mxu0 0.0
        %533 = vmatpush1.msra.mxu0 0.0
        %534 = vmatprep.subr.mxu0 0.0
        %535 = vmatpush1.msra.mxu0 0.0
        %536 = vmatprep.subr.mxu0 0.0
        %537 = vmatpush1.msra.mxu0 0.0
        %538 = vmatprep.subr.mxu0 0.0
        %539 = vmatpush1.msra.mxu0 0.0
        %540 = vmatprep.subr.mxu0 0.0
        %541 = vmatpush1.msra.mxu0 0.0
        %542 = vmatprep.subr.mxu0 0.0
        %543 = vmatpush1.msra.mxu0 0.0
        %544 = vmatprep.subr.mxu0 0.0
        %545 = vmatpush1.msra.mxu0 0.0
        %546 = vmatprep.subr.mxu0 0.0
        %547 = vmatpush1.msra.mxu0 0.0
        %548 = vmatprep.subr.mxu0 0.0
        %549 = vmatpush1.msra.mxu0 0.0
        %550 = vmatprep.subr.mxu0 0.0
        %551 = vmatpush1.msra.mxu0 0.0
        %552 = vmatprep.subr.mxu0 0.0
        %553 = vmatpush1.msra.mxu0 0.0
        %554 = vmatprep.subr.mxu0 0.0
        %555 = vmatpush1.msra.mxu0 0.0
        %556 = vmatprep.subr.mxu0 0.0
        %557 = vmatpush1.msra.mxu0 0.0
        %558 = vmatprep.subr.mxu0 0.0
        %559 = vmatpush1.msra.mxu0 0.0
        %560 = vmatprep.mubr.f32.mxu0 0.0
        %561 = vmatmul.mubr.f32.gmra.mrb[0].mxu0 %v488
        %v562 = vpop.f32.mrb[0].mxu0
        %v563 = vadd.f32 0.0, %v562
        %v564 = vpop.f32.mrb[0].mxu0
        %565 = vmatprep.mubr.f32.mxu0 0.0
        %566 = vmatmul.mubr.f32.gmra.mrb[0].mxu0 %v491
        %v567 = vpop.f32.mrb[0].mxu0
        %v568 = vadd.f32 0.0, %v567
        %v569 = vpop.f32.mrb[0].mxu0
        %570 = vdwg.mxu0
        %v571 = vld [vmem:[%s3] sm:$0xff]
        %v572 = vld [vmem:[%s3 + $0x8] sm:$0xff]
        %v573 = vld [vmem:[%s3 + $0x10] sm:$0xff]
        %v574 = vld [vmem:[%s3 + $0x18] sm:$0xff]
        %s575 = scalar_lea.vmem %s3, 32
        %v576 = vld [vmem:[%s575] sm:$0xff]
        %v577 = vld [vmem:[%s575 + $0x8] sm:$0xff]
        %v578 = vld [vmem:[%s575 + $0x10] sm:$0xff]
        %v579 = vld [vmem:[%s575 + $0x18] sm:$0xff]
        %vm580 = vcmask 261120
        %v582 = vsel %vm580, %v476, 0
        %v585 = vsel %vm580, %v481, 0
        %587 = vmatprep.subr.mxu0 0.0
        %588 = vmatpush1.msra.mxu0 %v576
        %589 = vmatprep.subr.mxu0 0.0
        %590 = vmatpush1.msra.mxu0 %v577
        %591 = vmatprep.subr.mxu0 0.0
        %592 = vmatpush1.msra.mxu0 %v578
        %593 = vmatprep.subr.mxu0 0.0
        %594 = vmatpush1.msra.mxu0 %v579
        %595 = vmatprep.subr.mxu0 0.0
        %596 = vmatpush1.msra.mxu0 0.0
        %597 = vmatprep.subr.mxu0 0.0
        %598 = vmatpush1.msra.mxu0 0.0
        %599 = vmatprep.subr.mxu0 0.0
        %600 = vmatpush1.msra.mxu0 0.0
        %601 = vmatprep.subr.mxu0 0.0
        %602 = vmatpush1.msra.mxu0 0.0
        %603 = vmatprep.subr.mxu0 0.0
        %604 = vmatpush1.msra.mxu0 0.0
        %605 = vmatprep.subr.mxu0 0.0
        %606 = vmatpush1.msra.mxu0 0.0
        %607 = vmatprep.subr.mxu0 0.0
        %608 = vmatpush1.msra.mxu0 0.0
        %609 = vmatprep.subr.mxu0 0.0
        %610 = vmatpush1.msra.mxu0 0.0
        %611 = vmatprep.subr.mxu0 0.0
        %612 = vmatpush1.msra.mxu0 0.0
        %613 = vmatprep.subr.mxu0 0.0
        %614 = vmatpush1.msra.mxu0 0.0
        %615 = vmatprep.subr.mxu0 0.0
        %616 = vmatpush1.msra.mxu0 0.0
        %617 = vmatprep.subr.mxu0 0.0
        %618 = vmatpush1.msra.mxu0 0.0
        %619 = vmatprep.subr.mxu0 0.0
        %620 = vmatpush1.msra.mxu0 0.0
        %621 = vmatprep.subr.mxu0 0.0
        %622 = vmatpush1.msra.mxu0 0.0
        %623 = vmatprep.subr.mxu0 0.0
        %624 = vmatpush1.msra.mxu0 0.0
        %625 = vmatprep.subr.mxu0 0.0
        %626 = vmatpush1.msra.mxu0 0.0
        %627 = vmatprep.subr.mxu0 0.0
        %628 = vmatpush1.msra.mxu0 0.0
        %629 = vmatprep.subr.mxu0 0.0
        %630 = vmatpush1.msra.mxu0 0.0
        %631 = vmatprep.subr.mxu0 0.0
        %632 = vmatpush1.msra.mxu0 0.0
        %633 = vmatprep.subr.mxu0 0.0
        %634 = vmatpush1.msra.mxu0 0.0
        %635 = vmatprep.subr.mxu0 0.0
        %636 = vmatpush1.msra.mxu0 0.0
        %637 = vmatprep.subr.mxu0 0.0
        %638 = vmatpush1.msra.mxu0 0.0
        %639 = vmatprep.subr.mxu0 0.0
        %640 = vmatpush1.msra.mxu0 0.0
        %641 = vmatprep.subr.mxu0 0.0
        %642 = vmatpush1.msra.mxu0 0.0
        %643 = vmatprep.subr.mxu0 0.0
        %644 = vmatpush1.msra.mxu0 0.0
        %645 = vmatprep.subr.mxu0 0.0
        %646 = vmatpush1.msra.mxu0 0.0
        %647 = vmatprep.subr.mxu0 0.0
        %648 = vmatpush1.msra.mxu0 0.0
        %649 = vmatprep.subr.mxu0 0.0
        %650 = vmatpush1.msra.mxu0 0.0
        %651 = vmatprep.mubr.f32.mxu0 0.0
        %652 = vmatmul.mubr.f32.gmra.mrb[0].mxu0 %v582
        %v653 = vpop.f32.mrb[0].mxu0
        %v654 = vadd.f32 0.0, %v653
        %v655 = vpop.f32.mrb[0].mxu0
        %656 = vmatprep.mubr.f32.mxu0 0.0
        %657 = vmatmul.mubr.f32.gmra.mrb[0].mxu0 %v585
        %v658 = vpop.f32.mrb[0].mxu0
        %v659 = vadd.f32 0.0, %v658
        %v660 = vpop.f32.mrb[0].mxu0
        %661 = vdwg.mxu0
        %v663 = vsel %vm580, %v392, 0
        %v666 = vsel %vm580, %v397, 0
        %668 = vmatprep.subr.mxu0 0.0
        %669 = vmatpush1.msra.mxu0 %v571
        %670 = vmatprep.subr.mxu0 0.0
        %671 = vmatpush1.msra.mxu0 %v572
        %672 = vmatprep.subr.mxu0 0.0
        %673 = vmatpush1.msra.mxu0 %v573
        %674 = vmatprep.subr.mxu0 0.0
        %675 = vmatpush1.msra.mxu0 %v574
        %676 = vmatprep.subr.mxu0 0.0
        %677 = vmatpush1.msra.mxu0 0.0
        %678 = vmatprep.subr.mxu0 0.0
        %679 = vmatpush1.msra.mxu0 0.0
        %680 = vmatprep.subr.mxu0 0.0
        %681 = vmatpush1.msra.mxu0 0.0
        %682 = vmatprep.subr.mxu0 0.0
        %683 = vmatpush1.msra.mxu0 0.0
        %684 = vmatprep.subr.mxu0 0.0
        %685 = vmatpush1.msra.mxu0 0.0
        %686 = vmatprep.subr.mxu0 0.0
        %687 = vmatpush1.msra.mxu0 0.0
        %688 = vmatprep.subr.mxu0 0.0
        %689 = vmatpush1.msra.mxu0 0.0
        %690 = vmatprep.subr.mxu0 0.0
        %691 = vmatpush1.msra.mxu0 0.0
        %692 = vmatprep.subr.mxu0 0.0
        %693 = vmatpush1.msra.mxu0 0.0
        %694 = vmatprep.subr.mxu0 0.0
        %695 = vmatpush1.msra.mxu0 0.0
        %696 = vmatprep.subr.mxu0 0.0
        %697 = vmatpush1.msra.mxu0 0.0
        %698 = vmatprep.subr.mxu0 0.0
        %699 = vmatpush1.msra.mxu0 0.0
        %700 = vmatprep.subr.mxu0 0.0
        %701 = vmatpush1.msra.mxu0 0.0
        %702 = vmatprep.subr.mxu0 0.0
        %703 = vmatpush1.msra.mxu0 0.0
        %704 = vmatprep.subr.mxu0 0.0
        %705 = vmatpush1.msra.mxu0 0.0
        %706 = vmatprep.subr.mxu0 0.0
        %707 = vmatpush1.msra.mxu0 0.0
        %708 = vmatprep.subr.mxu0 0.0
        %709 = vmatpush1.msra.mxu0 0.0
        %710 = vmatprep.subr.mxu0 0.0
        %711 = vmatpush1.msra.mxu0 0.0
        %712 = vmatprep.subr.mxu0 0.0
        %713 = vmatpush1.msra.mxu0 0.0
        %714 = vmatprep.subr.mxu0 0.0
        %715 = vmatpush1.msra.mxu0 0.0
        %716 = vmatprep.subr.mxu0 0.0
        %717 = vmatpush1.msra.mxu0 0.0
        %718 = vmatprep.subr.mxu0 0.0
        %719 = vmatpush1.msra.mxu0 0.0
        %720 = vmatprep.subr.mxu0 0.0
        %721 = vmatpush1.msra.mxu0 0.0
        %722 = vmatprep.subr.mxu0 0.0
        %723 = vmatpush1.msra.mxu0 0.0
        %724 = vmatprep.subr.mxu0 0.0
        %725 = vmatpush1.msra.mxu0 0.0
        %726 = vmatprep.subr.mxu0 0.0
        %727 = vmatpush1.msra.mxu0 0.0
        %728 = vmatprep.subr.mxu0 0.0
        %729 = vmatpush1.msra.mxu0 0.0
        %730 = vmatprep.subr.mxu0 0.0
        %731 = vmatpush1.msra.mxu0 0.0
        %732 = vmatprep.mubr.f32.mxu0 0.0
        %733 = vmatmul.mubr.f32.gmra.mrb[0].mxu0 %v663
        %v734 = vpop.f32.mrb[0].mxu0
        %v735 = vadd.f32 %v654, %v734
        %v736 = vpop.f32.mrb[0].mxu0
        %737 = vmatprep.mubr.f32.mxu0 0.0
        %738 = vmatmul.mubr.f32.gmra.mrb[0].mxu0 %v666
        %v739 = vpop.f32.mrb[0].mxu0
        %v740 = vadd.f32 %v659, %v739
        %v741 = vpop.f32.mrb[0].mxu0
        %742 = vdwg.mxu0
        %v743 = vadd.f32 %v735, %v563
        %v744 = vadd.f32 %v740, %v568
        %s745 = scalar_lea.vmem [#allocation4], 144
        %v746 = vld [vmem:[%s745] sm:$0xff]
        %v747 = vld [vmem:[%s745 + $0x8] sm:$0xff]
        %749 = vset.pattern.permute.xlu0 0
        %750 = vperm.xlu0 %749, %v746
        %v751 = vpop.permute.xlu0 %750
        %754 = vset.pattern.permute.xlu0 0
        %755 = vperm.xlu0 %754, %v747
        %v756 = vpop.permute.xlu0 %755
        %v758 = vadd.f32 %v743, %v751
        %v759 = vadd.f32 %v744, %v756
        %v760 = vmax.f32 %v758, 0.0
        %v761 = vmax.f32 %v759, 0.0
        %v762 = vld [vmem:[#allocation4] sm:$0xff]
        %v763 = vld [vmem:[#allocation4 + $0x8] sm:$0xff]
        %s764 = scalar_lea.vmem [#allocation4], 160
        %v765 = vld [vmem:[%s764] sm:$0xff]
        %v766 = vld [vmem:[%s764 + $0x8] sm:$0xff]
        %768 = vset.pattern.permute.xlu0 0
        %769 = vperm.xlu0 %768, %v765
        %v770 = vpop.permute.xlu0 %769
        %773 = vset.pattern.permute.xlu0 0
        %774 = vperm.xlu0 %773, %v766
        %v775 = vpop.permute.xlu0 %774
        %vm777 = vcmask 130048
        %v779 = vsel %vm777, %v762, 0
        %v782 = vsel %vm777, %v763, 0
        %784 = vmatprep.subr.mxu0 0.0
        %785 = vmatpush1.msra.mxu0 %v760
        %786 = vmatprep.subr.mxu0 0.0
        %787 = vmatpush1.msra.mxu0 %v761
        %788 = vmatprep.subr.mxu0 0.0
        %789 = vmatpush1.msra.mxu0 0.0
        %790 = vmatprep.subr.mxu0 0.0
        %791 = vmatpush1.msra.mxu0 0.0
        %792 = vmatprep.subr.mxu0 0.0
        %793 = vmatpush1.msra.mxu0 0.0
        %794 = vmatprep.subr.mxu0 0.0
        %795 = vmatpush1.msra.mxu0 0.0
        %796 = vmatprep.subr.mxu0 0.0
        %797 = vmatpush1.msra.mxu0 0.0
        %798 = vmatprep.subr.mxu0 0.0
        %799 = vmatpush1.msra.mxu0 0.0
        %800 = vmatprep.subr.mxu0 0.0
        %801 = vmatpush1.msra.mxu0 0.0
        %802 = vmatprep.subr.mxu0 0.0
        %803 = vmatpush1.msra.mxu0 0.0
        %804 = vmatprep.subr.mxu0 0.0
        %805 = vmatpush1.msra.mxu0 0.0
        %806 = vmatprep.subr.mxu0 0.0
        %807 = vmatpush1.msra.mxu0 0.0
        %808 = vmatprep.subr.mxu0 0.0
        %809 = vmatpush1.msra.mxu0 0.0
        %810 = vmatprep.subr.mxu0 0.0
        %811 = vmatpush1.msra.mxu0 0.0
        %812 = vmatprep.subr.mxu0 0.0
        %813 = vmatpush1.msra.mxu0 0.0
        %814 = vmatprep.subr.mxu0 0.0
        %815 = vmatpush1.msra.mxu0 0.0
        %816 = vmatprep.subr.mxu0 0.0
        %817 = vmatpush1.msra.mxu0 0.0
        %818 = vmatprep.subr.mxu0 0.0
        %819 = vmatpush1.msra.mxu0 0.0
        %820 = vmatprep.subr.mxu0 0.0
        %821 = vmatpush1.msra.mxu0 0.0
        %822 = vmatprep.subr.mxu0 0.0
        %823 = vmatpush1.msra.mxu0 0.0
        %824 = vmatprep.subr.mxu0 0.0
        %825 = vmatpush1.msra.mxu0 0.0
        %826 = vmatprep.subr.mxu0 0.0
        %827 = vmatpush1.msra.mxu0 0.0
        %828 = vmatprep.subr.mxu0 0.0
        %829 = vmatpush1.msra.mxu0 0.0
        %830 = vmatprep.subr.mxu0 0.0
        %831 = vmatpush1.msra.mxu0 0.0
        %832 = vmatprep.subr.mxu0 0.0
        %833 = vmatpush1.msra.mxu0 0.0
        %834 = vmatprep.subr.mxu0 0.0
        %835 = vmatpush1.msra.mxu0 0.0
        %836 = vmatprep.subr.mxu0 0.0
        %837 = vmatpush1.msra.mxu0 0.0
        %838 = vmatprep.subr.mxu0 0.0
        %839 = vmatpush1.msra.mxu0 0.0
        %840 = vmatprep.subr.mxu0 0.0
        %841 = vmatpush1.msra.mxu0 0.0
        %842 = vmatprep.subr.mxu0 0.0
        %843 = vmatpush1.msra.mxu0 0.0
        %844 = vmatprep.subr.mxu0 0.0
        %845 = vmatpush1.msra.mxu0 0.0
        %846 = vmatprep.subr.mxu0 0.0
        %847 = vmatpush1.msra.mxu0 0.0
        %848 = vmatprep.mubr.f32.mxu0 0.0
        %849 = vmatmul.mubr.f32.gmra.mrb[0].mxu0 %v779
        %v850 = vpop.f32.mrb[0].mxu0
        %v851 = vadd.f32 %v770, %v850
        %v852 = vpop.f32.mrb[0].mxu0
        %853 = vmatprep.mubr.f32.mxu0 0.0
        %854 = vmatmul.mubr.f32.gmra.mrb[0].mxu0 %v782
        %v855 = vpop.f32.mrb[0].mxu0
        %v856 = vadd.f32 %v775, %v855
        %v857 = vpop.f32.mrb[0].mxu0
        %858 = vdwg.mxu0
        %s859 = scalar_lea.vmem [#allocation4], 16
        %v860 = vld [vmem:[%s859] sm:$0xff]
        %v861 = vld [vmem:[%s859 + $0x8] sm:$0xff]
        %s862 = scalar_lea.vmem [#allocation4], 176
        %v863 = vld [vmem:[%s862] sm:$0xff]
        %v864 = vld [vmem:[%s862 + $0x8] sm:$0xff]
        %866 = vset.pattern.permute.xlu0 0
        %867 = vperm.xlu0 %866, %v863
        %v868 = vpop.permute.xlu0 %867
        %871 = vset.pattern.permute.xlu0 0
        %872 = vperm.xlu0 %871, %v864
        %v873 = vpop.permute.xlu0 %872
        %v876 = vsel %vm777, %v860, 0
        %v879 = vsel %vm777, %v861, 0
        %881 = vmatprep.subr.mxu0 0.0
        %882 = vmatpush1.msra.mxu0 %v760
        %883 = vmatprep.subr.mxu0 0.0
        %884 = vmatpush1.msra.mxu0 %v761
        %885 = vmatprep.subr.mxu0 0.0
        %886 = vmatpush1.msra.mxu0 0.0
        %887 = vmatprep.subr.mxu0 0.0
        %888 = vmatpush1.msra.mxu0 0.0
        %889 = vmatprep.subr.mxu0 0.0
        %890 = vmatpush1.msra.mxu0 0.0
        %891 = vmatprep.subr.mxu0 0.0
        %892 = vmatpush1.msra.mxu0 0.0
        %893 = vmatprep.subr.mxu0 0.0
        %894 = vmatpush1.msra.mxu0 0.0
        %895 = vmatprep.subr.mxu0 0.0
        %896 = vmatpush1.msra.mxu0 0.0
        %897 = vmatprep.subr.mxu0 0.0
        %898 = vmatpush1.msra.mxu0 0.0
        %899 = vmatprep.subr.mxu0 0.0
        %900 = vmatpush1.msra.mxu0 0.0
        %901 = vmatprep.subr.mxu0 0.0
        %902 = vmatpush1.msra.mxu0 0.0
        %903 = vmatprep.subr.mxu0 0.0
        %904 = vmatpush1.msra.mxu0 0.0
        %905 = vmatprep.subr.mxu0 0.0
        %906 = vmatpush1.msra.mxu0 0.0
        %907 = vmatprep.subr.mxu0 0.0
        %908 = vmatpush1.msra.mxu0 0.0
        %909 = vmatprep.subr.mxu0 0.0
        %910 = vmatpush1.msra.mxu0 0.0
        %911 = vmatprep.subr.mxu0 0.0
        %912 = vmatpush1.msra.mxu0 0.0
        %913 = vmatprep.subr.mxu0 0.0
        %914 = vmatpush1.msra.mxu0 0.0
        %915 = vmatprep.subr.mxu0 0.0
        %916 = vmatpush1.msra.mxu0 0.0
        %917 = vmatprep.subr.mxu0 0.0
        %918 = vmatpush1.msra.mxu0 0.0
        %919 = vmatprep.subr.mxu0 0.0
        %920 = vmatpush1.msra.mxu0 0.0
        %921 = vmatprep.subr.mxu0 0.0
        %922 = vmatpush1.msra.mxu0 0.0
        %923 = vmatprep.subr.mxu0 0.0
        %924 = vmatpush1.msra.mxu0 0.0
        %925 = vmatprep.subr.mxu0 0.0
        %926 = vmatpush1.msra.mxu0 0.0
        %927 = vmatprep.subr.mxu0 0.0
        %928 = vmatpush1.msra.mxu0 0.0
        %929 = vmatprep.subr.mxu0 0.0
        %930 = vmatpush1.msra.mxu0 0.0
        %931 = vmatprep.subr.mxu0 0.0
        %932 = vmatpush1.msra.mxu0 0.0
        %933 = vmatprep.subr.mxu0 0.0
        %934 = vmatpush1.msra.mxu0 0.0
        %935 = vmatprep.subr.mxu0 0.0
        %936 = vmatpush1.msra.mxu0 0.0
        %937 = vmatprep.subr.mxu0 0.0
        %938 = vmatpush1.msra.mxu0 0.0
        %939 = vmatprep.subr.mxu0 0.0
        %940 = vmatpush1.msra.mxu0 0.0
        %941 = vmatprep.subr.mxu0 0.0
        %942 = vmatpush1.msra.mxu0 0.0
        %943 = vmatprep.subr.mxu0 0.0
        %944 = vmatpush1.msra.mxu0 0.0
        %945 = vmatprep.mubr.f32.mxu0 0.0
        %946 = vmatmul.mubr.f32.gmra.mrb[0].mxu0 %v876
        %v947 = vpop.f32.mrb[0].mxu0
        %v948 = vadd.f32 %v868, %v947
        %v949 = vpop.f32.mrb[0].mxu0
        %950 = vmatprep.mubr.f32.mxu0 0.0
        %951 = vmatmul.mubr.f32.gmra.mrb[0].mxu0 %v879
        %v952 = vpop.f32.mrb[0].mxu0
        %v953 = vadd.f32 %v873, %v952
        %v954 = vpop.f32.mrb[0].mxu0
        %955 = vdwg.mxu0
        %v956 = vld [vmem:[%s4] sm:$0xff]
        %v957 = vld [vmem:[%s4 + $0x8] sm:$0xff]
        %v958 = vld [vmem:[%s4 + $0x10] sm:$0xff]
        %v959 = vld [vmem:[%s4 + $0x18] sm:$0xff]
        %v960 = vld [vmem:[%s4 + $0x20] sm:$0xff]
        %v961 = vld [vmem:[%s4 + $0x28] sm:$0xff]
        %v962 = vld [vmem:[%s4 + $0x30] sm:$0xff]
        %v963 = vld [vmem:[%s4 + $0x38] sm:$0xff]
        %vm964 = vcmask 523264
        %v966 = vsel %vm964, %v851, 0
        %v969 = vsel %vm964, %v856, 0
        %971 = vmatprep.subr.mxu0 0.0
        %972 = vmatpush1.msra.mxu0 %v956
        %973 = vmatprep.subr.mxu0 0.0
        %974 = vmatpush1.msra.mxu0 %v957
        %975 = vmatprep.subr.mxu0 0.0
        %976 = vmatpush1.msra.mxu0 %v958
        %977 = vmatprep.subr.mxu0 0.0
        %978 = vmatpush1.msra.mxu0 %v959
        %979 = vmatprep.subr.mxu0 0.0
        %980 = vmatpush1.msra.mxu0 %v960
        %981 = vmatprep.subr.mxu0 0.0
        %982 = vmatpush1.msra.mxu0 %v961
        %983 = vmatprep.subr.mxu0 0.0
        %984 = vmatpush1.msra.mxu0 %v962
        %985 = vmatprep.subr.mxu0 0.0
        %986 = vmatpush1.msra.mxu0 %v963
        %987 = vmatprep.subr.mxu0 0.0
        %988 = vmatpush1.msra.mxu0 0.0
        %989 = vmatprep.subr.mxu0 0.0
        %990 = vmatpush1.msra.mxu0 0.0
        %991 = vmatprep.subr.mxu0 0.0
        %992 = vmatpush1.msra.mxu0 0.0
        %993 = vmatprep.subr.mxu0 0.0
        %994 = vmatpush1.msra.mxu0 0.0
        %995 = vmatprep.subr.mxu0 0.0
        %996 = vmatpush1.msra.mxu0 0.0
        %997 = vmatprep.subr.mxu0 0.0
        %998 = vmatpush1.msra.mxu0 0.0
        %999 = vmatprep.subr.mxu0 0.0
        %1000 = vmatpush1.msra.mxu0 0.0
        %1001 = vmatprep.subr.mxu0 0.0
        %1002 = vmatpush1.msra.mxu0 0.0
        %1003 = vmatprep.subr.mxu0 0.0
        %1004 = vmatpush1.msra.mxu0 0.0
        %1005 = vmatprep.subr.mxu0 0.0
        %1006 = vmatpush1.msra.mxu0 0.0
        %1007 = vmatprep.subr.mxu0 0.0
        %1008 = vmatpush1.msra.mxu0 0.0
        %1009 = vmatprep.subr.mxu0 0.0
        %1010 = vmatpush1.msra.mxu0 0.0
        %1011 = vmatprep.subr.mxu0 0.0
        %1012 = vmatpush1.msra.mxu0 0.0
        %1013 = vmatprep.subr.mxu0 0.0
        %1014 = vmatpush1.msra.mxu0 0.0
        %1015 = vmatprep.subr.mxu0 0.0
        %1016 = vmatpush1.msra.mxu0 0.0
        %1017 = vmatprep.subr.mxu0 0.0
        %1018 = vmatpush1.msra.mxu0 0.0
        %1019 = vmatprep.subr.mxu0 0.0
        %1020 = vmatpush1.msra.mxu0 0.0
        %1021 = vmatprep.subr.mxu0 0.0
        %1022 = vmatpush1.msra.mxu0 0.0
        %1023 = vmatprep.subr.mxu0 0.0
        %1024 = vmatpush1.msra.mxu0 0.0
        %1025 = vmatprep.subr.mxu0 0.0
        %1026 = vmatpush1.msra.mxu0 0.0
        %1027 = vmatprep.subr.mxu0 0.0
        %1028 = vmatpush1.msra.mxu0 0.0
        %1029 = vmatprep.subr.mxu0 0.0
        %1030 = vmatpush1.msra.mxu0 0.0
        %1031 = vmatprep.subr.mxu0 0.0
        %1032 = vmatpush1.msra.mxu0 0.0
        %1033 = vmatprep.subr.mxu0 0.0
        %1034 = vmatpush1.msra.mxu0 0.0
        %1035 = vmatprep.mubr.f32.mxu0 0.0
        %1036 = vmatmul.mubr.f32.gmra.mrb[0].mxu0 %v966
        %v1037 = vpop.f32.mrb[0].mxu0
        %v1038 = vadd.f32 0.0, %v1037
        %v1039 = vpop.f32.mrb[0].mxu0
        %1040 = vmatprep.mubr.f32.mxu0 0.0
        %1041 = vmatmul.mubr.f32.gmra.mrb[0].mxu0 %v969
        %v1042 = vpop.f32.mrb[0].mxu0
        %v1043 = vadd.f32 0.0, %v1042
        %v1044 = vpop.f32.mrb[0].mxu0
        %1045 = vdwg.mxu0
        %s1046 = scalar_lea.vmem [#allocation4], 32
        %v1047 = vld [vmem:[%s1046] sm:$0xff]
        %v1048 = vld [vmem:[%s1046 + $0x8] sm:$0xff]
        %s1049 = scalar_lea.vmem [#allocation4], 192
        %v1050 = vld [vmem:[%s1049] sm:$0xff]
        %v1051 = vld [vmem:[%s1049 + $0x8] sm:$0xff]
        %1053 = vset.pattern.permute.xlu0 0
        %1054 = vperm.xlu0 %1053, %v1050
        %v1055 = vpop.permute.xlu0 %1054
        %1058 = vset.pattern.permute.xlu0 0
        %1059 = vperm.xlu0 %1058, %v1051
        %v1060 = vpop.permute.xlu0 %1059
        %v1063 = vsel %vm777, %v1047, 0
        %v1066 = vsel %vm777, %v1048, 0
        %1068 = vmatprep.subr.mxu0 0.0
        %1069 = vmatpush1.msra.mxu0 %v1038
        %1070 = vmatprep.subr.mxu0 0.0
        %1071 = vmatpush1.msra.mxu0 %v1043
        %1072 = vmatprep.subr.mxu0 0.0
        %1073 = vmatpush1.msra.mxu0 0.0
        %1074 = vmatprep.subr.mxu0 0.0
        %1075 = vmatpush1.msra.mxu0 0.0
        %1076 = vmatprep.subr.mxu0 0.0
        %1077 = vmatpush1.msra.mxu0 0.0
        %1078 = vmatprep.subr.mxu0 0.0
        %1079 = vmatpush1.msra.mxu0 0.0
        %1080 = vmatprep.subr.mxu0 0.0
        %1081 = vmatpush1.msra.mxu0 0.0
        %1082 = vmatprep.subr.mxu0 0.0
        %1083 = vmatpush1.msra.mxu0 0.0
        %1084 = vmatprep.subr.mxu0 0.0
        %1085 = vmatpush1.msra.mxu0 0.0
        %1086 = vmatprep.subr.mxu0 0.0
        %1087 = vmatpush1.msra.mxu0 0.0
        %1088 = vmatprep.subr.mxu0 0.0
        %1089 = vmatpush1.msra.mxu0 0.0
        %1090 = vmatprep.subr.mxu0 0.0
        %1091 = vmatpush1.msra.mxu0 0.0
        %1092 = vmatprep.subr.mxu0 0.0
        %1093 = vmatpush1.msra.mxu0 0.0
        %1094 = vmatprep.subr.mxu0 0.0
        %1095 = vmatpush1.msra.mxu0 0.0
        %1096 = vmatprep.subr.mxu0 0.0
        %1097 = vmatpush1.msra.mxu0 0.0
        %1098 = vmatprep.subr.mxu0 0.0
        %1099 = vmatpush1.msra.mxu0 0.0
        %1100 = vmatprep.subr.mxu0 0.0
        %1101 = vmatpush1.msra.mxu0 0.0
        %1102 = vmatprep.subr.mxu0 0.0
        %1103 = vmatpush1.msra.mxu0 0.0
        %1104 = vmatprep.subr.mxu0 0.0
        %1105 = vmatpush1.msra.mxu0 0.0
        %1106 = vmatprep.subr.mxu0 0.0
        %1107 = vmatpush1.msra.mxu0 0.0
        %1108 = vmatprep.subr.mxu0 0.0
        %1109 = vmatpush1.msra.mxu0 0.0
        %1110 = vmatprep.subr.mxu0 0.0
        %1111 = vmatpush1.msra.mxu0 0.0
        %1112 = vmatprep.subr.mxu0 0.0
        %1113 = vmatpush1.msra.mxu0 0.0
        %1114 = vmatprep.subr.mxu0 0.0
        %1115 = vmatpush1.msra.mxu0 0.0
        %1116 = vmatprep.subr.mxu0 0.0
        %1117 = vmatpush1.msra.mxu0 0.0
        %1118 = vmatprep.subr.mxu0 0.0
        %1119 = vmatpush1.msra.mxu0 0.0
        %1120 = vmatprep.subr.mxu0 0.0
        %1121 = vmatpush1.msra.mxu0 0.0
        %1122 = vmatprep.subr.mxu0 0.0
        %1123 = vmatpush1.msra.mxu0 0.0
        %1124 = vmatprep.subr.mxu0 0.0
        %1125 = vmatpush1.msra.mxu0 0.0
        %1126 = vmatprep.subr.mxu0 0.0
        %1127 = vmatpush1.msra.mxu0 0.0
        %1128 = vmatprep.subr.mxu0 0.0
        %1129 = vmatpush1.msra.mxu0 0.0
        %1130 = vmatprep.subr.mxu0 0.0
        %1131 = vmatpush1.msra.mxu0 0.0
        %1132 = vmatprep.mubr.f32.mxu0 0.0
        %1133 = vmatmul.mubr.f32.gmra.mrb[0].mxu0 %v1063
        %v1134 = vpop.f32.mrb[0].mxu0
        %v1135 = vadd.f32 %v1055, %v1134
        %v1136 = vpop.f32.mrb[0].mxu0
        %1137 = vmatprep.mubr.f32.mxu0 0.0
        %1138 = vmatmul.mubr.f32.gmra.mrb[0].mxu0 %v1066
        %v1139 = vpop.f32.mrb[0].mxu0
        %v1140 = vadd.f32 %v1060, %v1139
        %v1141 = vpop.f32.mrb[0].mxu0
        %1142 = vdwg.mxu0
        %v1143 = vmax.f32 %v1135, 0.0
        %v1144 = vmax.f32 %v1140, 0.0
        %s1145 = scalar_lea.vmem [#allocation4], 48
        %v1146 = vld [vmem:[%s1145] sm:$0xff]
        %v1147 = vld [vmem:[%s1145 + $0x8] sm:$0xff]
        %s1148 = scalar_lea.vmem [#allocation4], 208
        %v1149 = vld [vmem:[%s1148] sm:$0xff]
        %v1150 = vld [vmem:[%s1148 + $0x8] sm:$0xff]
        %1152 = vset.pattern.permute.xlu0 0
        %1153 = vperm.xlu0 %1152, %v1149
        %v1154 = vpop.permute.xlu0 %1153
        %1157 = vset.pattern.permute.xlu0 0
        %1158 = vperm.xlu0 %1157, %v1150
        %v1159 = vpop.permute.xlu0 %1158
        %v1162 = vsel %vm777, %v1146, 0
        %v1165 = vsel %vm777, %v1147, 0
        %1167 = vmatprep.subr.mxu0 0.0
        %1168 = vmatpush1.msra.mxu0 %v1143
        %1169 = vmatprep.subr.mxu0 0.0
        %1170 = vmatpush1.msra.mxu0 %v1144
        %1171 = vmatprep.subr.mxu0 0.0
        %1172 = vmatpush1.msra.mxu0 0.0
        %1173 = vmatprep.subr.mxu0 0.0
        %1174 = vmatpush1.msra.mxu0 0.0
        %1175 = vmatprep.subr.mxu0 0.0
        %1176 = vmatpush1.msra.mxu0 0.0
        %1177 = vmatprep.subr.mxu0 0.0
        %1178 = vmatpush1.msra.mxu0 0.0
        %1179 = vmatprep.subr.mxu0 0.0
        %1180 = vmatpush1.msra.mxu0 0.0
        %1181 = vmatprep.subr.mxu0 0.0
        %1182 = vmatpush1.msra.mxu0 0.0
        %1183 = vmatprep.subr.mxu0 0.0
        %1184 = vmatpush1.msra.mxu0 0.0
        %1185 = vmatprep.subr.mxu0 0.0
        %1186 = vmatpush1.msra.mxu0 0.0
        %1187 = vmatprep.subr.mxu0 0.0
        %1188 = vmatpush1.msra.mxu0 0.0
        %1189 = vmatprep.subr.mxu0 0.0
        %1190 = vmatpush1.msra.mxu0 0.0
        %1191 = vmatprep.subr.mxu0 0.0
        %1192 = vmatpush1.msra.mxu0 0.0
        %1193 = vmatprep.subr.mxu0 0.0
        %1194 = vmatpush1.msra.mxu0 0.0
        %1195 = vmatprep.subr.mxu0 0.0
        %1196 = vmatpush1.msra.mxu0 0.0
        %1197 = vmatprep.subr.mxu0 0.0
        %1198 = vmatpush1.msra.mxu0 0.0
        %1199 = vmatprep.subr.mxu0 0.0
        %1200 = vmatpush1.msra.mxu0 0.0
        %1201 = vmatprep.subr.mxu0 0.0
        %1202 = vmatpush1.msra.mxu0 0.0
        %1203 = vmatprep.subr.mxu0 0.0
        %1204 = vmatpush1.msra.mxu0 0.0
        %1205 = vmatprep.subr.mxu0 0.0
        %1206 = vmatpush1.msra.mxu0 0.0
        %1207 = vmatprep.subr.mxu0 0.0
        %1208 = vmatpush1.msra.mxu0 0.0
        %1209 = vmatprep.subr.mxu0 0.0
        %1210 = vmatpush1.msra.mxu0 0.0
        %1211 = vmatprep.subr.mxu0 0.0
        %1212 = vmatpush1.msra.mxu0 0.0
        %1213 = vmatprep.subr.mxu0 0.0
        %1214 = vmatpush1.msra.mxu0 0.0
        %1215 = vmatprep.subr.mxu0 0.0
        %1216 = vmatpush1.msra.mxu0 0.0
        %1217 = vmatprep.subr.mxu0 0.0
        %1218 = vmatpush1.msra.mxu0 0.0
        %1219 = vmatprep.subr.mxu0 0.0
        %1220 = vmatpush1.msra.mxu0 0.0
        %1221 = vmatprep.subr.mxu0 0.0
        %1222 = vmatpush1.msra.mxu0 0.0
        %1223 = vmatprep.subr.mxu0 0.0
        %1224 = vmatpush1.msra.mxu0 0.0
        %1225 = vmatprep.subr.mxu0 0.0
        %1226 = vmatpush1.msra.mxu0 0.0
        %1227 = vmatprep.subr.mxu0 0.0
        %1228 = vmatpush1.msra.mxu0 0.0
        %1229 = vmatprep.subr.mxu0 0.0
        %1230 = vmatpush1.msra.mxu0 0.0
        %1231 = vmatprep.mubr.f32.mxu0 0.0
        %1232 = vmatmul.mubr.f32.gmra.mrb[0].mxu0 %v1162
        %v1233 = vpop.f32.mrb[0].mxu0
        %v1234 = vadd.f32 %v1154, %v1233
        %v1235 = vpop.f32.mrb[0].mxu0
        %1236 = vmatprep.mubr.f32.mxu0 0.0
        %1237 = vmatmul.mubr.f32.gmra.mrb[0].mxu0 %v1165
        %v1238 = vpop.f32.mrb[0].mxu0
        %v1239 = vadd.f32 %v1159, %v1238
        %v1240 = vpop.f32.mrb[0].mxu0
        %1241 = vdwg.mxu0
        %s1242 = scalar_lea.vmem [#allocation4], 64
        %v1243 = vld [vmem:[%s1242] sm:$0xff]
        %v1244 = vld [vmem:[%s1242 + $0x8] sm:$0xff]
        %s1245 = scalar_lea.vmem [#allocation4], 224
        %v1246 = vld [vmem:[%s1245] sm:$0xff]
        %v1247 = vld [vmem:[%s1245 + $0x8] sm:$0xff]
        %1249 = vset.pattern.permute.xlu0 0
        %1250 = vperm.xlu0 %1249, %v1246
        %v1251 = vpop.permute.xlu0 %1250
        %1254 = vset.pattern.permute.xlu0 0
        %1255 = vperm.xlu0 %1254, %v1247
        %v1256 = vpop.permute.xlu0 %1255
        %v1259 = vsel %vm777, %v1243, 0
        %v1262 = vsel %vm777, %v1244, 0
        %1264 = vmatprep.subr.mxu0 0.0
        %1265 = vmatpush1.msra.mxu0 %v1234
        %1266 = vmatprep.subr.mxu0 0.0
        %1267 = vmatpush1.msra.mxu0 %v1239
        %1268 = vmatprep.subr.mxu0 0.0
        %1269 = vmatpush1.msra.mxu0 0.0
        %1270 = vmatprep.subr.mxu0 0.0
        %1271 = vmatpush1.msra.mxu0 0.0
        %1272 = vmatprep.subr.mxu0 0.0
        %1273 = vmatpush1.msra.mxu0 0.0
        %1274 = vmatprep.subr.mxu0 0.0
        %1275 = vmatpush1.msra.mxu0 0.0
        %1276 = vmatprep.subr.mxu0 0.0
        %1277 = vmatpush1.msra.mxu0 0.0
        %1278 = vmatprep.subr.mxu0 0.0
        %1279 = vmatpush1.msra.mxu0 0.0
        %1280 = vmatprep.subr.mxu0 0.0
        %1281 = vmatpush1.msra.mxu0 0.0
        %1282 = vmatprep.subr.mxu0 0.0
        %1283 = vmatpush1.msra.mxu0 0.0
        %1284 = vmatprep.subr.mxu0 0.0
        %1285 = vmatpush1.msra.mxu0 0.0
        %1286 = vmatprep.subr.mxu0 0.0
        %1287 = vmatpush1.msra.mxu0 0.0
        %1288 = vmatprep.subr.mxu0 0.0
        %1289 = vmatpush1.msra.mxu0 0.0
        %1290 = vmatprep.subr.mxu0 0.0
        %1291 = vmatpush1.msra.mxu0 0.0
        %1292 = vmatprep.subr.mxu0 0.0
        %1293 = vmatpush1.msra.mxu0 0.0
        %1294 = vmatprep.subr.mxu0 0.0
        %1295 = vmatpush1.msra.mxu0 0.0
        %1296 = vmatprep.subr.mxu0 0.0
        %1297 = vmatpush1.msra.mxu0 0.0
        %1298 = vmatprep.subr.mxu0 0.0
        %1299 = vmatpush1.msra.mxu0 0.0
        %1300 = vmatprep.subr.mxu0 0.0
        %1301 = vmatpush1.msra.mxu0 0.0
        %1302 = vmatprep.subr.mxu0 0.0
        %1303 = vmatpush1.msra.mxu0 0.0
        %1304 = vmatprep.subr.mxu0 0.0
        %1305 = vmatpush1.msra.mxu0 0.0
        %1306 = vmatprep.subr.mxu0 0.0
        %1307 = vmatpush1.msra.mxu0 0.0
        %1308 = vmatprep.subr.mxu0 0.0
        %1309 = vmatpush1.msra.mxu0 0.0
        %1310 = vmatprep.subr.mxu0 0.0
        %1311 = vmatpush1.msra.mxu0 0.0
        %1312 = vmatprep.subr.mxu0 0.0
        %1313 = vmatpush1.msra.mxu0 0.0
        %1314 = vmatprep.subr.mxu0 0.0
        %1315 = vmatpush1.msra.mxu0 0.0
        %1316 = vmatprep.subr.mxu0 0.0
        %1317 = vmatpush1.msra.mxu0 0.0
        %1318 = vmatprep.subr.mxu0 0.0
        %1319 = vmatpush1.msra.mxu0 0.0
        %1320 = vmatprep.subr.mxu0 0.0
        %1321 = vmatpush1.msra.mxu0 0.0
        %1322 = vmatprep.subr.mxu0 0.0
        %1323 = vmatpush1.msra.mxu0 0.0
        %1324 = vmatprep.subr.mxu0 0.0
        %1325 = vmatpush1.msra.mxu0 0.0
        %1326 = vmatprep.subr.mxu0 0.0
        %1327 = vmatpush1.msra.mxu0 0.0
        %1328 = vmatprep.mubr.f32.mxu0 0.0
        %1329 = vmatmul.mubr.f32.gmra.mrb[0].mxu0 %v1259
        %v1330 = vpop.f32.mrb[0].mxu0
        %v1331 = vadd.f32 %v1251, %v1330
        %v1332 = vpop.f32.mrb[0].mxu0
        %1333 = vmatprep.mubr.f32.mxu0 0.0
        %1334 = vmatmul.mubr.f32.gmra.mrb[0].mxu0 %v1262
        %v1335 = vpop.f32.mrb[0].mxu0
        %v1336 = vadd.f32 %v1256, %v1335
        %v1337 = vpop.f32.mrb[0].mxu0
        %1338 = vdwg.mxu0
        %s1339 = scalar_lea.vmem [#allocation4], 80
        %v1340 = vld [vmem:[%s1339] sm:$0xff]
        %v1341 = vld [vmem:[%s1339 + $0x8] sm:$0xff]
        %s1342 = scalar_lea.vmem [#allocation4], 240
        %v1343 = vld [vmem:[%s1342] sm:$0xff]
        %v1344 = vld [vmem:[%s1342 + $0x8] sm:$0xff]
        %1346 = vset.pattern.permute.xlu0 0
        %1347 = vperm.xlu0 %1346, %v1343
        %v1348 = vpop.permute.xlu0 %1347
        %1351 = vset.pattern.permute.xlu0 0
        %1352 = vperm.xlu0 %1351, %v1344
        %v1353 = vpop.permute.xlu0 %1352
        %v1356 = vsel %vm777, %v1340, 0
        %v1359 = vsel %vm777, %v1341, 0
        %1361 = vmatprep.subr.mxu0 0.0
        %1362 = vmatpush1.msra.mxu0 %v948
        %1363 = vmatprep.subr.mxu0 0.0
        %1364 = vmatpush1.msra.mxu0 %v953
        %1365 = vmatprep.subr.mxu0 0.0
        %1366 = vmatpush1.msra.mxu0 0.0
        %1367 = vmatprep.subr.mxu0 0.0
        %1368 = vmatpush1.msra.mxu0 0.0
        %1369 = vmatprep.subr.mxu0 0.0
        %1370 = vmatpush1.msra.mxu0 0.0
        %1371 = vmatprep.subr.mxu0 0.0
        %1372 = vmatpush1.msra.mxu0 0.0
        %1373 = vmatprep.subr.mxu0 0.0
        %1374 = vmatpush1.msra.mxu0 0.0
        %1375 = vmatprep.subr.mxu0 0.0
        %1376 = vmatpush1.msra.mxu0 0.0
        %1377 = vmatprep.subr.mxu0 0.0
        %1378 = vmatpush1.msra.mxu0 0.0
        %1379 = vmatprep.subr.mxu0 0.0
        %1380 = vmatpush1.msra.mxu0 0.0
        %1381 = vmatprep.subr.mxu0 0.0
        %1382 = vmatpush1.msra.mxu0 0.0
        %1383 = vmatprep.subr.mxu0 0.0
        %1384 = vmatpush1.msra.mxu0 0.0
        %1385 = vmatprep.subr.mxu0 0.0
        %1386 = vmatpush1.msra.mxu0 0.0
        %1387 = vmatprep.subr.mxu0 0.0
        %1388 = vmatpush1.msra.mxu0 0.0
        %1389 = vmatprep.subr.mxu0 0.0
        %1390 = vmatpush1.msra.mxu0 0.0
        %1391 = vmatprep.subr.mxu0 0.0
        %1392 = vmatpush1.msra.mxu0 0.0
        %1393 = vmatprep.subr.mxu0 0.0
        %1394 = vmatpush1.msra.mxu0 0.0
        %1395 = vmatprep.subr.mxu0 0.0
        %1396 = vmatpush1.msra.mxu0 0.0
        %1397 = vmatprep.subr.mxu0 0.0
        %1398 = vmatpush1.msra.mxu0 0.0
        %1399 = vmatprep.subr.mxu0 0.0
        %1400 = vmatpush1.msra.mxu0 0.0
        %1401 = vmatprep.subr.mxu0 0.0
        %1402 = vmatpush1.msra.mxu0 0.0
        %1403 = vmatprep.subr.mxu0 0.0
        %1404 = vmatpush1.msra.mxu0 0.0
        %1405 = vmatprep.subr.mxu0 0.0
        %1406 = vmatpush1.msra.mxu0 0.0
        %1407 = vmatprep.subr.mxu0 0.0
        %1408 = vmatpush1.msra.mxu0 0.0
        %1409 = vmatprep.subr.mxu0 0.0
        %1410 = vmatpush1.msra.mxu0 0.0
        %1411 = vmatprep.subr.mxu0 0.0
        %1412 = vmatpush1.msra.mxu0 0.0
        %1413 = vmatprep.subr.mxu0 0.0
        %1414 = vmatpush1.msra.mxu0 0.0
        %1415 = vmatprep.subr.mxu0 0.0
        %1416 = vmatpush1.msra.mxu0 0.0
        %1417 = vmatprep.subr.mxu0 0.0
        %1418 = vmatpush1.msra.mxu0 0.0
        %1419 = vmatprep.subr.mxu0 0.0
        %1420 = vmatpush1.msra.mxu0 0.0
        %1421 = vmatprep.subr.mxu0 0.0
        %1422 = vmatpush1.msra.mxu0 0.0
        %1423 = vmatprep.subr.mxu0 0.0
        %1424 = vmatpush1.msra.mxu0 0.0
        %1425 = vmatprep.mubr.f32.mxu0 0.0
        %1426 = vmatmul.mubr.f32.gmra.mrb[0].mxu0 %v1356
        %v1427 = vpop.f32.mrb[0].mxu0
        %v1428 = vadd.f32 %v1348, %v1427
        %v1429 = vpop.f32.mrb[0].mxu0
        %1430 = vmatprep.mubr.f32.mxu0 0.0
        %1431 = vmatmul.mubr.f32.gmra.mrb[0].mxu0 %v1359
        %v1432 = vpop.f32.mrb[0].mxu0
        %v1433 = vadd.f32 %v1353, %v1432
        %v1434 = vpop.f32.mrb[0].mxu0
        %1435 = vdwg.mxu0
        %v1436 = vxor.u32 %v1331, 2147483648
        %v1437 = vmul.f32 %v1436, 1.442695
        %v1438 = vpow.pop %v1437
        %v1439 = vadd.f32 %v1438, 1.0
        %v1440 = vrcp.pop %v1439
        %v1441 = vmul.f32 1.0, %v1440
        %v1442 = vsub.f32 1.0, %v1441
        %v1443 = vtanh.pop %v1336
        %v1444 = vmul.f32 %v1442, %v1443
        %v1445 = vxor.u32 %v1428, 2147483648
        %v1446 = vmul.f32 %v1445, 1.442695
        %v1447 = vpow.pop %v1446
        %v1448 = vadd.f32 %v1447, 1.0
        %v1449 = vrcp.pop %v1448
        %v1450 = vmul.f32 1.0, %v1449
        %v1451 = vsub.f32 1.0, %v1450
        %v1452 = vtanh.pop %v1433
        %v1453 = vmul.f32 %v1451, %v1452
        %v1454 = vstv %s308
        %v1455 = vmul.f32 %v1454, %v1444
        %v1456 = vadd.f32 %v1455, 0.0
        %v1457 = vmul.f32 %v1454, %v1453
        %v1458 = vadd.f32 %v1457, 0.0
        %s1459 = sadd.s32 %s307, 1
        %s1460 = sld [smem:[#allocation3 + %s1459]]
        %s1461 = scalar_lea.vmem %s299, 4
        %v1462 = vld [vmem:[%s1461] sm:$0xf]
        %s1463 = scalar_lea.vmem %s305, 4
        %v1464 = vld [vmem:[%s1463] sm:$0xf]
        %v1466 = vsel %vm321, %v1462, 0
        %1468 = vmatprep.subr.mxu0 0.0
        %1469 = vmatpush1.msra.mxu0 %v1466
        %1470 = vmatprep.subr.mxu0 0.0
        %1471 = vmatpush1.msra.mxu0 0.0
        %1472 = vmatprep.subr.mxu0 0.0
        %1473 = vmatpush1.msra.mxu0 0.0
        %1474 = vmatprep.subr.mxu0 0.0
        %1475 = vmatpush1.msra.mxu0 0.0
        %1476 = vmatprep.subr.mxu0 0.0
        %1477 = vmatpush1.msra.mxu0 0.0
        %1478 = vmatprep.subr.mxu0 0.0
        %1479 = vmatpush1.msra.mxu0 0.0
        %1480 = vmatprep.subr.mxu0 0.0
        %1481 = vmatpush1.msra.mxu0 0.0
        %1482 = vmatprep.subr.mxu0 0.0
        %1483 = vmatpush1.msra.mxu0 0.0
        %1484 = vmatprep.subr.mxu0 0.0
        %1485 = vmatpush1.msra.mxu0 0.0
        %1486 = vmatprep.subr.mxu0 0.0
        %1487 = vmatpush1.msra.mxu0 0.0
        %1488 = vmatprep.subr.mxu0 0.0
        %1489 = vmatpush1.msra.mxu0 0.0
        %1490 = vmatprep.subr.mxu0 0.0
        %1491 = vmatpush1.msra.mxu0 0.0
        %1492 = vmatprep.subr.mxu0 0.0
        %1493 = vmatpush1.msra.mxu0 0.0
        %1494 = vmatprep.subr.mxu0 0.0
        %1495 = vmatpush1.msra.mxu0 0.0
        %1496 = vmatprep.subr.mxu0 0.0
        %1497 = vmatpush1.msra.mxu0 0.0
        %1498 = vmatprep.subr.mxu0 0.0
        %1499 = vmatpush1.msra.mxu0 0.0
        %1500 = vmatprep.subr.mxu0 0.0
        %1501 = vmatpush1.msra.mxu0 0.0
        %1502 = vmatprep.subr.mxu0 0.0
        %1503 = vmatpush1.msra.mxu0 0.0
        %1504 = vmatprep.subr.mxu0 0.0
        %1505 = vmatpush1.msra.mxu0 0.0
        %1506 = vmatprep.subr.mxu0 0.0
        %1507 = vmatpush1.msra.mxu0 0.0
        %1508 = vmatprep.subr.mxu0 0.0
        %1509 = vmatpush1.msra.mxu0 0.0
        %1510 = vmatprep.subr.mxu0 0.0
        %1511 = vmatpush1.msra.mxu0 0.0
        %1512 = vmatprep.subr.mxu0 0.0
        %1513 = vmatpush1.msra.mxu0 0.0
        %1514 = vmatprep.subr.mxu0 0.0
        %1515 = vmatpush1.msra.mxu0 0.0
        %1516 = vmatprep.subr.mxu0 0.0
        %1517 = vmatpush1.msra.mxu0 0.0
        %1518 = vmatprep.subr.mxu0 0.0
        %1519 = vmatpush1.msra.mxu0 0.0
        %1520 = vmatprep.subr.mxu0 0.0
        %1521 = vmatpush1.msra.mxu0 0.0
        %1522 = vmatprep.subr.mxu0 0.0
        %1523 = vmatpush1.msra.mxu0 0.0
        %1524 = vmatprep.subr.mxu0 0.0
        %1525 = vmatpush1.msra.mxu0 0.0
        %1526 = vmatprep.subr.mxu0 0.0
        %1527 = vmatpush1.msra.mxu0 0.0
        %1528 = vmatprep.subr.mxu0 0.0
        %1529 = vmatpush1.msra.mxu0 0.0
        %1530 = vmatprep.subr.mxu0 0.0
        %1531 = vmatpush1.msra.mxu0 0.0
        %1532 = vmatprep.mubr.f32.mxu0 0.0
        %1533 = vmatmul.mubr.f32.gmra.mrb[0].mxu0 %v316
        %v1534 = vpop.f32.mrb[0].mxu0
        %v1535 = vadd.f32 0.0, %v1534
        %v1536 = vpop.f32.mrb[0].mxu0
        %1537 = vmatprep.mubr.f32.mxu0 0.0
        %1538 = vmatmul.mubr.f32.gmra.mrb[0].mxu0 %v319
        %v1539 = vpop.f32.mrb[0].mxu0
        %v1540 = vadd.f32 0.0, %v1539
        %v1541 = vpop.f32.mrb[0].mxu0
        %1542 = vdwg.mxu0
        %1543 = vmatprep.subr.mxu0 0.0
        %1544 = vmatpush1.msra.mxu0 %v1466
        %1545 = vmatprep.subr.mxu0 0.0
        %1546 = vmatpush1.msra.mxu0 0.0
        %1547 = vmatprep.subr.mxu0 0.0
        %1548 = vmatpush1.msra.mxu0 0.0
        %1549 = vmatprep.subr.mxu0 0.0
        %1550 = vmatpush1.msra.mxu0 0.0
        %1551 = vmatprep.subr.mxu0 0.0
        %1552 = vmatpush1.msra.mxu0 0.0
        %1553 = vmatprep.subr.mxu0 0.0
        %1554 = vmatpush1.msra.mxu0 0.0
        %1555 = vmatprep.subr.mxu0 0.0
        %1556 = vmatpush1.msra.mxu0 0.0
        %1557 = vmatprep.subr.mxu0 0.0
        %1558 = vmatpush1.msra.mxu0 0.0
        %1559 = vmatprep.subr.mxu0 0.0
        %1560 = vmatpush1.msra.mxu0 0.0
        %1561 = vmatprep.subr.mxu0 0.0
        %1562 = vmatpush1.msra.mxu0 0.0
        %1563 = vmatprep.subr.mxu0 0.0
        %1564 = vmatpush1.msra.mxu0 0.0
        %1565 = vmatprep.subr.mxu0 0.0
        %1566 = vmatpush1.msra.mxu0 0.0
        %1567 = vmatprep.subr.mxu0 0.0
        %1568 = vmatpush1.msra.mxu0 0.0
        %1569 = vmatprep.subr.mxu0 0.0
        %1570 = vmatpush1.msra.mxu0 0.0
        %1571 = vmatprep.subr.mxu0 0.0
        %1572 = vmatpush1.msra.mxu0 0.0
        %1573 = vmatprep.subr.mxu0 0.0
        %1574 = vmatpush1.msra.mxu0 0.0
        %1575 = vmatprep.subr.mxu0 0.0
        %1576 = vmatpush1.msra.mxu0 0.0
        %1577 = vmatprep.subr.mxu0 0.0
        %1578 = vmatpush1.msra.mxu0 0.0
        %1579 = vmatprep.subr.mxu0 0.0
        %1580 = vmatpush1.msra.mxu0 0.0
        %1581 = vmatprep.subr.mxu0 0.0
        %1582 = vmatpush1.msra.mxu0 0.0
        %1583 = vmatprep.subr.mxu0 0.0
        %1584 = vmatpush1.msra.mxu0 0.0
        %1585 = vmatprep.subr.mxu0 0.0
        %1586 = vmatpush1.msra.mxu0 0.0
        %1587 = vmatprep.subr.mxu0 0.0
        %1588 = vmatpush1.msra.mxu0 0.0
        %1589 = vmatprep.subr.mxu0 0.0
        %1590 = vmatpush1.msra.mxu0 0.0
        %1591 = vmatprep.subr.mxu0 0.0
        %1592 = vmatpush1.msra.mxu0 0.0
        %1593 = vmatprep.subr.mxu0 0.0
        %1594 = vmatpush1.msra.mxu0 0.0
        %1595 = vmatprep.subr.mxu0 0.0
        %1596 = vmatpush1.msra.mxu0 0.0
        %1597 = vmatprep.subr.mxu0 0.0
        %1598 = vmatpush1.msra.mxu0 0.0
        %1599 = vmatprep.subr.mxu0 0.0
        %1600 = vmatpush1.msra.mxu0 0.0
        %1601 = vmatprep.subr.mxu0 0.0
        %1602 = vmatpush1.msra.mxu0 0.0
        %1603 = vmatprep.subr.mxu0 0.0
        %1604 = vmatpush1.msra.mxu0 0.0
        %1605 = vmatprep.subr.mxu0 0.0
        %1606 = vmatpush1.msra.mxu0 0.0
        %1607 = vmatprep.mubr.f32.mxu0 0.0
        %1608 = vmatmul.mubr.f32.gmra.mrb[0].mxu0 %v404
        %v1609 = vpop.f32.mrb[0].mxu0
        %v1610 = vadd.f32 0.0, %v1609
        %v1611 = vpop.f32.mrb[0].mxu0
        %1612 = vmatprep.mubr.f32.mxu0 0.0
        %1613 = vmatmul.mubr.f32.gmra.mrb[0].mxu0 %v407
        %v1614 = vpop.f32.mrb[0].mxu0
        %v1615 = vadd.f32 0.0, %v1614
        %v1616 = vpop.f32.mrb[0].mxu0
        %1617 = vdwg.mxu0
        %v1619 = vsel %vm321, %v1464, 0
        %1621 = vmatprep.subr.mxu0 0.0
        %1622 = vmatpush1.msra.mxu0 %v1619
        %1623 = vmatprep.subr.mxu0 0.0
        %1624 = vmatpush1.msra.mxu0 0.0
        %1625 = vmatprep.subr.mxu0 0.0
        %1626 = vmatpush1.msra.mxu0 0.0
        %1627 = vmatprep.subr.mxu0 0.0
        %1628 = vmatpush1.msra.mxu0 0.0
        %1629 = vmatprep.subr.mxu0 0.0
        %1630 = vmatpush1.msra.mxu0 0.0
        %1631 = vmatprep.subr.mxu0 0.0
        %1632 = vmatpush1.msra.mxu0 0.0
        %1633 = vmatprep.subr.mxu0 0.0
        %1634 = vmatpush1.msra.mxu0 0.0
        %1635 = vmatprep.subr.mxu0 0.0
        %1636 = vmatpush1.msra.mxu0 0.0
        %1637 = vmatprep.subr.mxu0 0.0
        %1638 = vmatpush1.msra.mxu0 0.0
        %1639 = vmatprep.subr.mxu0 0.0
        %1640 = vmatpush1.msra.mxu0 0.0
        %1641 = vmatprep.subr.mxu0 0.0
        %1642 = vmatpush1.msra.mxu0 0.0
        %1643 = vmatprep.subr.mxu0 0.0
        %1644 = vmatpush1.msra.mxu0 0.0
        %1645 = vmatprep.subr.mxu0 0.0
        %1646 = vmatpush1.msra.mxu0 0.0
        %1647 = vmatprep.subr.mxu0 0.0
        %1648 = vmatpush1.msra.mxu0 0.0
        %1649 = vmatprep.subr.mxu0 0.0
        %1650 = vmatpush1.msra.mxu0 0.0
        %1651 = vmatprep.subr.mxu0 0.0
        %1652 = vmatpush1.msra.mxu0 0.0
        %1653 = vmatprep.subr.mxu0 0.0
        %1654 = vmatpush1.msra.mxu0 0.0
        %1655 = vmatprep.subr.mxu0 0.0
        %1656 = vmatpush1.msra.mxu0 0.0
        %1657 = vmatprep.subr.mxu0 0.0
        %1658 = vmatpush1.msra.mxu0 0.0
        %1659 = vmatprep.subr.mxu0 0.0
        %1660 = vmatpush1.msra.mxu0 0.0
        %1661 = vmatprep.subr.mxu0 0.0
        %1662 = vmatpush1.msra.mxu0 0.0
        %1663 = vmatprep.subr.mxu0 0.0
        %1664 = vmatpush1.msra.mxu0 0.0
        %1665 = vmatprep.subr.mxu0 0.0
        %1666 = vmatpush1.msra.mxu0 0.0
        %1667 = vmatprep.subr.mxu0 0.0
        %1668 = vmatpush1.msra.mxu0 0.0
        %1669 = vmatprep.subr.mxu0 0.0
        %1670 = vmatpush1.msra.mxu0 0.0
        %1671 = vmatprep.subr.mxu0 0.0
        %1672 = vmatpush1.msra.mxu0 0.0
        %1673 = vmatprep.subr.mxu0 0.0
        %1674 = vmatpush1.msra.mxu0 0.0
        %1675 = vmatprep.subr.mxu0 0.0
        %1676 = vmatpush1.msra.mxu0 0.0
        %1677 = vmatprep.subr.mxu0 0.0
        %1678 = vmatpush1.msra.mxu0 0.0
        %1679 = vmatprep.subr.mxu0 0.0
        %1680 = vmatpush1.msra.mxu0 0.0
        %1681 = vmatprep.subr.mxu0 0.0
        %1682 = vmatpush1.msra.mxu0 0.0
        %1683 = vmatprep.subr.mxu0 0.0
        %1684 = vmatpush1.msra.mxu0 0.0
        %1685 = vmatprep.mubr.f32.mxu0 0.0
        %1686 = vmatmul.mubr.f32.gmra.mrb[0].mxu0 %v488
        %v1687 = vpop.f32.mrb[0].mxu0
        %v1688 = vadd.f32 0.0, %v1687
        %v1689 = vpop.f32.mrb[0].mxu0
        %1690 = vmatprep.mubr.f32.mxu0 0.0
        %1691 = vmatmul.mubr.f32.gmra.mrb[0].mxu0 %v491
        %v1692 = vpop.f32.mrb[0].mxu0
        %v1693 = vadd.f32 0.0, %v1692
        %v1694 = vpop.f32.mrb[0].mxu0
        %1695 = vdwg.mxu0
        %v1697 = vsel %vm580, %v1610, 0
        %v1700 = vsel %vm580, %v1615, 0
        %1702 = vmatprep.subr.mxu0 0.0
        %1703 = vmatpush1.msra.mxu0 %v576
        %1704 = vmatprep.subr.mxu0 0.0
        %1705 = vmatpush1.msra.mxu0 %v577
        %1706 = vmatprep.subr.mxu0 0.0
        %1707 = vmatpush1.msra.mxu0 %v578
        %1708 = vmatprep.subr.mxu0 0.0
        %1709 = vmatpush1.msra.mxu0 %v579
        %1710 = vmatprep.subr.mxu0 0.0
        %1711 = vmatpush1.msra.mxu0 0.0
        %1712 = vmatprep.subr.mxu0 0.0
        %1713 = vmatpush1.msra.mxu0 0.0
        %1714 = vmatprep.subr.mxu0 0.0
        %1715 = vmatpush1.msra.mxu0 0.0
        %1716 = vmatprep.subr.mxu0 0.0
        %1717 = vmatpush1.msra.mxu0 0.0
        %1718 = vmatprep.subr.mxu0 0.0
        %1719 = vmatpush1.msra.mxu0 0.0
        %1720 = vmatprep.subr.mxu0 0.0
        %1721 = vmatpush1.msra.mxu0 0.0
        %1722 = vmatprep.subr.mxu0 0.0
        %1723 = vmatpush1.msra.mxu0 0.0
        %1724 = vmatprep.subr.mxu0 0.0
        %1725 = vmatpush1.msra.mxu0 0.0
        %1726 = vmatprep.subr.mxu0 0.0
        %1727 = vmatpush1.msra.mxu0 0.0
        %1728 = vmatprep.subr.mxu0 0.0
        %1729 = vmatpush1.msra.mxu0 0.0
        %1730 = vmatprep.subr.mxu0 0.0
        %1731 = vmatpush1.msra.mxu0 0.0
        %1732 = vmatprep.subr.mxu0 0.0
        %1733 = vmatpush1.msra.mxu0 0.0
        %1734 = vmatprep.subr.mxu0 0.0
        %1735 = vmatpush1.msra.mxu0 0.0
        %1736 = vmatprep.subr.mxu0 0.0
        %1737 = vmatpush1.msra.mxu0 0.0
        %1738 = vmatprep.subr.mxu0 0.0
        %1739 = vmatpush1.msra.mxu0 0.0
        %1740 = vmatprep.subr.mxu0 0.0
        %1741 = vmatpush1.msra.mxu0 0.0
        %1742 = vmatprep.subr.mxu0 0.0
        %1743 = vmatpush1.msra.mxu0 0.0
        %1744 = vmatprep.subr.mxu0 0.0
        %1745 = vmatpush1.msra.mxu0 0.0
        %1746 = vmatprep.subr.mxu0 0.0
        %1747 = vmatpush1.msra.mxu0 0.0
        %1748 = vmatprep.subr.mxu0 0.0
        %1749 = vmatpush1.msra.mxu0 0.0
        %1750 = vmatprep.subr.mxu0 0.0
        %1751 = vmatpush1.msra.mxu0 0.0
        %1752 = vmatprep.subr.mxu0 0.0
        %1753 = vmatpush1.msra.mxu0 0.0
        %1754 = vmatprep.subr.mxu0 0.0
        %1755 = vmatpush1.msra.mxu0 0.0
        %1756 = vmatprep.subr.mxu0 0.0
        %1757 = vmatpush1.msra.mxu0 0.0
        %1758 = vmatprep.subr.mxu0 0.0
        %1759 = vmatpush1.msra.mxu0 0.0
        %1760 = vmatprep.subr.mxu0 0.0
        %1761 = vmatpush1.msra.mxu0 0.0
        %1762 = vmatprep.subr.mxu0 0.0
        %1763 = vmatpush1.msra.mxu0 0.0
        %1764 = vmatprep.subr.mxu0 0.0
        %1765 = vmatpush1.msra.mxu0 0.0
        %1766 = vmatprep.mubr.f32.mxu0 0.0
        %1767 = vmatmul.mubr.f32.gmra.mrb[0].mxu0 %v1697
        %v1768 = vpop.f32.mrb[0].mxu0
        %v1769 = vadd.f32 0.0, %v1768
        %v1770 = vpop.f32.mrb[0].mxu0
        %1771 = vmatprep.mubr.f32.mxu0 0.0
        %1772 = vmatmul.mubr.f32.gmra.mrb[0].mxu0 %v1700
        %v1773 = vpop.f32.mrb[0].mxu0
        %v1774 = vadd.f32 0.0, %v1773
        %v1775 = vpop.f32.mrb[0].mxu0
        %1776 = vdwg.mxu0
        %v1778 = vsel %vm580, %v1535, 0
        %v1781 = vsel %vm580, %v1540, 0
        %1783 = vmatprep.subr.mxu0 0.0
        %1784 = vmatpush1.msra.mxu0 %v571
        %1785 = vmatprep.subr.mxu0 0.0
        %1786 = vmatpush1.msra.mxu0 %v572
        %1787 = vmatprep.subr.mxu0 0.0
        %1788 = vmatpush1.msra.mxu0 %v573
        %1789 = vmatprep.subr.mxu0 0.0
        %1790 = vmatpush1.msra.mxu0 %v574
        %1791 = vmatprep.subr.mxu0 0.0
        %1792 = vmatpush1.msra.mxu0 0.0
        %1793 = vmatprep.subr.mxu0 0.0
        %1794 = vmatpush1.msra.mxu0 0.0
        %1795 = vmatprep.subr.mxu0 0.0
        %1796 = vmatpush1.msra.mxu0 0.0
        %1797 = vmatprep.subr.mxu0 0.0
        %1798 = vmatpush1.msra.mxu0 0.0
        %1799 = vmatprep.subr.mxu0 0.0
        %1800 = vmatpush1.msra.mxu0 0.0
        %1801 = vmatprep.subr.mxu0 0.0
        %1802 = vmatpush1.msra.mxu0 0.0
        %1803 = vmatprep.subr.mxu0 0.0
        %1804 = vmatpush1.msra.mxu0 0.0
        %1805 = vmatprep.subr.mxu0 0.0
        %1806 = vmatpush1.msra.mxu0 0.0
        %1807 = vmatprep.subr.mxu0 0.0
        %1808 = vmatpush1.msra.mxu0 0.0
        %1809 = vmatprep.subr.mxu0 0.0
        %1810 = vmatpush1.msra.mxu0 0.0
        %1811 = vmatprep.subr.mxu0 0.0
        %1812 = vmatpush1.msra.mxu0 0.0
        %1813 = vmatprep.subr.mxu0 0.0
        %1814 = vmatpush1.msra.mxu0 0.0
        %1815 = vmatprep.subr.mxu0 0.0
        %1816 = vmatpush1.msra.mxu0 0.0
        %1817 = vmatprep.subr.mxu0 0.0
        %1818 = vmatpush1.msra.mxu0 0.0
        %1819 = vmatprep.subr.mxu0 0.0
        %1820 = vmatpush1.msra.mxu0 0.0
        %1821 = vmatprep.subr.mxu0 0.0
        %1822 = vmatpush1.msra.mxu0 0.0
        %1823 = vmatprep.subr.mxu0 0.0
        %1824 = vmatpush1.msra.mxu0 0.0
        %1825 = vmatprep.subr.mxu0 0.0
        %1826 = vmatpush1.msra.mxu0 0.0
        %1827 = vmatprep.subr.mxu0 0.0
        %1828 = vmatpush1.msra.mxu0 0.0
        %1829 = vmatprep.subr.mxu0 0.0
        %1830 = vmatpush1.msra.mxu0 0.0
        %1831 = vmatprep.subr.mxu0 0.0
        %1832 = vmatpush1.msra.mxu0 0.0
        %1833 = vmatprep.subr.mxu0 0.0
        %1834 = vmatpush1.msra.mxu0 0.0
        %1835 = vmatprep.subr.mxu0 0.0
        %1836 = vmatpush1.msra.mxu0 0.0
        %1837 = vmatprep.subr.mxu0 0.0
        %1838 = vmatpush1.msra.mxu0 0.0
        %1839 = vmatprep.subr.mxu0 0.0
        %1840 = vmatpush1.msra.mxu0 0.0
        %1841 = vmatprep.subr.mxu0 0.0
        %1842 = vmatpush1.msra.mxu0 0.0
        %1843 = vmatprep.subr.mxu0 0.0
        %1844 = vmatpush1.msra.mxu0 0.0
        %1845 = vmatprep.subr.mxu0 0.0
        %1846 = vmatpush1.msra.mxu0 0.0
        %1847 = vmatprep.mubr.f32.mxu0 0.0
        %1848 = vmatmul.mubr.f32.gmra.mrb[0].mxu0 %v1778
        %v1849 = vpop.f32.mrb[0].mxu0
        %v1850 = vadd.f32 %v1769, %v1849
        %v1851 = vpop.f32.mrb[0].mxu0
        %1852 = vmatprep.mubr.f32.mxu0 0.0
        %1853 = vmatmul.mubr.f32.gmra.mrb[0].mxu0 %v1781
        %v1854 = vpop.f32.mrb[0].mxu0
        %v1855 = vadd.f32 %v1774, %v1854
        %v1856 = vpop.f32.mrb[0].mxu0
        %1857 = vdwg.mxu0
        %v1858 = vadd.f32 %v1850, %v1688
        %v1859 = vadd.f32 %v1855, %v1693
        %v1860 = vadd.f32 %v1858, %v751
        %v1861 = vadd.f32 %v1859, %v756
        %v1862 = vmax.f32 %v1860, 0.0
        %v1863 = vmax.f32 %v1861, 0.0
        %1864 = vmatprep.subr.mxu0 0.0
        %1865 = vmatpush1.msra.mxu0 %v1862
        %1866 = vmatprep.subr.mxu0 0.0
        %1867 = vmatpush1.msra.mxu0 %v1863
        %1868 = vmatprep.subr.mxu0 0.0
        %1869 = vmatpush1.msra.mxu0 0.0
        %1870 = vmatprep.subr.mxu0 0.0
        %1871 = vmatpush1.msra.mxu0 0.0
        %1872 = vmatprep.subr.mxu0 0.0
        %1873 = vmatpush1.msra.mxu0 0.0
        %1874 = vmatprep.subr.mxu0 0.0
        %1875 = vmatpush1.msra.mxu0 0.0
        %1876 = vmatprep.subr.mxu0 0.0
        %1877 = vmatpush1.msra.mxu0 0.0
        %1878 = vmatprep.subr.mxu0 0.0
        %1879 = vmatpush1.msra.mxu0 0.0
        %1880 = vmatprep.subr.mxu0 0.0
        %1881 = vmatpush1.msra.mxu0 0.0
        %1882 = vmatprep.subr.mxu0 0.0
        %1883 = vmatpush1.msra.mxu0 0.0
        %1884 = vmatprep.subr.mxu0 0.0
        %1885 = vmatpush1.msra.mxu0 0.0
        %1886 = vmatprep.subr.mxu0 0.0
        %1887 = vmatpush1.msra.mxu0 0.0
        %1888 = vmatprep.subr.mxu0 0.0
        %1889 = vmatpush1.msra.mxu0 0.0
        %1890 = vmatprep.subr.mxu0 0.0
        %1891 = vmatpush1.msra.mxu0 0.0
        %1892 = vmatprep.subr.mxu0 0.0
        %1893 = vmatpush1.msra.mxu0 0.0
        %1894 = vmatprep.subr.mxu0 0.0
        %1895 = vmatpush1.msra.mxu0 0.0
        %1896 = vmatprep.subr.mxu0 0.0
        %1897 = vmatpush1.msra.mxu0 0.0
        %1898 = vmatprep.subr.mxu0 0.0
        %1899 = vmatpush1.msra.mxu0 0.0
        %1900 = vmatprep.subr.mxu0 0.0
        %1901 = vmatpush1.msra.mxu0 0.0
        %1902 = vmatprep.subr.mxu0 0.0
        %1903 = vmatpush1.msra.mxu0 0.0
        %1904 = vmatprep.subr.mxu0 0.0
        %1905 = vmatpush1.msra.mxu0 0.0
        %1906 = vmatprep.subr.mxu0 0.0
        %1907 = vmatpush1.msra.mxu0 0.0
        %1908 = vmatprep.subr.mxu0 0.0
        %1909 = vmatpush1.msra.mxu0 0.0
        %1910 = vmatprep.subr.mxu0 0.0
        %1911 = vmatpush1.msra.mxu0 0.0
        %1912 = vmatprep.subr.mxu0 0.0
        %1913 = vmatpush1.msra.mxu0 0.0
        %1914 = vmatprep.subr.mxu0 0.0
        %1915 = vmatpush1.msra.mxu0 0.0
        %1916 = vmatprep.subr.mxu0 0.0
        %1917 = vmatpush1.msra.mxu0 0.0
        %1918 = vmatprep.subr.mxu0 0.0
        %1919 = vmatpush1.msra.mxu0 0.0
        %1920 = vmatprep.subr.mxu0 0.0
        %1921 = vmatpush1.msra.mxu0 0.0
        %1922 = vmatprep.subr.mxu0 0.0
        %1923 = vmatpush1.msra.mxu0 0.0
        %1924 = vmatprep.subr.mxu0 0.0
        %1925 = vmatpush1.msra.mxu0 0.0
        %1926 = vmatprep.subr.mxu0 0.0
        %1927 = vmatpush1.msra.mxu0 0.0
        %1928 = vmatprep.mubr.f32.mxu0 0.0
        %1929 = vmatmul.mubr.f32.gmra.mrb[0].mxu0 %v779
        %v1930 = vpop.f32.mrb[0].mxu0
        %v1931 = vadd.f32 %v770, %v1930
        %v1932 = vpop.f32.mrb[0].mxu0
        %1933 = vmatprep.mubr.f32.mxu0 0.0
        %1934 = vmatmul.mubr.f32.gmra.mrb[0].mxu0 %v782
        %v1935 = vpop.f32.mrb[0].mxu0
        %v1936 = vadd.f32 %v775, %v1935
        %v1937 = vpop.f32.mrb[0].mxu0
        %1938 = vdwg.mxu0
        %1939 = vmatprep.subr.mxu0 0.0
        %1940 = vmatpush1.msra.mxu0 %v1862
        %1941 = vmatprep.subr.mxu0 0.0
        %1942 = vmatpush1.msra.mxu0 %v1863
        %1943 = vmatprep.subr.mxu0 0.0
        %1944 = vmatpush1.msra.mxu0 0.0
        %1945 = vmatprep.subr.mxu0 0.0
        %1946 = vmatpush1.msra.mxu0 0.0
        %1947 = vmatprep.subr.mxu0 0.0
        %1948 = vmatpush1.msra.mxu0 0.0
        %1949 = vmatprep.subr.mxu0 0.0
        %1950 = vmatpush1.msra.mxu0 0.0
        %1951 = vmatprep.subr.mxu0 0.0
        %1952 = vmatpush1.msra.mxu0 0.0
        %1953 = vmatprep.subr.mxu0 0.0
        %1954 = vmatpush1.msra.mxu0 0.0
        %1955 = vmatprep.subr.mxu0 0.0
        %1956 = vmatpush1.msra.mxu0 0.0
        %1957 = vmatprep.subr.mxu0 0.0
        %1958 = vmatpush1.msra.mxu0 0.0
        %1959 = vmatprep.subr.mxu0 0.0
        %1960 = vmatpush1.msra.mxu0 0.0
        %1961 = vmatprep.subr.mxu0 0.0
        %1962 = vmatpush1.msra.mxu0 0.0
        %1963 = vmatprep.subr.mxu0 0.0
        %1964 = vmatpush1.msra.mxu0 0.0
        %1965 = vmatprep.subr.mxu0 0.0
        %1966 = vmatpush1.msra.mxu0 0.0
        %1967 = vmatprep.subr.mxu0 0.0
        %1968 = vmatpush1.msra.mxu0 0.0
        %1969 = vmatprep.subr.mxu0 0.0
        %1970 = vmatpush1.msra.mxu0 0.0
        %1971 = vmatprep.subr.mxu0 0.0
        %1972 = vmatpush1.msra.mxu0 0.0
        %1973 = vmatprep.subr.mxu0 0.0
        %1974 = vmatpush1.msra.mxu0 0.0
        %1975 = vmatprep.subr.mxu0 0.0
        %1976 = vmatpush1.msra.mxu0 0.0
        %1977 = vmatprep.subr.mxu0 0.0
        %1978 = vmatpush1.msra.mxu0 0.0
        %1979 = vmatprep.subr.mxu0 0.0
        %1980 = vmatpush1.msra.mxu0 0.0
        %1981 = vmatprep.subr.mxu0 0.0
        %1982 = vmatpush1.msra.mxu0 0.0
        %1983 = vmatprep.subr.mxu0 0.0
        %1984 = vmatpush1.msra.mxu0 0.0
        %1985 = vmatprep.subr.mxu0 0.0
        %1986 = vmatpush1.msra.mxu0 0.0
        %1987 = vmatprep.subr.mxu0 0.0
        %1988 = vmatpush1.msra.mxu0 0.0
        %1989 = vmatprep.subr.mxu0 0.0
        %1990 = vmatpush1.msra.mxu0 0.0
        %1991 = vmatprep.subr.mxu0 0.0
        %1992 = vmatpush1.msra.mxu0 0.0
        %1993 = vmatprep.subr.mxu0 0.0
        %1994 = vmatpush1.msra.mxu0 0.0
        %1995 = vmatprep.subr.mxu0 0.0
        %1996 = vmatpush1.msra.mxu0 0.0
        %1997 = vmatprep.subr.mxu0 0.0
        %1998 = vmatpush1.msra.mxu0 0.0
        %1999 = vmatprep.subr.mxu0 0.0
        %2000 = vmatpush1.msra.mxu0 0.0
        %2001 = vmatprep.subr.mxu0 0.0
        %2002 = vmatpush1.msra.mxu0 0.0
        %2003 = vmatprep.mubr.f32.mxu0 0.0
        %2004 = vmatmul.mubr.f32.gmra.mrb[0].mxu0 %v876
        %v2005 = vpop.f32.mrb[0].mxu0
        %v2006 = vadd.f32 %v868, %v2005
        %v2007 = vpop.f32.mrb[0].mxu0
        %2008 = vmatprep.mubr.f32.mxu0 0.0
        %2009 = vmatmul.mubr.f32.gmra.mrb[0].mxu0 %v879
        %v2010 = vpop.f32.mrb[0].mxu0
        %v2011 = vadd.f32 %v873, %v2010
        %v2012 = vpop.f32.mrb[0].mxu0
        %2013 = vdwg.mxu0
        %v2015 = vsel %vm964, %v1931, 0
        %v2018 = vsel %vm964, %v1936, 0
        %2020 = vmatprep.subr.mxu0 0.0
        %2021 = vmatpush1.msra.mxu0 %v956
        %2022 = vmatprep.subr.mxu0 0.0
        %2023 = vmatpush1.msra.mxu0 %v957
        %2024 = vmatprep.subr.mxu0 0.0
        %2025 = vmatpush1.msra.mxu0 %v958
        %2026 = vmatprep.subr.mxu0 0.0
        %2027 = vmatpush1.msra.mxu0 %v959
        %2028 = vmatprep.subr.mxu0 0.0
        %2029 = vmatpush1.msra.mxu0 %v960
        %2030 = vmatprep.subr.mxu0 0.0
        %2031 = vmatpush1.msra.mxu0 %v961
        %2032 = vmatprep.subr.mxu0 0.0
        %2033 = vmatpush1.msra.mxu0 %v962
        %2034 = vmatprep.subr.mxu0 0.0
        %2035 = vmatpush1.msra.mxu0 %v963
        %2036 = vmatprep.subr.mxu0 0.0
        %2037 = vmatpush1.msra.mxu0 0.0
        %2038 = vmatprep.subr.mxu0 0.0
        %2039 = vmatpush1.msra.mxu0 0.0
        %2040 = vmatprep.subr.mxu0 0.0
        %2041 = vmatpush1.msra.mxu0 0.0
        %2042 = vmatprep.subr.mxu0 0.0
        %2043 = vmatpush1.msra.mxu0 0.0
        %2044 = vmatprep.subr.mxu0 0.0
        %2045 = vmatpush1.msra.mxu0 0.0
        %2046 = vmatprep.subr.mxu0 0.0
        %2047 = vmatpush1.msra.mxu0 0.0
        %2048 = vmatprep.subr.mxu0 0.0
        %2049 = vmatpush1.msra.mxu0 0.0
        %2050 = vmatprep.subr.mxu0 0.0
        %2051 = vmatpush1.msra.mxu0 0.0
        %2052 = vmatprep.subr.mxu0 0.0
        %2053 = vmatpush1.msra.mxu0 0.0
        %2054 = vmatprep.subr.mxu0 0.0
        %2055 = vmatpush1.msra.mxu0 0.0
        %2056 = vmatprep.subr.mxu0 0.0
        %2057 = vmatpush1.msra.mxu0 0.0
        %2058 = vmatprep.subr.mxu0 0.0
        %2059 = vmatpush1.msra.mxu0 0.0
        %2060 = vmatprep.subr.mxu0 0.0
        %2061 = vmatpush1.msra.mxu0 0.0
        %2062 = vmatprep.subr.mxu0 0.0
        %2063 = vmatpush1.msra.mxu0 0.0
        %2064 = vmatprep.subr.mxu0 0.0
        %2065 = vmatpush1.msra.mxu0 0.0
        %2066 = vmatprep.subr.mxu0 0.0
        %2067 = vmatpush1.msra.mxu0 0.0
        %2068 = vmatprep.subr.mxu0 0.0
        %2069 = vmatpush1.msra.mxu0 0.0
        %2070 = vmatprep.subr.mxu0 0.0
        %2071 = vmatpush1.msra.mxu0 0.0
        %2072 = vmatprep.subr.mxu0 0.0
        %2073 = vmatpush1.msra.mxu0 0.0
        %2074 = vmatprep.subr.mxu0 0.0
        %2075 = vmatpush1.msra.mxu0 0.0
        %2076 = vmatprep.subr.mxu0 0.0
        %2077 = vmatpush1.msra.mxu0 0.0
        %2078 = vmatprep.subr.mxu0 0.0
        %2079 = vmatpush1.msra.mxu0 0.0
        %2080 = vmatprep.subr.mxu0 0.0
        %2081 = vmatpush1.msra.mxu0 0.0
        %2082 = vmatprep.subr.mxu0 0.0
        %2083 = vmatpush1.msra.mxu0 0.0
        %2084 = vmatprep.mubr.f32.mxu0 0.0
        %2085 = vmatmul.mubr.f32.gmra.mrb[0].mxu0 %v2015
        %v2086 = vpop.f32.mrb[0].mxu0
        %v2087 = vadd.f32 0.0, %v2086
        %v2088 = vpop.f32.mrb[0].mxu0
        %2089 = vmatprep.mubr.f32.mxu0 0.0
        %2090 = vmatmul.mubr.f32.gmra.mrb[0].mxu0 %v2018
        %v2091 = vpop.f32.mrb[0].mxu0
        %v2092 = vadd.f32 0.0, %v2091
        %v2093 = vpop.f32.mrb[0].mxu0
        %2094 = vdwg.mxu0
        %2095 = vmatprep.subr.mxu0 0.0
        %2096 = vmatpush1.msra.mxu0 %v2087
        %2097 = vmatprep.subr.mxu0 0.0
        %2098 = vmatpush1.msra.mxu0 %v2092
        %2099 = vmatprep.subr.mxu0 0.0
        %2100 = vmatpush1.msra.mxu0 0.0
        %2101 = vmatprep.subr.mxu0 0.0
        %2102 = vmatpush1.msra.mxu0 0.0
        %2103 = vmatprep.subr.mxu0 0.0
        %2104 = vmatpush1.msra.mxu0 0.0
        %2105 = vmatprep.subr.mxu0 0.0
        %2106 = vmatpush1.msra.mxu0 0.0
        %2107 = vmatprep.subr.mxu0 0.0
        %2108 = vmatpush1.msra.mxu0 0.0
        %2109 = vmatprep.subr.mxu0 0.0
        %2110 = vmatpush1.msra.mxu0 0.0
        %2111 = vmatprep.subr.mxu0 0.0
        %2112 = vmatpush1.msra.mxu0 0.0
        %2113 = vmatprep.subr.mxu0 0.0
        %2114 = vmatpush1.msra.mxu0 0.0
        %2115 = vmatprep.subr.mxu0 0.0
        %2116 = vmatpush1.msra.mxu0 0.0
        %2117 = vmatprep.subr.mxu0 0.0
        %2118 = vmatpush1.msra.mxu0 0.0
        %2119 = vmatprep.subr.mxu0 0.0
        %2120 = vmatpush1.msra.mxu0 0.0
        %2121 = vmatprep.subr.mxu0 0.0
        %2122 = vmatpush1.msra.mxu0 0.0
        %2123 = vmatprep.subr.mxu0 0.0
        %2124 = vmatpush1.msra.mxu0 0.0
        %2125 = vmatprep.subr.mxu0 0.0
        %2126 = vmatpush1.msra.mxu0 0.0
        %2127 = vmatprep.subr.mxu0 0.0
        %2128 = vmatpush1.msra.mxu0 0.0
        %2129 = vmatprep.subr.mxu0 0.0
        %2130 = vmatpush1.msra.mxu0 0.0
        %2131 = vmatprep.subr.mxu0 0.0
        %2132 = vmatpush1.msra.mxu0 0.0
        %2133 = vmatprep.subr.mxu0 0.0
        %2134 = vmatpush1.msra.mxu0 0.0
        %2135 = vmatprep.subr.mxu0 0.0
        %2136 = vmatpush1.msra.mxu0 0.0
        %2137 = vmatprep.subr.mxu0 0.0
        %2138 = vmatpush1.msra.mxu0 0.0
        %2139 = vmatprep.subr.mxu0 0.0
        %2140 = vmatpush1.msra.mxu0 0.0
        %2141 = vmatprep.subr.mxu0 0.0
        %2142 = vmatpush1.msra.mxu0 0.0
        %2143 = vmatprep.subr.mxu0 0.0
        %2144 = vmatpush1.msra.mxu0 0.0
        %2145 = vmatprep.subr.mxu0 0.0
        %2146 = vmatpush1.msra.mxu0 0.0
        %2147 = vmatprep.subr.mxu0 0.0
        %2148 = vmatpush1.msra.mxu0 0.0
        %2149 = vmatprep.subr.mxu0 0.0
        %2150 = vmatpush1.msra.mxu0 0.0
        %2151 = vmatprep.subr.mxu0 0.0
        %2152 = vmatpush1.msra.mxu0 0.0
        %2153 = vmatprep.subr.mxu0 0.0
        %2154 = vmatpush1.msra.mxu0 0.0
        %2155 = vmatprep.subr.mxu0 0.0
        %2156 = vmatpush1.msra.mxu0 0.0
        %2157 = vmatprep.subr.mxu0 0.0
        %2158 = vmatpush1.msra.mxu0 0.0
        %2159 = vmatprep.mubr.f32.mxu0 0.0
        %2160 = vmatmul.mubr.f32.gmra.mrb[0].mxu0 %v1063
        %v2161 = vpop.f32.mrb[0].mxu0
        %v2162 = vadd.f32 %v1055, %v2161
        %v2163 = vpop.f32.mrb[0].mxu0
        %2164 = vmatprep.mubr.f32.mxu0 0.0
        %2165 = vmatmul.mubr.f32.gmra.mrb[0].mxu0 %v1066
        %v2166 = vpop.f32.mrb[0].mxu0
        %v2167 = vadd.f32 %v1060, %v2166
        %v2168 = vpop.f32.mrb[0].mxu0
        %2169 = vdwg.mxu0
        %v2170 = vmax.f32 %v2162, 0.0
        %v2171 = vmax.f32 %v2167, 0.0
        %2172 = vmatprep.subr.mxu0 0.0
        %2173 = vmatpush1.msra.mxu0 %v2170
        %2174 = vmatprep.subr.mxu0 0.0
        %2175 = vmatpush1.msra.mxu0 %v2171
        %2176 = vmatprep.subr.mxu0 0.0
        %2177 = vmatpush1.msra.mxu0 0.0
        %2178 = vmatprep.subr.mxu0 0.0
        %2179 = vmatpush1.msra.mxu0 0.0
        %2180 = vmatprep.subr.mxu0 0.0
        %2181 = vmatpush1.msra.mxu0 0.0
        %2182 = vmatprep.subr.mxu0 0.0
        %2183 = vmatpush1.msra.mxu0 0.0
        %2184 = vmatprep.subr.mxu0 0.0
        %2185 = vmatpush1.msra.mxu0 0.0
        %2186 = vmatprep.subr.mxu0 0.0
        %2187 = vmatpush1.msra.mxu0 0.0
        %2188 = vmatprep.subr.mxu0 0.0
        %2189 = vmatpush1.msra.mxu0 0.0
        %2190 = vmatprep.subr.mxu0 0.0
        %2191 = vmatpush1.msra.mxu0 0.0
        %2192 = vmatprep.subr.mxu0 0.0
        %2193 = vmatpush1.msra.mxu0 0.0
        %2194 = vmatprep.subr.mxu0 0.0
        %2195 = vmatpush1.msra.mxu0 0.0
        %2196 = vmatprep.subr.mxu0 0.0
        %2197 = vmatpush1.msra.mxu0 0.0
        %2198 = vmatprep.subr.mxu0 0.0
        %2199 = vmatpush1.msra.mxu0 0.0
        %2200 = vmatprep.subr.mxu0 0.0
        %2201 = vmatpush1.msra.mxu0 0.0
        %2202 = vmatprep.subr.mxu0 0.0
        %2203 = vmatpush1.msra.mxu0 0.0
        %2204 = vmatprep.subr.mxu0 0.0
        %2205 = vmatpush1.msra.mxu0 0.0
        %2206 = vmatprep.subr.mxu0 0.0
        %2207 = vmatpush1.msra.mxu0 0.0
        %2208 = vmatprep.subr.mxu0 0.0
        %2209 = vmatpush1.msra.mxu0 0.0
        %2210 = vmatprep.subr.mxu0 0.0
        %2211 = vmatpush1.msra.mxu0 0.0
        %2212 = vmatprep.subr.mxu0 0.0
        %2213 = vmatpush1.msra.mxu0 0.0
        %2214 = vmatprep.subr.mxu0 0.0
        %2215 = vmatpush1.msra.mxu0 0.0
        %2216 = vmatprep.subr.mxu0 0.0
        %2217 = vmatpush1.msra.mxu0 0.0
        %2218 = vmatprep.subr.mxu0 0.0
        %2219 = vmatpush1.msra.mxu0 0.0
        %2220 = vmatprep.subr.mxu0 0.0
        %2221 = vmatpush1.msra.mxu0 0.0
        %2222 = vmatprep.subr.mxu0 0.0
        %2223 = vmatpush1.msra.mxu0 0.0
        %2224 = vmatprep.subr.mxu0 0.0
        %2225 = vmatpush1.msra.mxu0 0.0
        %2226 = vmatprep.subr.mxu0 0.0
        %2227 = vmatpush1.msra.mxu0 0.0
        %2228 = vmatprep.subr.mxu0 0.0
        %2229 = vmatpush1.msra.mxu0 0.0
        %2230 = vmatprep.subr.mxu0 0.0
        %2231 = vmatpush1.msra.mxu0 0.0
        %2232 = vmatprep.subr.mxu0 0.0
        %2233 = vmatpush1.msra.mxu0 0.0
        %2234 = vmatprep.subr.mxu0 0.0
        %2235 = vmatpush1.msra.mxu0 0.0
        %2236 = vmatprep.mubr.f32.mxu0 0.0
        %2237 = vmatmul.mubr.f32.gmra.mrb[0].mxu0 %v1162
        %v2238 = vpop.f32.mrb[0].mxu0
        %v2239 = vadd.f32 %v1154, %v2238
        %v2240 = vpop.f32.mrb[0].mxu0
        %2241 = vmatprep.mubr.f32.mxu0 0.0
        %2242 = vmatmul.mubr.f32.gmra.mrb[0].mxu0 %v1165
        %v2243 = vpop.f32.mrb[0].mxu0
        %v2244 = vadd.f32 %v1159, %v2243
        %v2245 = vpop.f32.mrb[0].mxu0
        %2246 = vdwg.mxu0
        %2247 = vmatprep.subr.mxu0 0.0
        %2248 = vmatpush1.msra.mxu0 %v2239
        %2249 = vmatprep.subr.mxu0 0.0
        %2250 = vmatpush1.msra.mxu0 %v2244
        %2251 = vmatprep.subr.mxu0 0.0
        %2252 = vmatpush1.msra.mxu0 0.0
        %2253 = vmatprep.subr.mxu0 0.0
        %2254 = vmatpush1.msra.mxu0 0.0
        %2255 = vmatprep.subr.mxu0 0.0
        %2256 = vmatpush1.msra.mxu0 0.0
        %2257 = vmatprep.subr.mxu0 0.0
        %2258 = vmatpush1.msra.mxu0 0.0
        %2259 = vmatprep.subr.mxu0 0.0
        %2260 = vmatpush1.msra.mxu0 0.0
        %2261 = vmatprep.subr.mxu0 0.0
        %2262 = vmatpush1.msra.mxu0 0.0
        %2263 = vmatprep.subr.mxu0 0.0
        %2264 = vmatpush1.msra.mxu0 0.0
        %2265 = vmatprep.subr.mxu0 0.0
        %2266 = vmatpush1.msra.mxu0 0.0
        %2267 = vmatprep.subr.mxu0 0.0
        %2268 = vmatpush1.msra.mxu0 0.0
        %2269 = vmatprep.subr.mxu0 0.0
        %2270 = vmatpush1.msra.mxu0 0.0
        %2271 = vmatprep.subr.mxu0 0.0
        %2272 = vmatpush1.msra.mxu0 0.0
        %2273 = vmatprep.subr.mxu0 0.0
        %2274 = vmatpush1.msra.mxu0 0.0
        %2275 = vmatprep.subr.mxu0 0.0
        %2276 = vmatpush1.msra.mxu0 0.0
        %2277 = vmatprep.subr.mxu0 0.0
        %2278 = vmatpush1.msra.mxu0 0.0
        %2279 = vmatprep.subr.mxu0 0.0
        %2280 = vmatpush1.msra.mxu0 0.0
        %2281 = vmatprep.subr.mxu0 0.0
        %2282 = vmatpush1.msra.mxu0 0.0
        %2283 = vmatprep.subr.mxu0 0.0
        %2284 = vmatpush1.msra.mxu0 0.0
        %2285 = vmatprep.subr.mxu0 0.0
        %2286 = vmatpush1.msra.mxu0 0.0
        %2287 = vmatprep.subr.mxu0 0.0
        %2288 = vmatpush1.msra.mxu0 0.0
        %2289 = vmatprep.subr.mxu0 0.0
        %2290 = vmatpush1.msra.mxu0 0.0
        %2291 = vmatprep.subr.mxu0 0.0
        %2292 = vmatpush1.msra.mxu0 0.0
        %2293 = vmatprep.subr.mxu0 0.0
        %2294 = vmatpush1.msra.mxu0 0.0
        %2295 = vmatprep.subr.mxu0 0.0
        %2296 = vmatpush1.msra.mxu0 0.0
        %2297 = vmatprep.subr.mxu0 0.0
        %2298 = vmatpush1.msra.mxu0 0.0
        %2299 = vmatprep.subr.mxu0 0.0
        %2300 = vmatpush1.msra.mxu0 0.0
        %2301 = vmatprep.subr.mxu0 0.0
        %2302 = vmatpush1.msra.mxu0 0.0
        %2303 = vmatprep.subr.mxu0 0.0
        %2304 = vmatpush1.msra.mxu0 0.0
        %2305 = vmatprep.subr.mxu0 0.0
        %2306 = vmatpush1.msra.mxu0 0.0
        %2307 = vmatprep.subr.mxu0 0.0
        %2308 = vmatpush1.msra.mxu0 0.0
        %2309 = vmatprep.subr.mxu0 0.0
        %2310 = vmatpush1.msra.mxu0 0.0
        %2311 = vmatprep.mubr.f32.mxu0 0.0
        %2312 = vmatmul.mubr.f32.gmra.mrb[0].mxu0 %v1259
        %v2313 = vpop.f32.mrb[0].mxu0
        %v2314 = vadd.f32 %v1251, %v2313
        %v2315 = vpop.f32.mrb[0].mxu0
        %2316 = vmatprep.mubr.f32.mxu0 0.0
        %2317 = vmatmul.mubr.f32.gmra.mrb[0].mxu0 %v1262
        %v2318 = vpop.f32.mrb[0].mxu0
        %v2319 = vadd.f32 %v1256, %v2318
        %v2320 = vpop.f32.mrb[0].mxu0
        %2321 = vdwg.mxu0
        %2322 = vmatprep.subr.mxu0 0.0
        %2323 = vmatpush1.msra.mxu0 %v2006
        %2324 = vmatprep.subr.mxu0 0.0
        %2325 = vmatpush1.msra.mxu0 %v2011
        %2326 = vmatprep.subr.mxu0 0.0
        %2327 = vmatpush1.msra.mxu0 0.0
        %2328 = vmatprep.subr.mxu0 0.0
        %2329 = vmatpush1.msra.mxu0 0.0
        %2330 = vmatprep.subr.mxu0 0.0
        %2331 = vmatpush1.msra.mxu0 0.0
        %2332 = vmatprep.subr.mxu0 0.0
        %2333 = vmatpush1.msra.mxu0 0.0
        %2334 = vmatprep.subr.mxu0 0.0
        %2335 = vmatpush1.msra.mxu0 0.0
        %2336 = vmatprep.subr.mxu0 0.0
        %2337 = vmatpush1.msra.mxu0 0.0
        %2338 = vmatprep.subr.mxu0 0.0
        %2339 = vmatpush1.msra.mxu0 0.0
        %2340 = vmatprep.subr.mxu0 0.0
        %2341 = vmatpush1.msra.mxu0 0.0
        %2342 = vmatprep.subr.mxu0 0.0
        %2343 = vmatpush1.msra.mxu0 0.0
        %2344 = vmatprep.subr.mxu0 0.0
        %2345 = vmatpush1.msra.mxu0 0.0
        %2346 = vmatprep.subr.mxu0 0.0
        %2347 = vmatpush1.msra.mxu0 0.0
        %2348 = vmatprep.subr.mxu0 0.0
        %2349 = vmatpush1.msra.mxu0 0.0
        %2350 = vmatprep.subr.mxu0 0.0
        %2351 = vmatpush1.msra.mxu0 0.0
        %2352 = vmatprep.subr.mxu0 0.0
        %2353 = vmatpush1.msra.mxu0 0.0
        %2354 = vmatprep.subr.mxu0 0.0
        %2355 = vmatpush1.msra.mxu0 0.0
        %2356 = vmatprep.subr.mxu0 0.0
        %2357 = vmatpush1.msra.mxu0 0.0
        %2358 = vmatprep.subr.mxu0 0.0
        %2359 = vmatpush1.msra.mxu0 0.0
        %2360 = vmatprep.subr.mxu0 0.0
        %2361 = vmatpush1.msra.mxu0 0.0
        %2362 = vmatprep.subr.mxu0 0.0
        %2363 = vmatpush1.msra.mxu0 0.0
        %2364 = vmatprep.subr.mxu0 0.0
        %2365 = vmatpush1.msra.mxu0 0.0
        %2366 = vmatprep.subr.mxu0 0.0
        %2367 = vmatpush1.msra.mxu0 0.0
        %2368 = vmatprep.subr.mxu0 0.0
        %2369 = vmatpush1.msra.mxu0 0.0
        %2370 = vmatprep.subr.mxu0 0.0
        %2371 = vmatpush1.msra.mxu0 0.0
        %2372 = vmatprep.subr.mxu0 0.0
        %2373 = vmatpush1.msra.mxu0 0.0
        %2374 = vmatprep.subr.mxu0 0.0
        %2375 = vmatpush1.msra.mxu0 0.0
        %2376 = vmatprep.subr.mxu0 0.0
        %2377 = vmatpush1.msra.mxu0 0.0
        %2378 = vmatprep.subr.mxu0 0.0
        %2379 = vmatpush1.msra.mxu0 0.0
        %2380 = vmatprep.subr.mxu0 0.0
        %2381 = vmatpush1.msra.mxu0 0.0
        %2382 = vmatprep.subr.mxu0 0.0
        %2383 = vmatpush1.msra.mxu0 0.0
        %2384 = vmatprep.subr.mxu0 0.0
        %2385 = vmatpush1.msra.mxu0 0.0
        %2386 = vmatprep.mubr.f32.mxu0 0.0
        %2387 = vmatmul.mubr.f32.gmra.mrb[0].mxu0 %v1356
        %v2388 = vpop.f32.mrb[0].mxu0
        %v2389 = vadd.f32 %v1348, %v2388
        %v2390 = vpop.f32.mrb[0].mxu0
        %2391 = vmatprep.mubr.f32.mxu0 0.0
        %2392 = vmatmul.mubr.f32.gmra.mrb[0].mxu0 %v1359
        %v2393 = vpop.f32.mrb[0].mxu0
        %v2394 = vadd.f32 %v1353, %v2393
        %v2395 = vpop.f32.mrb[0].mxu0
        %2396 = vdwg.mxu0
        %v2397 = vxor.u32 %v2314, 2147483648
        %v2398 = vmul.f32 %v2397, 1.442695
        %v2399 = vpow.pop %v2398
        %v2400 = vadd.f32 %v2399, 1.0
        %v2401 = vrcp.pop %v2400
        %v2402 = vmul.f32 1.0, %v2401
        %v2403 = vsub.f32 1.0, %v2402
        %v2404 = vtanh.pop %v2319
        %v2405 = vmul.f32 %v2403, %v2404
        %v2406 = vxor.u32 %v2389, 2147483648
        %v2407 = vmul.f32 %v2406, 1.442695
        %v2408 = vpow.pop %v2407
        %v2409 = vadd.f32 %v2408, 1.0
        %v2410 = vrcp.pop %v2409
        %v2411 = vmul.f32 1.0, %v2410
        %v2412 = vsub.f32 1.0, %v2411
        %v2413 = vtanh.pop %v2394
        %v2414 = vmul.f32 %v2412, %v2413
        %v2415 = vstv %s1460
        %v2416 = vmul.f32 %v2415, %v2405
        %v2417 = vadd.f32 %v1456, %v2416
        %v2418 = vmul.f32 %v2415, %v2414
        %v2419 = vadd.f32 %v1458, %v2418
        %2420 = vst.msk [vmem:[%s287] sm:$0xff] %vm580, %v2417
        %2421 = vst.msk [vmem:[%s294] sm:$0xff] %vm964, %v2419
        %s2422 = sand.u32 %s155, 1
        %s2423 = scalar_lea.sflag [#allocation6], %s2422
        %s2424 = sand.u32 %s155, 1
        %s2425 = smul.addr %s2424, 8
        %s2426 = scalar_lea.vmem [#allocation7], %s2425
        %s2427 = sand.u32 %s181, 1
        %s2428 = scalar_lea.sflag [#allocation9], %s2427
        %s2429 = sand.u32 %s181, 1
        %s2430 = smul.addr %s2429, 8
        %s2431 = scalar_lea.vmem [#allocation8], %s2430
        // Predicated region
        $region45: #{tpu_custom_call.1} parent=39 // pred_check
          %p2432 = pneg %p165
        $region46: #{tpu_custom_call.1} parent=39 // pred_check_branch
          %2434 = sbr.rel (%p2432) target = $region48
        $region47: #{tpu_custom_call.1} parent=39 // pred_region
          %s2436 = ssub.s32 128, 128
          %2437 = vsyncadd %s2423, %s2436
          %s2438 = smul.addr %s32, 128
          %s2439 = scalar_lea.hbm %s6, %s2438
          %s2441 = sshll.u32 %s2426, 4
          %s2442 = int_to_ptr.vmem [resolvable:$true] %s2441
          %2444 = dma.vmem_to_hbm [thread:$0]  %s2442, 128, %s2439, %s2423
        $region48: #{tpu_custom_call.1} parent=39 // pred_fallthru
          _
        // Predicated region
        $region49: #{tpu_custom_call.1} parent=39 // pred_check
          %p2445 = pneg %p191
        $region50: #{tpu_custom_call.1} parent=39 // pred_check_branch
          %2447 = sbr.rel (%p2445) target = $region52
        $region51: #{tpu_custom_call.1} parent=39 // pred_region
          %s2449 = ssub.s32 128, 128
          %2450 = vsyncadd %s2428, %s2449
          %s2451 = smul.addr %s32, 128
          %s2452 = scalar_lea.hbm %s7, %s2451
          %s2454 = sshll.u32 %s2431, 4
          %s2455 = int_to_ptr.vmem [resolvable:$true] %s2454
          %2457 = dma.vmem_to_hbm [thread:$0]  %s2455, 128, %s2452, %s2428
        $region52: #{tpu_custom_call.1} parent=39 // pred_fallthru
          _
      $region40: #{tpu_custom_call.1} parent=5 // pred_fallthru
        _
      %p2458 = scmp.le.s32.totalorder 2, %s27
      // Predicated region
      $region53: #{tpu_custom_call.1} parent=5 // pred_check
        %p2459 = pneg %p2458
      $region54: #{tpu_custom_call.1} parent=5 // pred_check_branch
        %2461 = sbr.rel (%p2459) target = $region56
      $region55: #{tpu_custom_call.1} parent=5 // pred_region
        %s2462 = ssub.s32 %s27, 2
        // Predicated region
        $region57: #{tpu_custom_call.1} parent=55 // pred_check
          %p2463 = pneg %p171
        $region58: #{tpu_custom_call.1} parent=55 // pred_check_branch
          %2465 = sbr.rel (%p2463) target = $region60
        $region59: #{tpu_custom_call.1} parent=55 // pred_region
          %s2466 = sand.u32 %s156, 1
          %s2467 = scalar_lea.sflag [#allocation6], %s2466
          %s2468 = sand.u32 %s156, 1
          %s2469 = smul.addr %s2468, 8
          %s2470 = scalar_lea.vmem [#allocation7], %s2469
          %2471 = dma.done %s2467, 128
        $region60: #{tpu_custom_call.1} parent=55 // pred_fallthru
          _
        // Predicated region
        $region61: #{tpu_custom_call.1} parent=55 // pred_check
          %p2472 = pneg %p197
        $region62: #{tpu_custom_call.1} parent=55 // pred_check_branch
          %2474 = sbr.rel (%p2472) target = $region64
        $region63: #{tpu_custom_call.1} parent=55 // pred_region
          %s2475 = sand.u32 %s182, 1
          %s2476 = scalar_lea.sflag [#allocation9], %s2475
          %s2477 = sand.u32 %s182, 1
          %s2478 = smul.addr %s2477, 8
          %s2479 = scalar_lea.vmem [#allocation8], %s2478
          %2480 = dma.done %s2476, 128
        $region64: #{tpu_custom_call.1} parent=55 // pred_fallthru
          _
      $region56: #{tpu_custom_call.1} parent=5 // pred_fallthru
        _
    $region6: #{tpu_custom_call.1} parent=1 // loop_footer
      %s31 = sadd.s32 1, %s27
    $region7: #{tpu_custom_call.1} parent=1 // loop_footer_branch
      %26 = sbr.rel target = $region3
    $region8: #{tpu_custom_call.1} parent=1 // loop_exit
      _
    %2481 = vsyncpa [#allocation5], 1
    %s2482 = scalar_lea.sflag [#allocation5], 1
    %2483 = vsyncpa %s2482, 1
    %2484 = vsyncpa [#allocation6], 1
    %s2485 = scalar_lea.sflag [#allocation6], 1
    %2486 = vsyncpa %s2485, 1
    %2487 = vsyncpa [#allocation9], 1
    %s2488 = scalar_lea.sflag [#allocation9], 1
    %2489 = vsyncpa %s2488, 1

</llo_original>
